<compile_context>
chip_gen: v5e
topology: v5e:2x2
jax: 0.10.0
libtpu: 0.0.40
codegen_flags: <defaults>
</compile_context>

<pallas_src>
import functools
import math

import jax
import jax.numpy as jnp
from jax import lax
from jax.experimental import pallas as pl
from jax.experimental.pallas import tpu as pltpu

BN_EPS = 1e-5


# ------------------------------ Pallas kernel --------------------------------

def _preact_block_kernel(x_ref, w1_ref, w2_ref, s1_ref, b1_ref, s2_ref, b2_ref,
                         *rest, stride, has_downsample, H, W, Ho, Wo, Cin,
                         planes):
    """One image of: conv2(relu(bn2(conv1(relu(bn1(x)))))) + residual."""
    idx = 0
    wd_ref = None
    if has_downsample:
        wd_ref = rest[idx]; idx += 1
    o_ref = rest[idx]; idx += 1
    pad1_ref = rest[idx]; idx += 1
    pad2_ref = rest[idx]; idx += 1
    rowbuf_ref = rest[idx] if stride > 1 else None

    # ---- BN1 + ReLU (f32 element-wise math on the VPU) ----
    x = x_ref[0]                                            # (H, W, Cin) f32
    s1 = s1_ref[...].reshape(1, 1, Cin)
    b1 = b1_ref[...].reshape(1, 1, Cin)
    pre = jnp.maximum(x * s1 + b1, 0.0)                     # (H, W, Cin) f32

    # ---- zero-pad (padding=1) into a VMEM scratch: no HBM im2col pass ----
    pad1_ref[...] = jnp.zeros(pad1_ref.shape, pad1_ref.dtype)
    pad1_ref[pl.ds(1, H), pl.ds(1, W), :] = pre

    def conv3x3(pad_ref, w_ref, ho, wo, cin, cstride):
        """3x3 conv as 9 shifted-window bf16 MXU matmuls, f32 accumulation."""
        cout = w_ref.shape[-1]
        acc = jnp.zeros((ho * wo, cout), jnp.float32)
        for di in range(3):
            if cstride > 1:
                # Gather the strided rows with plain slab copies; the strided
                # columns are read below with a single sublane-strided pl.ds.
                for r in range(ho):
                    rowbuf_ref[r, :, :] = pad_ref[di + r * cstride, :, :]
            for dj in range(3):
                if cstride == 1:
                    win = pad_ref[pl.ds(di, ho), pl.ds(dj, wo), :]
                else:
                    win = rowbuf_ref[:, pl.ds(dj, wo, stride=cstride), :]
                lhs = win.reshape(ho * wo, cin).astype(jnp.bfloat16)
                acc = acc + jnp.dot(lhs, w_ref[di * 3 + dj],
                                    preferred_element_type=jnp.float32)
        return acc

    # ---- residual path ----
    if has_downsample:                 # 1x1 conv (block stride) on relu(bn1(x))
        if stride == 1:
            d_in = pre
        else:
            for r in range(Ho):
                rowbuf_ref[r, :, :] = pad1_ref[1 + r * stride, :, :]
            d_in = rowbuf_ref[:, pl.ds(1, Wo, stride=stride), :]
        res = jnp.dot(d_in.reshape(Ho * Wo, Cin).astype(jnp.bfloat16),
                      wd_ref[...], preferred_element_type=jnp.float32)
    else:                              # identity residual, kept exact in f32
        res = x.reshape(H * W, Cin)

    # ---- conv1 (3x3, stride) -> BN2 -> ReLU (f32 epilogue) ----
    acc1 = conv3x3(pad1_ref, w1_ref, Ho, Wo, Cin, stride)
    out1 = jnp.maximum(acc1 * s2_ref[...] + b2_ref[...], 0.0)

    # ---- zero-pad conv2 input in VMEM ----
    pad2_ref[...] = jnp.zeros(pad2_ref.shape, pad2_ref.dtype)
    pad2_ref[pl.ds(1, Ho), pl.ds(1, Wo), :] = out1.reshape(Ho, Wo, planes)

    # ---- conv2 (3x3, stride 1) + residual add, no trailing ReLU ----
    acc2 = conv3x3(pad2_ref, w2_ref, Ho, Wo, planes, 1)
    out = acc2 + res
    o_ref[0] = out.reshape(Ho, Wo, planes).astype(o_ref.dtype)


# --------------------------------- wrapper -----------------------------------

def preact_basic_block(x_nchw, params, *, stride=1):
    """PreActBasicBlock forward. x_nchw: (N, Cin, H, W) f32 (PyTorch layout).

    params (see fold_params): w1 (9, Cin, planes) bf16, w2 (9, planes, planes)
    bf16, s1/b1 (1, Cin) f32, s2/b2 (1, planes) f32, and optionally
    wd (Cin, planes) bf16 for the 1x1 downsample conv.
    Returns (N, planes, Ho, Wo) f32.
    """
    x = jnp.transpose(x_nchw, (0, 2, 3, 1)).astype(jnp.float32)   # -> NHWC
    N, H, W, Cin = x.shape
    planes = params["w1"].shape[-1]
    has_down = "wd" in params
    Ho = (H + 2 - 3) // stride + 1
    Wo = (W + 2 - 3) // stride + 1
    if not has_down:
        assert stride == 1 and Cin == planes, \
            "identity residual requires stride=1 and Cin == planes"

    args = [x, params["w1"], params["w2"],
            params["s1"], params["b1"], params["s2"], params["b2"]]
    in_specs = [
        pl.BlockSpec((1, H, W, Cin), lambda n: (n, 0, 0, 0)),
        pl.BlockSpec((9, Cin, planes), lambda n: (0, 0, 0)),
        pl.BlockSpec((9, planes, planes), lambda n: (0, 0, 0)),
        pl.BlockSpec((1, Cin), lambda n: (0, 0)),
        pl.BlockSpec((1, Cin), lambda n: (0, 0)),
        pl.BlockSpec((1, planes), lambda n: (0, 0)),
        pl.BlockSpec((1, planes), lambda n: (0, 0)),
    ]
    if has_down:
        args.append(params["wd"])
        in_specs.append(pl.BlockSpec((Cin, planes), lambda n: (0, 0)))

    # f32 VMEM pad scratches: padding writes / shifted-window reads stay on
    # plain 32-bit sublanes; operands are cast to bf16 right at the MXU dot.
    scratch = [pltpu.VMEM((H + 2, W + 2, Cin), jnp.float32),
               pltpu.VMEM((Ho + 2, Wo + 2, planes), jnp.float32)]
    if stride > 1:
        scratch.append(pltpu.VMEM((Ho, W + 2, Cin), jnp.float32))

    kernel = functools.partial(
        _preact_block_kernel, stride=stride, has_downsample=has_down,
        H=H, W=W, Ho=Ho, Wo=Wo, Cin=Cin, planes=planes)

    out = pl.pallas_call(
        kernel,
        out_shape=jax.ShapeDtypeStruct((N, Ho, Wo, planes), jnp.float32),
        grid=(N,),
        in_specs=in_specs,
        out_specs=pl.BlockSpec((1, Ho, Wo, planes), lambda n: (n, 0, 0, 0)),
        scratch_shapes=scratch,
        # Batch axis is independent -> "parallel" so v7x's two TensorCores can
        # split the grid. Footprint is tiny, so no vmem_limit override (would
        # have to stay < 64 MiB physical VMEM on v7x anyway).
        compiler_params=pltpu.CompilerParams(
            dimension_semantics=("parallel",)),
    )(*args)
    return jnp.transpose(out, (0, 3, 1, 2))                       # -> NCHW


# ------------------------- parameters (PyTorch init) --------------------------

def make_raw_params(key, inplanes, planes, has_downsample):
    """Raw PyTorch-layout parameters: OIHW conv weights, eval-mode BN stats."""
    ks = jax.random.split(key, 5)

    def conv_w(k, cout, cin, ksz):
        # kaiming_normal_(mode='fan_out', nonlinearity='relu')
        std = math.sqrt(2.0 / (cout * ksz * ksz))
        return std * jax.random.normal(k, (cout, cin, ksz, ksz), jnp.float32)

    def bn_stats(k, c):      # non-trivial stats to exercise the general fold
        kg, kb, km, kv = jax.random.split(k, 4)
        gamma = 1.0 + 0.2 * jax.random.normal(kg, (c,), jnp.float32)
        beta = 0.1 * jax.random.normal(kb, (c,), jnp.float32)
        mean = 0.2 * jax.random.normal(km, (c,), jnp.float32)
        var = 0.5 + jax.random.uniform(kv, (c,), jnp.float32)
        return gamma, beta, mean, var

    raw = {"bn1": bn_stats(ks[0], inplanes),
           "conv1_w": conv_w(ks[1], planes, inplanes, 3),
           "bn2": bn_stats(ks[2], planes),
           "conv2_w": conv_w(ks[3], planes, planes, 3)}
    if has_downsample:
        raw["down_w"] = conv_w(ks[4], planes, inplanes, 1)
    return raw


def fold_params(raw):
    """Fold eval-mode BN into per-channel scale/bias; pre-pack conv weights for
    the kernel once (bf16, tap-major (kh*kw, Cin, Cout) layout)."""

    def fold_bn(gamma, beta, mean, var):
        scale = gamma / jnp.sqrt(var + BN_EPS)
        bias = beta - mean * scale
        return (scale.reshape(1, -1).astype(jnp.float32),
                bias.reshape(1, -1).astype(jnp.float32))

    def conv3_mat(w):                       # (Co, Ci, 3, 3) -> (9, Ci, Co)
        co, ci = w.shape[0], w.shape[1]
        return (jnp.transpose(w, (2, 3, 1, 0))
                .reshape(9, ci, co).astype(jnp.bfloat16))

    s1, b1 = fold_bn(*raw["bn1"])
    s2, b2 = fold_bn(*raw["bn2"])
    p = {"w1": conv3_mat(raw["conv1_w"]), "w2": conv3_mat(raw["conv2_w"]),
         "s1": s1, "b1": b1, "s2": s2, "b2": b2}
    if "down_w" in raw:
        p["wd"] = jnp.transpose(raw["down_w"][:, :, 0, 0],
                                (1, 0)).astype(jnp.bfloat16)
    return p


# ---------------------------- pure-JAX reference ------------------------------

def preact_block_ref(x_nchw, raw, stride):
    x = jnp.transpose(x_nchw, (0, 2, 3, 1)).astype(jnp.float32)

    def bn(v, stats):
        gamma, beta, mean, var = stats
        return (v - mean) * (gamma / jnp.sqrt(var + BN_EPS)) + beta

    def conv(v, w_oihw, s):
        w = jnp.transpose(w_oihw, (2, 3, 1, 0))          # HWIO
        pad = (w.shape[0] - 1) // 2
        return lax.conv_general_dilated(
            v, w, (s, s), ((pad, pad), (pad, pad)),
            dimension_numbers=("NHWC", "HWIO", "NHWC"))

    pre = jnp.maximum(bn(x, raw["bn1"]), 0.0)
    residual = conv(pre, raw["down_w"], stride) if "down_w" in raw else x
    out = conv(pre, raw["conv1_w"], stride)
    out = jnp.maximum(bn(out, raw["bn2"]), 0.0)
    out = conv(out, raw["conv2_w"], 1)
    out = out + residual
    return jnp.transpose(out, (0, 3, 1, 2))


# ------------------------------------ main ------------------------------------

if __name__ == "__main__":
    key = jax.random.PRNGKey(0)
    kx, kpa, kpb = jax.random.split(key, 3)

    x = jax.random.normal(kx, (2, 32, 16, 16), jnp.float32)   # NCHW like PyTorch

    # config A: module defaults (stride=1, downsample=None) -> identity residual
    raw_a = make_raw_params(kpa, inplanes=32, planes=32, has_downsample=False)
    # config B: projection residual via 1x1 downsample conv (inplanes != planes)
    raw_b = make_raw_params(kpb, inplanes=32, planes=64, has_downsample=True)

    fwd = jax.jit(preact_basic_block, static_argnames=("stride",))

    for name, raw in (("identity", raw_a), ("downsample", raw_b)):
        out = fwd(x, fold_params(raw), stride=1)
        jax.block_until_ready(out)
        ref = preact_block_ref(x, raw, 1)
        assert out.shape == ref.shape, (name, out.shape, ref.shape)
        assert bool(jnp.all(jnp.isfinite(out))), name
        rel = float(jnp.max(jnp.abs(out - ref)) /
                    (jnp.max(jnp.abs(ref)) + 1e-6))
        assert rel < 8e-2, (name, rel)   # bf16 MXU operands vs f32 reference
    print("KERNEL_OK")
</pallas_src>

<mosaic_0001>
module attributes {stable_mosaic.version = 11 : i64} {
  func.func @_preact_block_kernel(%arg0: i32, %arg1: memref<1x16x16x32xf32, #tpu.memory_space<vmem>>, %arg2: memref<9x32x32xbf16, #tpu.memory_space<vmem>>, %arg3: memref<9x32x32xbf16, #tpu.memory_space<vmem>>, %arg4: memref<1x32xf32, #tpu.memory_space<vmem>>, %arg5: memref<1x32xf32, #tpu.memory_space<vmem>>, %arg6: memref<1x32xf32, #tpu.memory_space<vmem>>, %arg7: memref<1x32xf32, #tpu.memory_space<vmem>>, %arg8: memref<1x16x16x32xf32, #tpu.memory_space<vmem>>, %arg9: memref<18x18x32xf32, #tpu.memory_space<vmem>>, %arg10: memref<18x18x32xf32, #tpu.memory_space<vmem>>) attributes {dimension_semantics = [#tpu.dimension_semantics<parallel>], iteration_bounds = array<i64: 2>, scalar_prefetch = 0 : i64, scratch_operands = 2 : i64, tpu.core_type = #tpu.core_type<tc>, window_params = [{transform_indices = @transform_0, window_bounds = array<i64: 1, 16, 16, 32>}, {pipeline_mode = #tpu.pipeline_mode<synchronous>, transform_indices = @transform_1, window_bounds = array<i64: 9, 32, 32>}, {pipeline_mode = #tpu.pipeline_mode<synchronous>, transform_indices = @transform_2, window_bounds = array<i64: 9, 32, 32>}, {pipeline_mode = #tpu.pipeline_mode<synchronous>, transform_indices = @transform_3, window_bounds = array<i64: 1, 32>}, {pipeline_mode = #tpu.pipeline_mode<synchronous>, transform_indices = @transform_4, window_bounds = array<i64: 1, 32>}, {pipeline_mode = #tpu.pipeline_mode<synchronous>, transform_indices = @transform_5, window_bounds = array<i64: 1, 32>}, {pipeline_mode = #tpu.pipeline_mode<synchronous>, transform_indices = @transform_6, window_bounds = array<i64: 1, 32>}, {transform_indices = @transform_7, window_bounds = array<i64: 1, 16, 16, 32>}]} {
    %c0 = arith.constant 0 : index
    %c0_0 = arith.constant 0 : index
    %c0_1 = arith.constant 0 : index
    %c0_2 = arith.constant 0 : index
    %0 = vector.load %arg1[%c0, %c0_0, %c0_1, %c0_2] : memref<1x16x16x32xf32, #tpu.memory_space<vmem>>, vector<1x16x16x32xf32>
    %1 = vector.shape_cast %0 : vector<1x16x16x32xf32> to vector<16x16x32xf32>
    %c0_3 = arith.constant 0 : index
    %c0_4 = arith.constant 0 : index
    %2 = vector.load %arg4[%c0_3, %c0_4] : memref<1x32xf32, #tpu.memory_space<vmem>>, vector<1x32xf32>
    %3 = vector.shape_cast %2 : vector<1x32xf32> to vector<1x1x32xf32>
    %c0_5 = arith.constant 0 : index
    %c0_6 = arith.constant 0 : index
    %4 = vector.load %arg5[%c0_5, %c0_6] : memref<1x32xf32, #tpu.memory_space<vmem>>, vector<1x32xf32>
    %5 = vector.shape_cast %4 : vector<1x32xf32> to vector<1x1x32xf32>
    %6 = vector.broadcast %3 : vector<1x1x32xf32> to vector<16x16x32xf32>
    %7 = arith.mulf %1, %6 : vector<16x16x32xf32>
    %8 = vector.broadcast %5 : vector<1x1x32xf32> to vector<16x16x32xf32>
    %9 = arith.addf %7, %8 : vector<16x16x32xf32>
    %cst = arith.constant 0.000000e+00 : f32
    %10 = vector.broadcast %cst : f32 to vector<16x16x32xf32>
    %11 = arith.maximumf %9, %10 : vector<16x16x32xf32>
    %cst_7 = arith.constant 0.000000e+00 : f32
    %12 = vector.broadcast %cst_7 : f32 to vector<18x18x32xf32>
    %c0_8 = arith.constant 0 : index
    %c0_9 = arith.constant 0 : index
    %c0_10 = arith.constant 0 : index
    %13 = vector.load %arg9[%c0_8, %c0_9, %c0_10] : memref<18x18x32xf32, #tpu.memory_space<vmem>>, vector<18x18x32xf32>
    tpu.vector_store %arg9[%c0_8, %c0_9, %c0_10], %12 {strides = array<i32>} : memref<18x18x32xf32, #tpu.memory_space<vmem>>, vector<18x18x32xf32>,
    %c1 = arith.constant 1 : index
    %c1_11 = arith.constant 1 : index
    %c0_12 = arith.constant 0 : index
    %14 = vector.load %arg9[%c1, %c1_11, %c0_12] : memref<18x18x32xf32, #tpu.memory_space<vmem>>, vector<16x16x32xf32>
    tpu.vector_store %arg9[%c1, %c1_11, %c0_12], %11 {strides = array<i32>} : memref<18x18x32xf32, #tpu.memory_space<vmem>>, vector<16x16x32xf32>,
    %15 = vector.shape_cast %1 : vector<16x16x32xf32> to vector<256x32xf32>
    %cst_13 = arith.constant 0.000000e+00 : f32
    %16 = vector.broadcast %cst_13 : f32 to vector<256x32xf32>
    %c0_14 = arith.constant 0 : index
    %c0_15 = arith.constant 0 : index
    %c0_16 = arith.constant 0 : index
    %17 = vector.load %arg9[%c0_14, %c0_15, %c0_16] : memref<18x18x32xf32, #tpu.memory_space<vmem>>, vector<16x16x32xf32>
    %18 = vector.shape_cast %17 : vector<16x16x32xf32> to vector<256x32xf32>
    %19 = arith.truncf %18 : vector<256x32xf32> to vector<256x32xbf16>
    %c0_17 = arith.constant 0 : index
    %c0_18 = arith.constant 0 : index
    %c0_19 = arith.constant 0 : index
    %20 = vector.load %arg2[%c0_17, %c0_18, %c0_19] : memref<9x32x32xbf16, #tpu.memory_space<vmem>>, vector<1x32x32xbf16>
    %21 = vector.shape_cast %20 : vector<1x32x32xbf16> to vector<32x32xbf16>
    %cst_20 = arith.constant dense<0.000000e+00> : vector<256x32xf32>
    %22 = tpu.matmul %19, %21, %cst_20 {dimension_numbers = #tpu.dot_dimension_numbers<[1], [0], [0], [1], [0, 0, 1, 1], [], []>} : vector<256x32xbf16>, vector<32x32xbf16>, vector<256x32xf32> -> vector<256x32xf32>
    %23 = arith.addf %16, %22 : vector<256x32xf32>
    %c0_21 = arith.constant 0 : index
    %c1_22 = arith.constant 1 : index
    %c0_23 = arith.constant 0 : index
    %24 = vector.load %arg9[%c0_21, %c1_22, %c0_23] : memref<18x18x32xf32, #tpu.memory_space<vmem>>, vector<16x16x32xf32>
    %25 = vector.shape_cast %24 : vector<16x16x32xf32> to vector<256x32xf32>
    %26 = arith.truncf %25 : vector<256x32xf32> to vector<256x32xbf16>
    %c1_24 = arith.constant 1 : index
    %c0_25 = arith.constant 0 : index
    %c0_26 = arith.constant 0 : index
    %27 = vector.load %arg2[%c1_24, %c0_25, %c0_26] : memref<9x32x32xbf16, #tpu.memory_space<vmem>>, vector<1x32x32xbf16>
    %28 = vector.shape_cast %27 : vector<1x32x32xbf16> to vector<32x32xbf16>
    %cst_27 = arith.constant dense<0.000000e+00> : vector<256x32xf32>
    %29 = tpu.matmul %26, %28, %cst_27 {dimension_numbers = #tpu.dot_dimension_numbers<[1], [0], [0], [1], [0, 0, 1, 1], [], []>} : vector<256x32xbf16>, vector<32x32xbf16>, vector<256x32xf32> -> vector<256x32xf32>
    %30 = arith.addf %23, %29 : vector<256x32xf32>
    %c0_28 = arith.constant 0 : index
    %c2 = arith.constant 2 : index
    %c0_29 = arith.constant 0 : index
    %31 = vector.load %arg9[%c0_28, %c2, %c0_29] : memref<18x18x32xf32, #tpu.memory_space<vmem>>, vector<16x16x32xf32>
    %32 = vector.shape_cast %31 : vector<16x16x32xf32> to vector<256x32xf32>
    %33 = arith.truncf %32 : vector<256x32xf32> to vector<256x32xbf16>
    %c2_30 = arith.constant 2 : index
    %c0_31 = arith.constant 0 : index
    %c0_32 = arith.constant 0 : index
    %34 = vector.load %arg2[%c2_30, %c0_31, %c0_32] : memref<9x32x32xbf16, #tpu.memory_space<vmem>>, vector<1x32x32xbf16>
    %35 = vector.shape_cast %34 : vector<1x32x32xbf16> to vector<32x32xbf16>
    %cst_33 = arith.constant dense<0.000000e+00> : vector<256x32xf32>
    %36 = tpu.matmul %33, %35, %cst_33 {dimension_numbers = #tpu.dot_dimension_numbers<[1], [0], [0], [1], [0, 0, 1, 1], [], []>} : vector<256x32xbf16>, vector<32x32xbf16>, vector<256x32xf32> -> vector<256x32xf32>
    %37 = arith.addf %30, %36 : vector<256x32xf32>
    %c1_34 = arith.constant 1 : index
    %c0_35 = arith.constant 0 : index
    %c0_36 = arith.constant 0 : index
    %38 = vector.load %arg9[%c1_34, %c0_35, %c0_36] : memref<18x18x32xf32, #tpu.memory_space<vmem>>, vector<16x16x32xf32>
    %39 = vector.shape_cast %38 : vector<16x16x32xf32> to vector<256x32xf32>
    %40 = arith.truncf %39 : vector<256x32xf32> to vector<256x32xbf16>
    %c3 = arith.constant 3 : index
    %c0_37 = arith.constant 0 : index
    %c0_38 = arith.constant 0 : index
    %41 = vector.load %arg2[%c3, %c0_37, %c0_38] : memref<9x32x32xbf16, #tpu.memory_space<vmem>>, vector<1x32x32xbf16>
    %42 = vector.shape_cast %41 : vector<1x32x32xbf16> to vector<32x32xbf16>
    %cst_39 = arith.constant dense<0.000000e+00> : vector<256x32xf32>
    %43 = tpu.matmul %40, %42, %cst_39 {dimension_numbers = #tpu.dot_dimension_numbers<[1], [0], [0], [1], [0, 0, 1, 1], [], []>} : vector<256x32xbf16>, vector<32x32xbf16>, vector<256x32xf32> -> vector<256x32xf32>
    %44 = arith.addf %37, %43 : vector<256x32xf32>
    %c1_40 = arith.constant 1 : index
    %c1_41 = arith.constant 1 : index
    %c0_42 = arith.constant 0 : index
    %45 = vector.load %arg9[%c1_40, %c1_41, %c0_42] : memref<18x18x32xf32, #tpu.memory_space<vmem>>, vector<16x16x32xf32>
    %46 = vector.shape_cast %45 : vector<16x16x32xf32> to vector<256x32xf32>
    %47 = arith.truncf %46 : vector<256x32xf32> to vector<256x32xbf16>
    %c4 = arith.constant 4 : index
    %c0_43 = arith.constant 0 : index
    %c0_44 = arith.constant 0 : index
    %48 = vector.load %arg2[%c4, %c0_43, %c0_44] : memref<9x32x32xbf16, #tpu.memory_space<vmem>>, vector<1x32x32xbf16>
    %49 = vector.shape_cast %48 : vector<1x32x32xbf16> to vector<32x32xbf16>
    %cst_45 = arith.constant dense<0.000000e+00> : vector<256x32xf32>
    %50 = tpu.matmul %47, %49, %cst_45 {dimension_numbers = #tpu.dot_dimension_numbers<[1], [0], [0], [1], [0, 0, 1, 1], [], []>} : vector<256x32xbf16>, vector<32x32xbf16>, vector<256x32xf32> -> vector<256x32xf32>
    %51 = arith.addf %44, %50 : vector<256x32xf32>
    %c1_46 = arith.constant 1 : index
    %c2_47 = arith.constant 2 : index
    %c0_48 = arith.constant 0 : index
    %52 = vector.load %arg9[%c1_46, %c2_47, %c0_48] : memref<18x18x32xf32, #tpu.memory_space<vmem>>, vector<16x16x32xf32>
    %53 = vector.shape_cast %52 : vector<16x16x32xf32> to vector<256x32xf32>
    %54 = arith.truncf %53 : vector<256x32xf32> to vector<256x32xbf16>
    %c5 = arith.constant 5 : index
    %c0_49 = arith.constant 0 : index
    %c0_50 = arith.constant 0 : index
    %55 = vector.load %arg2[%c5, %c0_49, %c0_50] : memref<9x32x32xbf16, #tpu.memory_space<vmem>>, vector<1x32x32xbf16>
    %56 = vector.shape_cast %55 : vector<1x32x32xbf16> to vector<32x32xbf16>
    %cst_51 = arith.constant dense<0.000000e+00> : vector<256x32xf32>
    %57 = tpu.matmul %54, %56, %cst_51 {dimension_numbers = #tpu.dot_dimension_numbers<[1], [0], [0], [1], [0, 0, 1, 1], [], []>} : vector<256x32xbf16>, vector<32x32xbf16>, vector<256x32xf32> -> vector<256x32xf32>
    %58 = arith.addf %51, %57 : vector<256x32xf32>
    %c2_52 = arith.constant 2 : index
    %c0_53 = arith.constant 0 : index
    %c0_54 = arith.constant 0 : index
    %59 = vector.load %arg9[%c2_52, %c0_53, %c0_54] : memref<18x18x32xf32, #tpu.memory_space<vmem>>, vector<16x16x32xf32>
    %60 = vector.shape_cast %59 : vector<16x16x32xf32> to vector<256x32xf32>
    %61 = arith.truncf %60 : vector<256x32xf32> to vector<256x32xbf16>
    %c6 = arith.constant 6 : index
    %c0_55 = arith.constant 0 : index
    %c0_56 = arith.constant 0 : index
    %62 = vector.load %arg2[%c6, %c0_55, %c0_56] : memref<9x32x32xbf16, #tpu.memory_space<vmem>>, vector<1x32x32xbf16>
    %63 = vector.shape_cast %62 : vector<1x32x32xbf16> to vector<32x32xbf16>
    %cst_57 = arith.constant dense<0.000000e+00> : vector<256x32xf32>
    %64 = tpu.matmul %61, %63, %cst_57 {dimension_numbers = #tpu.dot_dimension_numbers<[1], [0], [0], [1], [0, 0, 1, 1], [], []>} : vector<256x32xbf16>, vector<32x32xbf16>, vector<256x32xf32> -> vector<256x32xf32>
    %65 = arith.addf %58, %64 : vector<256x32xf32>
    %c2_58 = arith.constant 2 : index
    %c1_59 = arith.constant 1 : index
    %c0_60 = arith.constant 0 : index
    %66 = vector.load %arg9[%c2_58, %c1_59, %c0_60] : memref<18x18x32xf32, #tpu.memory_space<vmem>>, vector<16x16x32xf32>
    %67 = vector.shape_cast %66 : vector<16x16x32xf32> to vector<256x32xf32>
    %68 = arith.truncf %67 : vector<256x32xf32> to vector<256x32xbf16>
    %c7 = arith.constant 7 : index
    %c0_61 = arith.constant 0 : index
    %c0_62 = arith.constant 0 : index
    %69 = vector.load %arg2[%c7, %c0_61, %c0_62] : memref<9x32x32xbf16, #tpu.memory_space<vmem>>, vector<1x32x32xbf16>
    %70 = vector.shape_cast %69 : vector<1x32x32xbf16> to vector<32x32xbf16>
    %cst_63 = arith.constant dense<0.000000e+00> : vector<256x32xf32>
    %71 = tpu.matmul %68, %70, %cst_63 {dimension_numbers = #tpu.dot_dimension_numbers<[1], [0], [0], [1], [0, 0, 1, 1], [], []>} : vector<256x32xbf16>, vector<32x32xbf16>, vector<256x32xf32> -> vector<256x32xf32>
    %72 = arith.addf %65, %71 : vector<256x32xf32>
    %c2_64 = arith.constant 2 : index
    %c2_65 = arith.constant 2 : index
    %c0_66 = arith.constant 0 : index
    %73 = vector.load %arg9[%c2_64, %c2_65, %c0_66] : memref<18x18x32xf32, #tpu.memory_space<vmem>>, vector<16x16x32xf32>
    %74 = vector.shape_cast %73 : vector<16x16x32xf32> to vector<256x32xf32>
    %75 = arith.truncf %74 : vector<256x32xf32> to vector<256x32xbf16>
    %c8 = arith.constant 8 : index
    %c0_67 = arith.constant 0 : index
    %c0_68 = arith.constant 0 : index
    %76 = vector.load %arg2[%c8, %c0_67, %c0_68] : memref<9x32x32xbf16, #tpu.memory_space<vmem>>, vector<1x32x32xbf16>
    %77 = vector.shape_cast %76 : vector<1x32x32xbf16> to vector<32x32xbf16>
    %cst_69 = arith.constant dense<0.000000e+00> : vector<256x32xf32>
    %78 = tpu.matmul %75, %77, %cst_69 {dimension_numbers = #tpu.dot_dimension_numbers<[1], [0], [0], [1], [0, 0, 1, 1], [], []>} : vector<256x32xbf16>, vector<32x32xbf16>, vector<256x32xf32> -> vector<256x32xf32>
    %79 = arith.addf %72, %78 : vector<256x32xf32>
    %c0_70 = arith.constant 0 : index
    %c0_71 = arith.constant 0 : index
    %80 = vector.load %arg6[%c0_70, %c0_71] : memref<1x32xf32, #tpu.memory_space<vmem>>, vector<1x32xf32>
    %81 = vector.broadcast %80 : vector<1x32xf32> to vector<256x32xf32>
    %82 = arith.mulf %79, %81 : vector<256x32xf32>
    %c0_72 = arith.constant 0 : index
    %c0_73 = arith.constant 0 : index
    %83 = vector.load %arg7[%c0_72, %c0_73] : memref<1x32xf32, #tpu.memory_space<vmem>>, vector<1x32xf32>
    %84 = vector.broadcast %83 : vector<1x32xf32> to vector<256x32xf32>
    %85 = arith.addf %82, %84 : vector<256x32xf32>
    %cst_74 = arith.constant 0.000000e+00 : f32
    %86 = vector.broadcast %cst_74 : f32 to vector<256x32xf32>
    %87 = arith.maximumf %85, %86 : vector<256x32xf32>
    %cst_75 = arith.constant 0.000000e+00 : f32
    %88 = vector.broadcast %cst_75 : f32 to vector<18x18x32xf32>
    %c0_76 = arith.constant 0 : index
    %c0_77 = arith.constant 0 : index
    %c0_78 = arith.constant 0 : index
    %89 = vector.load %arg10[%c0_76, %c0_77, %c0_78] : memref<18x18x32xf32, #tpu.memory_space<vmem>>, vector<18x18x32xf32>
    tpu.vector_store %arg10[%c0_76, %c0_77, %c0_78], %88 {strides = array<i32>} : memref<18x18x32xf32, #tpu.memory_space<vmem>>, vector<18x18x32xf32>,
    %90 = vector.shape_cast %87 : vector<256x32xf32> to vector<16x16x32xf32>
    %c1_79 = arith.constant 1 : index
    %c1_80 = arith.constant 1 : index
    %c0_81 = arith.constant 0 : index
    %91 = vector.load %arg10[%c1_79, %c1_80, %c0_81] : memref<18x18x32xf32, #tpu.memory_space<vmem>>, vector<16x16x32xf32>
    tpu.vector_store %arg10[%c1_79, %c1_80, %c0_81], %90 {strides = array<i32>} : memref<18x18x32xf32, #tpu.memory_space<vmem>>, vector<16x16x32xf32>,
    %cst_82 = arith.constant 0.000000e+00 : f32
    %92 = vector.broadcast %cst_82 : f32 to vector<256x32xf32>
    %c0_83 = arith.constant 0 : index
    %c0_84 = arith.constant 0 : index
    %c0_85 = arith.constant 0 : index
    %93 = vector.load %arg10[%c0_83, %c0_84, %c0_85] : memref<18x18x32xf32, #tpu.memory_space<vmem>>, vector<16x16x32xf32>
    %94 = vector.shape_cast %93 : vector<16x16x32xf32> to vector<256x32xf32>
    %95 = arith.truncf %94 : vector<256x32xf32> to vector<256x32xbf16>
    %c0_86 = arith.constant 0 : index
    %c0_87 = arith.constant 0 : index
    %c0_88 = arith.constant 0 : index
    %96 = vector.load %arg3[%c0_86, %c0_87, %c0_88] : memref<9x32x32xbf16, #tpu.memory_space<vmem>>, vector<1x32x32xbf16>
    %97 = vector.shape_cast %96 : vector<1x32x32xbf16> to vector<32x32xbf16>
    %cst_89 = arith.constant dense<0.000000e+00> : vector<256x32xf32>
    %98 = tpu.matmul %95, %97, %cst_89 {dimension_numbers = #tpu.dot_dimension_numbers<[1], [0], [0], [1], [0, 0, 1, 1], [], []>} : vector<256x32xbf16>, vector<32x32xbf16>, vector<256x32xf32> -> vector<256x32xf32>
    %99 = arith.addf %92, %98 : vector<256x32xf32>
    %c0_90 = arith.constant 0 : index
    %c1_91 = arith.constant 1 : index
    %c0_92 = arith.constant 0 : index
    %100 = vector.load %arg10[%c0_90, %c1_91, %c0_92] : memref<18x18x32xf32, #tpu.memory_space<vmem>>, vector<16x16x32xf32>
    %101 = vector.shape_cast %100 : vector<16x16x32xf32> to vector<256x32xf32>
    %102 = arith.truncf %101 : vector<256x32xf32> to vector<256x32xbf16>
    %c1_93 = arith.constant 1 : index
    %c0_94 = arith.constant 0 : index
    %c0_95 = arith.constant 0 : index
    %103 = vector.load %arg3[%c1_93, %c0_94, %c0_95] : memref<9x32x32xbf16, #tpu.memory_space<vmem>>, vector<1x32x32xbf16>
    %104 = vector.shape_cast %103 : vector<1x32x32xbf16> to vector<32x32xbf16>
    %cst_96 = arith.constant dense<0.000000e+00> : vector<256x32xf32>
    %105 = tpu.matmul %102, %104, %cst_96 {dimension_numbers = #tpu.dot_dimension_numbers<[1], [0], [0], [1], [0, 0, 1, 1], [], []>} : vector<256x32xbf16>, vector<32x32xbf16>, vector<256x32xf32> -> vector<256x32xf32>
    %106 = arith.addf %99, %105 : vector<256x32xf32>
    %c0_97 = arith.constant 0 : index
    %c2_98 = arith.constant 2 : index
    %c0_99 = arith.constant 0 : index
    %107 = vector.load %arg10[%c0_97, %c2_98, %c0_99] : memref<18x18x32xf32, #tpu.memory_space<vmem>>, vector<16x16x32xf32>
    %108 = vector.shape_cast %107 : vector<16x16x32xf32> to vector<256x32xf32>
    %109 = arith.truncf %108 : vector<256x32xf32> to vector<256x32xbf16>
    %c2_100 = arith.constant 2 : index
    %c0_101 = arith.constant 0 : index
    %c0_102 = arith.constant 0 : index
    %110 = vector.load %arg3[%c2_100, %c0_101, %c0_102] : memref<9x32x32xbf16, #tpu.memory_space<vmem>>, vector<1x32x32xbf16>
    %111 = vector.shape_cast %110 : vector<1x32x32xbf16> to vector<32x32xbf16>
    %cst_103 = arith.constant dense<0.000000e+00> : vector<256x32xf32>
    %112 = tpu.matmul %109, %111, %cst_103 {dimension_numbers = #tpu.dot_dimension_numbers<[1], [0], [0], [1], [0, 0, 1, 1], [], []>} : vector<256x32xbf16>, vector<32x32xbf16>, vector<256x32xf32> -> vector<256x32xf32>
    %113 = arith.addf %106, %112 : vector<256x32xf32>
    %c1_104 = arith.constant 1 : index
    %c0_105 = arith.constant 0 : index
    %c0_106 = arith.constant 0 : index
    %114 = vector.load %arg10[%c1_104, %c0_105, %c0_106] : memref<18x18x32xf32, #tpu.memory_space<vmem>>, vector<16x16x32xf32>
    %115 = vector.shape_cast %114 : vector<16x16x32xf32> to vector<256x32xf32>
    %116 = arith.truncf %115 : vector<256x32xf32> to vector<256x32xbf16>
    %c3_107 = arith.constant 3 : index
    %c0_108 = arith.constant 0 : index
    %c0_109 = arith.constant 0 : index
    %117 = vector.load %arg3[%c3_107, %c0_108, %c0_109] : memref<9x32x32xbf16, #tpu.memory_space<vmem>>, vector<1x32x32xbf16>
    %118 = vector.shape_cast %117 : vector<1x32x32xbf16> to vector<32x32xbf16>
    %cst_110 = arith.constant dense<0.000000e+00> : vector<256x32xf32>
    %119 = tpu.matmul %116, %118, %cst_110 {dimension_numbers = #tpu.dot_dimension_numbers<[1], [0], [0], [1], [0, 0, 1, 1], [], []>} : vector<256x32xbf16>, vector<32x32xbf16>, vector<256x32xf32> -> vector<256x32xf32>
    %120 = arith.addf %113, %119 : vector<256x32xf32>
    %c1_111 = arith.constant 1 : index
    %c1_112 = arith.constant 1 : index
    %c0_113 = arith.constant 0 : index
    %121 = vector.load %arg10[%c1_111, %c1_112, %c0_113] : memref<18x18x32xf32, #tpu.memory_space<vmem>>, vector<16x16x32xf32>
    %122 = vector.shape_cast %121 : vector<16x16x32xf32> to vector<256x32xf32>
    %123 = arith.truncf %122 : vector<256x32xf32> to vector<256x32xbf16>
    %c4_114 = arith.constant 4 : index
    %c0_115 = arith.constant 0 : index
    %c0_116 = arith.constant 0 : index
    %124 = vector.load %arg3[%c4_114, %c0_115, %c0_116] : memref<9x32x32xbf16, #tpu.memory_space<vmem>>, vector<1x32x32xbf16>
    %125 = vector.shape_cast %124 : vector<1x32x32xbf16> to vector<32x32xbf16>
    %cst_117 = arith.constant dense<0.000000e+00> : vector<256x32xf32>
    %126 = tpu.matmul %123, %125, %cst_117 {dimension_numbers = #tpu.dot_dimension_numbers<[1], [0], [0], [1], [0, 0, 1, 1], [], []>} : vector<256x32xbf16>, vector<32x32xbf16>, vector<256x32xf32> -> vector<256x32xf32>
    %127 = arith.addf %120, %126 : vector<256x32xf32>
    %c1_118 = arith.constant 1 : index
    %c2_119 = arith.constant 2 : index
    %c0_120 = arith.constant 0 : index
    %128 = vector.load %arg10[%c1_118, %c2_119, %c0_120] : memref<18x18x32xf32, #tpu.memory_space<vmem>>, vector<16x16x32xf32>
    %129 = vector.shape_cast %128 : vector<16x16x32xf32> to vector<256x32xf32>
    %130 = arith.truncf %129 : vector<256x32xf32> to vector<256x32xbf16>
    %c5_121 = arith.constant 5 : index
    %c0_122 = arith.constant 0 : index
    %c0_123 = arith.constant 0 : index
    %131 = vector.load %arg3[%c5_121, %c0_122, %c0_123] : memref<9x32x32xbf16, #tpu.memory_space<vmem>>, vector<1x32x32xbf16>
    %132 = vector.shape_cast %131 : vector<1x32x32xbf16> to vector<32x32xbf16>
    %cst_124 = arith.constant dense<0.000000e+00> : vector<256x32xf32>
    %133 = tpu.matmul %130, %132, %cst_124 {dimension_numbers = #tpu.dot_dimension_numbers<[1], [0], [0], [1], [0, 0, 1, 1], [], []>} : vector<256x32xbf16>, vector<32x32xbf16>, vector<256x32xf32> -> vector<256x32xf32>
    %134 = arith.addf %127, %133 : vector<256x32xf32>
    %c2_125 = arith.constant 2 : index
    %c0_126 = arith.constant 0 : index
    %c0_127 = arith.constant 0 : index
    %135 = vector.load %arg10[%c2_125, %c0_126, %c0_127] : memref<18x18x32xf32, #tpu.memory_space<vmem>>, vector<16x16x32xf32>
    %136 = vector.shape_cast %135 : vector<16x16x32xf32> to vector<256x32xf32>
    %137 = arith.truncf %136 : vector<256x32xf32> to vector<256x32xbf16>
    %c6_128 = arith.constant 6 : index
    %c0_129 = arith.constant 0 : index
    %c0_130 = arith.constant 0 : index
    %138 = vector.load %arg3[%c6_128, %c0_129, %c0_130] : memref<9x32x32xbf16, #tpu.memory_space<vmem>>, vector<1x32x32xbf16>
    %139 = vector.shape_cast %138 : vector<1x32x32xbf16> to vector<32x32xbf16>
    %cst_131 = arith.constant dense<0.000000e+00> : vector<256x32xf32>
    %140 = tpu.matmul %137, %139, %cst_131 {dimension_numbers = #tpu.dot_dimension_numbers<[1], [0], [0], [1], [0, 0, 1, 1], [], []>} : vector<256x32xbf16>, vector<32x32xbf16>, vector<256x32xf32> -> vector<256x32xf32>
    %141 = arith.addf %134, %140 : vector<256x32xf32>
    %c2_132 = arith.constant 2 : index
    %c1_133 = arith.constant 1 : index
    %c0_134 = arith.constant 0 : index
    %142 = vector.load %arg10[%c2_132, %c1_133, %c0_134] : memref<18x18x32xf32, #tpu.memory_space<vmem>>, vector<16x16x32xf32>
    %143 = vector.shape_cast %142 : vector<16x16x32xf32> to vector<256x32xf32>
    %144 = arith.truncf %143 : vector<256x32xf32> to vector<256x32xbf16>
    %c7_135 = arith.constant 7 : index
    %c0_136 = arith.constant 0 : index
    %c0_137 = arith.constant 0 : index
    %145 = vector.load %arg3[%c7_135, %c0_136, %c0_137] : memref<9x32x32xbf16, #tpu.memory_space<vmem>>, vector<1x32x32xbf16>
    %146 = vector.shape_cast %145 : vector<1x32x32xbf16> to vector<32x32xbf16>
    %cst_138 = arith.constant dense<0.000000e+00> : vector<256x32xf32>
    %147 = tpu.matmul %144, %146, %cst_138 {dimension_numbers = #tpu.dot_dimension_numbers<[1], [0], [0], [1], [0, 0, 1, 1], [], []>} : vector<256x32xbf16>, vector<32x32xbf16>, vector<256x32xf32> -> vector<256x32xf32>
    %148 = arith.addf %141, %147 : vector<256x32xf32>
    %c2_139 = arith.constant 2 : index
    %c2_140 = arith.constant 2 : index
    %c0_141 = arith.constant 0 : index
    %149 = vector.load %arg10[%c2_139, %c2_140, %c0_141] : memref<18x18x32xf32, #tpu.memory_space<vmem>>, vector<16x16x32xf32>
    %150 = vector.shape_cast %149 : vector<16x16x32xf32> to vector<256x32xf32>
    %151 = arith.truncf %150 : vector<256x32xf32> to vector<256x32xbf16>
    %c8_142 = arith.constant 8 : index
    %c0_143 = arith.constant 0 : index
    %c0_144 = arith.constant 0 : index
    %152 = vector.load %arg3[%c8_142, %c0_143, %c0_144] : memref<9x32x32xbf16, #tpu.memory_space<vmem>>, vector<1x32x32xbf16>
    %153 = vector.shape_cast %152 : vector<1x32x32xbf16> to vector<32x32xbf16>
    %cst_145 = arith.constant dense<0.000000e+00> : vector<256x32xf32>
    %154 = tpu.matmul %151, %153, %cst_145 {dimension_numbers = #tpu.dot_dimension_numbers<[1], [0], [0], [1], [0, 0, 1, 1], [], []>} : vector<256x32xbf16>, vector<32x32xbf16>, vector<256x32xf32> -> vector<256x32xf32>
    %155 = arith.addf %148, %154 : vector<256x32xf32>
    %156 = arith.addf %155, %15 : vector<256x32xf32>
    %157 = vector.shape_cast %156 : vector<256x32xf32> to vector<16x16x32xf32>
    %c0_146 = arith.constant 0 : index
    %c0_147 = arith.constant 0 : index
    %c0_148 = arith.constant 0 : index
    %c0_149 = arith.constant 0 : index
    %158 = vector.load %arg8[%c0_146, %c0_147, %c0_148, %c0_149] : memref<1x16x16x32xf32, #tpu.memory_space<vmem>>, vector<1x16x16x32xf32>
    %159 = vector.shape_cast %158 : vector<1x16x16x32xf32> to vector<16x16x32xf32>
    %160 = vector.shape_cast %157 : vector<16x16x32xf32> to vector<1x16x16x32xf32>
    tpu.vector_store %arg8[%c0_146, %c0_147, %c0_148, %c0_149], %160 {strides = array<i32>} : memref<1x16x16x32xf32, #tpu.memory_space<vmem>>, vector<1x16x16x32xf32>,
    return
  }
  func.func @transform_0(%arg0: i32) -> (i32, i32, i32, i32) {
    %c0_i32 = arith.constant 0 : i32
    %c0_i32_0 = arith.constant 0 : i32
    %c0_i32_1 = arith.constant 0 : i32
    %c0_i32_2 = arith.constant 0 : i32
    return %arg0, %c0_i32, %c0_i32_0, %c0_i32_1 : i32, i32, i32, i32
  }
  func.func @transform_1(%arg0: i32) -> (i32, i32, i32) {
    %c0_i32 = arith.constant 0 : i32
    %c0_i32_0 = arith.constant 0 : i32
    %c0_i32_1 = arith.constant 0 : i32
    %c0_i32_2 = arith.constant 0 : i32
    return %c0_i32, %c0_i32_0, %c0_i32_1 : i32, i32, i32
  }
  func.func @transform_2(%arg0: i32) -> (i32, i32, i32) {
    %c0_i32 = arith.constant 0 : i32
    %c0_i32_0 = arith.constant 0 : i32
    %c0_i32_1 = arith.constant 0 : i32
    %c0_i32_2 = arith.constant 0 : i32
    return %c0_i32, %c0_i32_0, %c0_i32_1 : i32, i32, i32
  }
  func.func @transform_3(%arg0: i32) -> (i32, i32) {
    %c0_i32 = arith.constant 0 : i32
    %c0_i32_0 = arith.constant 0 : i32
    %c0_i32_1 = arith.constant 0 : i32
    return %c0_i32, %c0_i32_0 : i32, i32
  }
  func.func @transform_4(%arg0: i32) -> (i32, i32) {
    %c0_i32 = arith.constant 0 : i32
    %c0_i32_0 = arith.constant 0 : i32
    %c0_i32_1 = arith.constant 0 : i32
    return %c0_i32, %c0_i32_0 : i32, i32
  }
  func.func @transform_5(%arg0: i32) -> (i32, i32) {
    %c0_i32 = arith.constant 0 : i32
    %c0_i32_0 = arith.constant 0 : i32
    %c0_i32_1 = arith.constant 0 : i32
    return %c0_i32, %c0_i32_0 : i32, i32
  }
  func.func @transform_6(%arg0: i32) -> (i32, i32) {
    %c0_i32 = arith.constant 0 : i32
    %c0_i32_0 = arith.constant 0 : i32
    %c0_i32_1 = arith.constant 0 : i32
    return %c0_i32, %c0_i32_0 : i32, i32
  }
  func.func @transform_7(%arg0: i32) -> (i32, i32, i32, i32) {
    %c0_i32 = arith.constant 0 : i32
    %c0_i32_0 = arith.constant 0 : i32
    %c0_i32_1 = arith.constant 0 : i32
    %c0_i32_2 = arith.constant 0 : i32
    return %arg0, %c0_i32, %c0_i32_0, %c0_i32_1 : i32, i32, i32, i32
  }
}

</mosaic_0001>

<llo_original>
// kernel: preact_basic_block.1
$region0: #{preact_basic_block.1}
  #allocation0 [shape = 'u32[]', space=smem, size = 0x4, offset = 0x4, fixed_abs, tag = 'smem constant byte address 0x4 - core index']
  #allocation1 [shape = 'u32[72,128]{1,0:T(1,128)}', space=vmem, size = 0x9000, scoped, tag = 'internal scratch']
  #allocation2 [shape = 'f32[18,18,32]{2,1,0:T(8,128)}', space=vmem, size = 0x36000, scoped, tag = 'scratch operand']
  #allocation3 [shape = 'f32[18,18,32]{2,1,0:T(8,128)}', space=vmem, size = 0x36000, scoped, tag = 'scratch operand']
  %s0 = inlined_call_operand.hbm [shape: f32[2,16,16,32], index: 0, kind: input, shape index: {}]
  %s1 = inlined_call_operand.hbm [shape: bf16[9,32,32], index: 1, kind: input, shape index: {}]
  %s2 = inlined_call_operand.hbm [shape: bf16[9,32,32], index: 2, kind: input, shape index: {}]
  %s3 = inlined_call_operand.vmem [shape: f32[1,32], index: 3, kind: input, shape index: {}]
  %s4 = inlined_call_operand.hbm [shape: f32[1,32], index: 4, kind: input, shape index: {}]
  %s5 = inlined_call_operand.vmem [shape: f32[1,32], index: 5, kind: input, shape index: {}]
  %s6 = inlined_call_operand.hbm [shape: f32[1,32], index: 6, kind: input, shape index: {}]
  %s7 = inlined_call_operand.hbm [shape: f32[2,16,16,32], index: 7, kind: output, shape index: {}]
  %s8 = sld [smem:[#allocation0]]
  $region81: #{preact_basic_block.1} parent=0
    _
  %s10 = ssub.s32 1, %s8
  %s11 = scalar_select 0, %s10, %s8
  $region1: #{preact_basic_block.1} parent=0
    #allocation4 [shape = 'u8[262144]{0}', space=vmem, size = 0x40000, scoped, tag = 'input window, operand 0']
    #allocation5 [shape = 's32[2]{0}', space=sflag, size = 0x8, scoped, tag = 'scoped memory for preact_basic_block.1']
    #allocation6 [shape = 's32[2]{0}', space=sflag, size = 0x8, scoped, tag = 'scoped memory for preact_basic_block.1']
    #allocation7 [shape = 'u8[73728]{0}', space=vmem, size = 0x12000, scoped, tag = 'input window, operand 1, single buffered']
    #allocation8 [shape = 's32[1]{0}', space=sflag, size = 0x4, scoped, tag = 'scoped memory for preact_basic_block.1']
    #allocation9 [shape = 'u8[73728]{0}', space=vmem, size = 0x12000, scoped, tag = 'input window, operand 2, single buffered']
    #allocation10 [shape = 'u8[512]{0}', space=vmem, size = 0x400, scoped, tag = 'input window, operand 4, single buffered']
    #allocation11 [shape = 's32[1]{0}', space=sflag, size = 0x4, scoped, tag = 'scoped memory for preact_basic_block.1']
    #allocation12 [shape = 'u8[512]{0}', space=vmem, size = 0x400, scoped, tag = 'input window, operand 6, single buffered']
    #allocation13 [shape = 'u8[262144]{0}', space=vmem, size = 0x40000, scoped, tag = 'output window, operand 0']
    %12 = vsyncpa [#allocation5], 0
    %s13 = scalar_lea.sflag [#allocation5], 1
    %14 = vsyncpa %s13, 0
    %15 = vsyncpa [#allocation8], 0
    %16 = vsyncpa [#allocation11], 0
    %17 = vsyncpa [#allocation6], 0
    %s18 = scalar_lea.sflag [#allocation6], 1
    %19 = vsyncpa %s18, 0
    loop: start=0, step=1, limit=4
    $region2: #{preact_basic_block.1} parent=1 // loop_pre_header
      _
    $region3: #{preact_basic_block.1} parent=1 // loop_header
      %s21 = sphi 0, %s25
      %p22 = scmp.ge.s32.totalorder %s21, 4
      %s31 = sphi 0, %s33
      %s34 = sphi 0, %s31
      %s35 = sphi 0, %s34
      %s51 = sphi 0, %s35
      %s55 = sphi 0, %s55
      %s57 = sphi 0, %s55
      %s58 = sphi 0, %s57
      %s72 = sphi 0, %s58
      %s76 = sphi 0, %s76
      %s78 = sphi 0, %s76
      %s79 = sphi 0, %s78
      %s93 = sphi 0, %s79
      %s97 = sphi 0, %s97
      %s99 = sphi 0, %s97
      %s100 = sphi 0, %s99
      %s114 = sphi 0, %s100
      %s118 = sphi 0, %s118
      %s120 = sphi 0, %s118
      %s121 = sphi 0, %s120
      %s135 = sphi 0, %s121
      %s139 = sphi 0, %s139
      %s141 = sphi 0, %s139
      %s142 = sphi 0, %s141
      %s156 = sphi 0, %s142
      %s160 = sphi 0, %s160
      %s162 = sphi 0, %s160
      %s163 = sphi 0, %s162
      %s177 = sphi 0, %s163
      %s183 = sphi 0, %s185
      %s186 = sphi 0, %s183
      %s187 = sphi 0, %s186
      %s203 = sphi 0, %s187
    $region4: #{preact_basic_block.1} parent=1 // loop_header_branch
      %24 = sbr.rel (%p22) target = $region8
    $region5: #{preact_basic_block.1} parent=1 // loop_body
      %s26 = ssub.s32 %s21, 1
      %s27 = ssub.s32 %s21, 2
      %s28 = sadd.s32 %s21, 1
      %s29 = ssub.s32 %s21, %s28
      %p30 = scmp.eq.s32.totalorder %s29, 0
      %s32 = sadd.s32 %s31, 1
      %s33 = scalar_select %p30, %s31, %s32
      %p36 = pneg %p30
      %p37 = scmp.eq.s32.totalorder %s21, 1
      %p38 = por %p36, %p37
      %p39 = scmp.ne.s32.totalorder %s31, %s34
      %p40 = scmp.eq.s32.totalorder %s21, 0
      %p41 = por %p39, %p40
      %p42 = scmp.ne.s32.totalorder %s31, %s34
      %p43 = scmp.eq.s32.totalorder %s26, 1
      %p44 = por %p42, %p43
      %p45 = scmp.ne.s32.totalorder %s34, %s35
      %p46 = scmp.eq.s32.totalorder %s26, 0
      %p47 = por %p45, %p46
      %p48 = scmp.ne.s32.totalorder %s34, %s35
      %p49 = scmp.eq.s32.totalorder %s27, 1
      %p50 = por %p48, %p49
      %p52 = scmp.ne.s32.totalorder %s35, %s51
      %p53 = scmp.eq.s32.totalorder %s27, 0
      %p54 = por %p52, %p53
      %s56 = sadd.s32 %s55, 1
      %p59 = scmp.eq.s32.totalorder %s21, 1
      %p60 = scmp.ne.s32.totalorder %s55, %s57
      %p61 = scmp.eq.s32.totalorder %s21, 0
      %p62 = por %p60, %p61
      %p63 = scmp.ne.s32.totalorder %s55, %s57
      %p64 = scmp.eq.s32.totalorder %s26, 1
      %p65 = por %p63, %p64
      %p66 = scmp.ne.s32.totalorder %s57, %s58
      %p67 = scmp.eq.s32.totalorder %s26, 0
      %p68 = por %p66, %p67
      %p69 = scmp.ne.s32.totalorder %s57, %s58
      %p70 = scmp.eq.s32.totalorder %s27, 1
      %p71 = por %p69, %p70
      %p73 = scmp.ne.s32.totalorder %s58, %s72
      %p74 = scmp.eq.s32.totalorder %s27, 0
      %p75 = por %p73, %p74
      %s77 = sadd.s32 %s76, 1
      %p80 = scmp.eq.s32.totalorder %s21, 1
      %p81 = scmp.ne.s32.totalorder %s76, %s78
      %p82 = scmp.eq.s32.totalorder %s21, 0
      %p83 = por %p81, %p82
      %p84 = scmp.ne.s32.totalorder %s76, %s78
      %p85 = scmp.eq.s32.totalorder %s26, 1
      %p86 = por %p84, %p85
      %p87 = scmp.ne.s32.totalorder %s78, %s79
      %p88 = scmp.eq.s32.totalorder %s26, 0
      %p89 = por %p87, %p88
      %p90 = scmp.ne.s32.totalorder %s78, %s79
      %p91 = scmp.eq.s32.totalorder %s27, 1
      %p92 = por %p90, %p91
      %p94 = scmp.ne.s32.totalorder %s79, %s93
      %p95 = scmp.eq.s32.totalorder %s27, 0
      %p96 = por %p94, %p95
      %s98 = sadd.s32 %s97, 1
      %p101 = scmp.eq.s32.totalorder %s21, 1
      %p102 = scmp.ne.s32.totalorder %s97, %s99
      %p103 = scmp.eq.s32.totalorder %s21, 0
      %p104 = por %p102, %p103
      %p105 = scmp.ne.s32.totalorder %s97, %s99
      %p106 = scmp.eq.s32.totalorder %s26, 1
      %p107 = por %p105, %p106
      %p108 = scmp.ne.s32.totalorder %s99, %s100
      %p109 = scmp.eq.s32.totalorder %s26, 0
      %p110 = por %p108, %p109
      %p111 = scmp.ne.s32.totalorder %s99, %s100
      %p112 = scmp.eq.s32.totalorder %s27, 1
      %p113 = por %p111, %p112
      %p115 = scmp.ne.s32.totalorder %s100, %s114
      %p116 = scmp.eq.s32.totalorder %s27, 0
      %p117 = por %p115, %p116
      %s119 = sadd.s32 %s118, 1
      %p122 = scmp.eq.s32.totalorder %s21, 1
      %p123 = scmp.ne.s32.totalorder %s118, %s120
      %p124 = scmp.eq.s32.totalorder %s21, 0
      %p125 = por %p123, %p124
      %p126 = scmp.ne.s32.totalorder %s118, %s120
      %p127 = scmp.eq.s32.totalorder %s26, 1
      %p128 = por %p126, %p127
      %p129 = scmp.ne.s32.totalorder %s120, %s121
      %p130 = scmp.eq.s32.totalorder %s26, 0
      %p131 = por %p129, %p130
      %p132 = scmp.ne.s32.totalorder %s120, %s121
      %p133 = scmp.eq.s32.totalorder %s27, 1
      %p134 = por %p132, %p133
      %p136 = scmp.ne.s32.totalorder %s121, %s135
      %p137 = scmp.eq.s32.totalorder %s27, 0
      %p138 = por %p136, %p137
      %s140 = sadd.s32 %s139, 1
      %p143 = scmp.eq.s32.totalorder %s21, 1
      %p144 = scmp.ne.s32.totalorder %s139, %s141
      %p145 = scmp.eq.s32.totalorder %s21, 0
      %p146 = por %p144, %p145
      %p147 = scmp.ne.s32.totalorder %s139, %s141
      %p148 = scmp.eq.s32.totalorder %s26, 1
      %p149 = por %p147, %p148
      %p150 = scmp.ne.s32.totalorder %s141, %s142
      %p151 = scmp.eq.s32.totalorder %s26, 0
      %p152 = por %p150, %p151
      %p153 = scmp.ne.s32.totalorder %s141, %s142
      %p154 = scmp.eq.s32.totalorder %s27, 1
      %p155 = por %p153, %p154
      %p157 = scmp.ne.s32.totalorder %s142, %s156
      %p158 = scmp.eq.s32.totalorder %s27, 0
      %p159 = por %p157, %p158
      %s161 = sadd.s32 %s160, 1
      %p164 = scmp.eq.s32.totalorder %s21, 1
      %p165 = scmp.ne.s32.totalorder %s160, %s162
      %p166 = scmp.eq.s32.totalorder %s21, 0
      %p167 = por %p165, %p166
      %p168 = scmp.ne.s32.totalorder %s160, %s162
      %p169 = scmp.eq.s32.totalorder %s26, 1
      %p170 = por %p168, %p169
      %p171 = scmp.ne.s32.totalorder %s162, %s163
      %p172 = scmp.eq.s32.totalorder %s26, 0
      %p173 = por %p171, %p172
      %p174 = scmp.ne.s32.totalorder %s162, %s163
      %p175 = scmp.eq.s32.totalorder %s27, 1
      %p176 = por %p174, %p175
      %p178 = scmp.ne.s32.totalorder %s163, %s177
      %p179 = scmp.eq.s32.totalorder %s27, 0
      %p180 = por %p178, %p179
      %s181 = ssub.s32 %s21, %s28
      %p182 = scmp.eq.s32.totalorder %s181, 0
      %s184 = sadd.s32 %s183, 1
      %s185 = scalar_select %p182, %s183, %s184
      %p188 = pneg %p182
      %p189 = scmp.eq.s32.totalorder %s21, 1
      %p190 = por %p188, %p189
      %p191 = scmp.ne.s32.totalorder %s183, %s186
      %p192 = scmp.eq.s32.totalorder %s21, 0
      %p193 = por %p191, %p192
      %p194 = scmp.ne.s32.totalorder %s183, %s186
      %p195 = scmp.eq.s32.totalorder %s26, 1
      %p196 = por %p194, %p195
      %p197 = scmp.ne.s32.totalorder %s186, %s187
      %p198 = scmp.eq.s32.totalorder %s26, 0
      %p199 = por %p197, %p198
      %p200 = scmp.ne.s32.totalorder %s186, %s187
      %p201 = scmp.eq.s32.totalorder %s27, 1
      %p202 = por %p200, %p201
      %p204 = scmp.ne.s32.totalorder %s187, %s203
      %p205 = scmp.eq.s32.totalorder %s27, 0
      %p206 = por %p204, %p205
      %p207 = scmp.le.s32.totalorder 1, %s21
      %p208 = scmp.lt.s32.totalorder %s21, 3
      %p209 = pnand %p207, %p208
      %p210 = pneg %p209
      // Predicated region
      $region9: #{preact_basic_block.1} parent=5 // pred_check
        _
      $region10: #{preact_basic_block.1} parent=5 // pred_check_branch
        %212 = sbr.rel (%p209) target = $region12
      $region11: #{preact_basic_block.1} parent=5 // pred_region
        %s213 = ssub.s32 %s21, 1
        // Predicated region
        $region13: #{preact_basic_block.1} parent=11 // pred_check
          %p214 = pneg %p68
        $region14: #{preact_basic_block.1} parent=11 // pred_check_branch
          %216 = sbr.rel (%p214) target = $region16
        $region15: #{preact_basic_block.1} parent=11 // pred_region
          %218 = vsyncadd [#allocation8], 0
          %s219 = sshll.u32 %s1, 4
          %s220 = int_to_ptr.hbm [resolvable:$true] %s219
          %s221 = sshll.u32 [#allocation7], 4
          %s222 = int_to_ptr.vmem [resolvable:$true] %s221
          %227 = dma.hbm_to_vmem [thread:$0]  %s220, 2304, %s222, [#allocation8], 64, 64, 4
        $region16: #{preact_basic_block.1} parent=11 // pred_fallthru
          _
        // Predicated region
        $region17: #{preact_basic_block.1} parent=11 // pred_check
          %p228 = pneg %p89
        $region18: #{preact_basic_block.1} parent=11 // pred_check_branch
          %230 = sbr.rel (%p228) target = $region20
        $region19: #{preact_basic_block.1} parent=11 // pred_region
          %232 = vsyncadd [#allocation8], 0
          %s233 = sshll.u32 %s2, 4
          %s234 = int_to_ptr.hbm [resolvable:$true] %s233
          %s235 = sshll.u32 [#allocation9], 4
          %s236 = int_to_ptr.vmem [resolvable:$true] %s235
          %241 = dma.hbm_to_vmem [thread:$0]  %s234, 2304, %s236, [#allocation8], 64, 64, 4
        $region20: #{preact_basic_block.1} parent=11 // pred_fallthru
          _
        // Predicated region
        $region21: #{preact_basic_block.1} parent=11 // pred_check
          %p242 = pneg %p110
        $region22: #{preact_basic_block.1} parent=11 // pred_check_branch
          %244 = sbr.rel (%p242) target = $region24
        $region23: #{preact_basic_block.1} parent=11 // pred_region
          _
        $region24: #{preact_basic_block.1} parent=11 // pred_fallthru
          _
        // Predicated region
        $region25: #{preact_basic_block.1} parent=11 // pred_check
          %p245 = pneg %p131
        $region26: #{preact_basic_block.1} parent=11 // pred_check_branch
          %247 = sbr.rel (%p245) target = $region28
        $region27: #{preact_basic_block.1} parent=11 // pred_region
          %249 = vsyncadd [#allocation11], 0
          %s251 = sshll.u32 %s4, 4
          %s252 = int_to_ptr.hbm [resolvable:$true] %s251
          %s253 = sshll.u32 [#allocation10], 4
          %s254 = int_to_ptr.vmem [resolvable:$true] %s253
          %256 = dma.hbm_to_vmem [thread:$0]  %s252, 16, %s254, [#allocation11]
        $region28: #{preact_basic_block.1} parent=11 // pred_fallthru
          _
        // Predicated region
        $region29: #{preact_basic_block.1} parent=11 // pred_check
          %p257 = pneg %p152
        $region30: #{preact_basic_block.1} parent=11 // pred_check_branch
          %259 = sbr.rel (%p257) target = $region32
        $region31: #{preact_basic_block.1} parent=11 // pred_region
          _
        $region32: #{preact_basic_block.1} parent=11 // pred_fallthru
          _
        // Predicated region
        $region33: #{preact_basic_block.1} parent=11 // pred_check
          %p260 = pneg %p173
        $region34: #{preact_basic_block.1} parent=11 // pred_check_branch
          %262 = sbr.rel (%p260) target = $region36
        $region35: #{preact_basic_block.1} parent=11 // pred_region
          %264 = vsyncadd [#allocation11], 0
          %s266 = sshll.u32 %s6, 4
          %s267 = int_to_ptr.hbm [resolvable:$true] %s266
          %s268 = sshll.u32 [#allocation12], 4
          %s269 = int_to_ptr.vmem [resolvable:$true] %s268
          %271 = dma.hbm_to_vmem [thread:$0]  %s267, 16, %s269, [#allocation11]
        $region36: #{preact_basic_block.1} parent=11 // pred_fallthru
          _
      $region12: #{preact_basic_block.1} parent=5 // pred_fallthru
        _
      %p272 = scmp.lt.s32.totalorder %s21, 2
      // Predicated region
      $region37: #{preact_basic_block.1} parent=5 // pred_check
        %p273 = pneg %p272
      $region38: #{preact_basic_block.1} parent=5 // pred_check_branch
        %275 = sbr.rel (%p273) target = $region40
      $region39: #{preact_basic_block.1} parent=5 // pred_region
        // Predicated region
        $region41: #{preact_basic_block.1} parent=39 // pred_check
          %p276 = pneg %p41
        $region42: #{preact_basic_block.1} parent=39 // pred_check_branch
          %278 = sbr.rel (%p276) target = $region44
        $region43: #{preact_basic_block.1} parent=39 // pred_region
          %s279 = sand.u32 %s31, 1
          %s280 = scalar_lea.sflag [#allocation5], %s279
          %s281 = sand.u32 %s31, 1
          %s282 = smul.addr %s281, 256
          %s283 = scalar_lea.vmem [#allocation4], %s282
          %285 = vsyncadd %s280, 0
          %s286 = smul.addr %s21, 32
          %s287 = smul.addr %s286, 8
          %s288 = scalar_lea.hbm %s0, %s287
          %s289 = sshll.u32 %s288, 4
          %s290 = int_to_ptr.hbm [resolvable:$true] %s289
          %s291 = sshll.u32 %s283, 4
          %s292 = int_to_ptr.vmem [resolvable:$true] %s291
          %297 = dma.hbm_to_vmem [thread:$0]  %s290, 4096, %s292, %s280, 128, 128, 8
        $region44: #{preact_basic_block.1} parent=39 // pred_fallthru
          _
      $region40: #{preact_basic_block.1} parent=5 // pred_fallthru
        _
      %p298 = scmp.le.s32.totalorder 1, %s21
      %p299 = scmp.lt.s32.totalorder %s21, 3
      %p300 = pnand %p298, %p299
      %p301 = pneg %p300
      // Predicated region
      $region45: #{preact_basic_block.1} parent=5 // pred_check
        _
      $region46: #{preact_basic_block.1} parent=5 // pred_check_branch
        %303 = sbr.rel (%p300) target = $region48
      $region47: #{preact_basic_block.1} parent=5 // pred_region
        %s304 = ssub.s32 %s21, 1
        %s305 = sand.u32 %s34, 1
        %s306 = scalar_lea.sflag [#allocation5], %s305
        %s307 = sand.u32 %s34, 1
        %s308 = smul.addr %s307, 256
        %s309 = scalar_lea.vmem [#allocation4], %s308
        // Predicated region
        $region49: #{preact_basic_block.1} parent=47 // pred_check
          %p310 = pneg %p47
        $region50: #{preact_basic_block.1} parent=47 // pred_check_branch
          %312 = sbr.rel (%p310) target = $region52
        $region51: #{preact_basic_block.1} parent=47 // pred_region
          %314 = dma.done %s306, 4096
        $region52: #{preact_basic_block.1} parent=47 // pred_fallthru
          _
        // Predicated region
        $region53: #{preact_basic_block.1} parent=47 // pred_check
          %p315 = pneg %p68
        $region54: #{preact_basic_block.1} parent=47 // pred_check_branch
          %317 = sbr.rel (%p315) target = $region56
        $region55: #{preact_basic_block.1} parent=47 // pred_region
          %319 = dma.done [#allocation8], 2304
        $region56: #{preact_basic_block.1} parent=47 // pred_fallthru
          _
        // Predicated region
        $region57: #{preact_basic_block.1} parent=47 // pred_check
          %p320 = pneg %p89
        $region58: #{preact_basic_block.1} parent=47 // pred_check_branch
          %322 = sbr.rel (%p320) target = $region60
        $region59: #{preact_basic_block.1} parent=47 // pred_region
          %324 = dma.done [#allocation8], 2304
        $region60: #{preact_basic_block.1} parent=47 // pred_fallthru
          _
        // Predicated region
        $region61: #{preact_basic_block.1} parent=47 // pred_check
          %p325 = pneg %p131
        $region62: #{preact_basic_block.1} parent=47 // pred_check_branch
          %327 = sbr.rel (%p325) target = $region64
        $region63: #{preact_basic_block.1} parent=47 // pred_region
          %329 = dma.done [#allocation11], 16
        $region64: #{preact_basic_block.1} parent=47 // pred_fallthru
          _
        // Predicated region
        $region65: #{preact_basic_block.1} parent=47 // pred_check
          %p330 = pneg %p173
        $region66: #{preact_basic_block.1} parent=47 // pred_check_branch
          %332 = sbr.rel (%p330) target = $region68
        $region67: #{preact_basic_block.1} parent=47 // pred_region
          %334 = dma.done [#allocation11], 16
        $region68: #{preact_basic_block.1} parent=47 // pred_fallthru
          _
        %s335 = sand.u32 %s34, 1
        %s336 = scalar_lea.sflag [#allocation5], %s335
        %s337 = sand.u32 %s34, 1
        %s338 = smul.addr %s337, 256
        %s339 = scalar_lea.vmem [#allocation4], %s338
        %p340 = pneg %p47
        %p341 = pneg %p44
        %p342 = pneg %p68
        %p343 = pneg %p65
        %p344 = pneg %p89
        %p345 = pneg %p86
        %p346 = pneg %p110
        %p347 = pneg %p107
        %p348 = pneg %p131
        %p349 = pneg %p128
        %p350 = pneg %p152
        %p351 = pneg %p149
        %p352 = pneg %p173
        %p353 = pneg %p170
        %p354 = pneg %p199
        %p355 = pneg %p196
        %s356 = sand.u32 %s186, 1
        %s357 = scalar_lea.sflag [#allocation6], %s356
        %s358 = sand.u32 %s186, 1
        %s359 = smul.addr %s358, 256
        %s360 = scalar_lea.vmem [#allocation13], %s359
        %v362 = vld [vmem:[%s309] sm:$0xff]
        %v363 = vld [vmem:[%s309 + $0x8] sm:$0xff]
        %v364 = vld [vmem:[%s309 + $0x10] sm:$0xff]
        %v365 = vld [vmem:[%s309 + $0x18] sm:$0xff]
        %v366 = vld [vmem:[%s309 + $0x20] sm:$0xff]
        %v367 = vld [vmem:[%s309 + $0x28] sm:$0xff]
        %v368 = vld [vmem:[%s309 + $0x30] sm:$0xff]
        %v369 = vld [vmem:[%s309 + $0x38] sm:$0xff]
        %v370 = vld [vmem:[%s309 + $0x40] sm:$0xff]
        %v371 = vld [vmem:[%s309 + $0x48] sm:$0xff]
        %v372 = vld [vmem:[%s309 + $0x50] sm:$0xff]
        %v373 = vld [vmem:[%s309 + $0x58] sm:$0xff]
        %v374 = vld [vmem:[%s309 + $0x60] sm:$0xff]
        %v375 = vld [vmem:[%s309 + $0x68] sm:$0xff]
        %v376 = vld [vmem:[%s309 + $0x70] sm:$0xff]
        %v377 = vld [vmem:[%s309 + $0x78] sm:$0xff]
        %v378 = vld [vmem:[%s309 + $0x80] sm:$0xff]
        %v379 = vld [vmem:[%s309 + $0x88] sm:$0xff]
        %v380 = vld [vmem:[%s309 + $0x90] sm:$0xff]
        %v381 = vld [vmem:[%s309 + $0x98] sm:$0xff]
        %v382 = vld [vmem:[%s309 + $0xa0] sm:$0xff]
        %v383 = vld [vmem:[%s309 + $0xa8] sm:$0xff]
        %v384 = vld [vmem:[%s309 + $0xb0] sm:$0xff]
        %v385 = vld [vmem:[%s309 + $0xb8] sm:$0xff]
        %v386 = vld [vmem:[%s309 + $0xc0] sm:$0xff]
        %v387 = vld [vmem:[%s309 + $0xc8] sm:$0xff]
        %v388 = vld [vmem:[%s309 + $0xd0] sm:$0xff]
        %v389 = vld [vmem:[%s309 + $0xd8] sm:$0xff]
        %v390 = vld [vmem:[%s309 + $0xe0] sm:$0xff]
        %v391 = vld [vmem:[%s309 + $0xe8] sm:$0xff]
        %v392 = vld [vmem:[%s309 + $0xf0] sm:$0xff]
        %v393 = vld [vmem:[%s309 + $0xf8] sm:$0xff]
        %v394 = vld [vmem:[%s3] sm:$0x1]
        %v395 = vld [vmem:[#allocation10] sm:$0x1]
        %v397 = vperm.slane %v394, 0
        %v399 = vmul.f32 %v362, %v397
        %v400 = vmul.f32 %v363, %v397
        %v401 = vmul.f32 %v364, %v397
        %v402 = vmul.f32 %v365, %v397
        %v403 = vmul.f32 %v366, %v397
        %v404 = vmul.f32 %v367, %v397
        %v405 = vmul.f32 %v368, %v397
        %v406 = vmul.f32 %v369, %v397
        %v407 = vmul.f32 %v370, %v397
        %v408 = vmul.f32 %v371, %v397
        %v409 = vmul.f32 %v372, %v397
        %v410 = vmul.f32 %v373, %v397
        %v411 = vmul.f32 %v374, %v397
        %v412 = vmul.f32 %v375, %v397
        %v413 = vmul.f32 %v376, %v397
        %v414 = vmul.f32 %v377, %v397
        %v415 = vmul.f32 %v378, %v397
        %v416 = vmul.f32 %v379, %v397
        %v417 = vmul.f32 %v380, %v397
        %v418 = vmul.f32 %v381, %v397
        %v419 = vmul.f32 %v382, %v397
        %v420 = vmul.f32 %v383, %v397
        %v421 = vmul.f32 %v384, %v397
        %v422 = vmul.f32 %v385, %v397
        %v423 = vmul.f32 %v386, %v397
        %v424 = vmul.f32 %v387, %v397
        %v425 = vmul.f32 %v388, %v397
        %v426 = vmul.f32 %v389, %v397
        %v427 = vmul.f32 %v390, %v397
        %v428 = vmul.f32 %v391, %v397
        %v429 = vmul.f32 %v392, %v397
        %v430 = vmul.f32 %v393, %v397
        %v432 = vperm.slane %v395, 0
        %v434 = vadd.f32 %v399, %v432
        %v435 = vadd.f32 %v400, %v432
        %v436 = vadd.f32 %v401, %v432
        %v437 = vadd.f32 %v402, %v432
        %v438 = vadd.f32 %v403, %v432
        %v439 = vadd.f32 %v404, %v432
        %v440 = vadd.f32 %v405, %v432
        %v441 = vadd.f32 %v406, %v432
        %v442 = vadd.f32 %v407, %v432
        %v443 = vadd.f32 %v408, %v432
        %v444 = vadd.f32 %v409, %v432
        %v445 = vadd.f32 %v410, %v432
        %v446 = vadd.f32 %v411, %v432
        %v447 = vadd.f32 %v412, %v432
        %v448 = vadd.f32 %v413, %v432
        %v449 = vadd.f32 %v414, %v432
        %v450 = vadd.f32 %v415, %v432
        %v451 = vadd.f32 %v416, %v432
        %v452 = vadd.f32 %v417, %v432
        %v453 = vadd.f32 %v418, %v432
        %v454 = vadd.f32 %v419, %v432
        %v455 = vadd.f32 %v420, %v432
        %v456 = vadd.f32 %v421, %v432
        %v457 = vadd.f32 %v422, %v432
        %v458 = vadd.f32 %v423, %v432
        %v459 = vadd.f32 %v424, %v432
        %v460 = vadd.f32 %v425, %v432
        %v461 = vadd.f32 %v426, %v432
        %v462 = vadd.f32 %v427, %v432
        %v463 = vadd.f32 %v428, %v432
        %v464 = vadd.f32 %v429, %v432
        %v465 = vadd.f32 %v430, %v432
        %v466 = vmax.f32 %v434, 0.0
        %v467 = vmax.f32 %v435, 0.0
        %v468 = vmax.f32 %v436, 0.0
        %v469 = vmax.f32 %v437, 0.0
        %v470 = vmax.f32 %v438, 0.0
        %v471 = vmax.f32 %v439, 0.0
        %v472 = vmax.f32 %v440, 0.0
        %v473 = vmax.f32 %v441, 0.0
        %v474 = vmax.f32 %v442, 0.0
        %v475 = vmax.f32 %v443, 0.0
        %v476 = vmax.f32 %v444, 0.0
        %v477 = vmax.f32 %v445, 0.0
        %v478 = vmax.f32 %v446, 0.0
        %v479 = vmax.f32 %v447, 0.0
        %v480 = vmax.f32 %v448, 0.0
        %v481 = vmax.f32 %v449, 0.0
        %v482 = vmax.f32 %v450, 0.0
        %v483 = vmax.f32 %v451, 0.0
        %v484 = vmax.f32 %v452, 0.0
        %v485 = vmax.f32 %v453, 0.0
        %v486 = vmax.f32 %v454, 0.0
        %v487 = vmax.f32 %v455, 0.0
        %v488 = vmax.f32 %v456, 0.0
        %v489 = vmax.f32 %v457, 0.0
        %v490 = vmax.f32 %v458, 0.0
        %v491 = vmax.f32 %v459, 0.0
        %v492 = vmax.f32 %v460, 0.0
        %v493 = vmax.f32 %v461, 0.0
        %v494 = vmax.f32 %v462, 0.0
        %v495 = vmax.f32 %v463, 0.0
        %v496 = vmax.f32 %v464, 0.0
        %v497 = vmax.f32 %v465, 0.0
        %vm498 = vcmask 261120
        %499 = vst.msk [vmem:[#allocation2] sm:$0xff] %vm498, 0.0
        %500 = vst.msk [vmem:[#allocation2 + $0x8] sm:$0xff] %vm498, 0.0
        %vm501 = vcmask 254976
        %502 = vst.msk [vmem:[#allocation2 + $0x10] sm:$0x3] %vm501, 0.0
        %503 = vst.msk [vmem:[#allocation2 + $0x18] sm:$0xff] %vm498, 0.0
        %504 = vst.msk [vmem:[#allocation2 + $0x20] sm:$0xff] %vm498, 0.0
        %505 = vst.msk [vmem:[#allocation2 + $0x28] sm:$0x3] %vm501, 0.0
        %506 = vst.msk [vmem:[#allocation2 + $0x30] sm:$0xff] %vm498, 0.0
        %507 = vst.msk [vmem:[#allocation2 + $0x38] sm:$0xff] %vm498, 0.0
        %508 = vst.msk [vmem:[#allocation2 + $0x40] sm:$0x3] %vm501, 0.0
        %509 = vst.msk [vmem:[#allocation2 + $0x48] sm:$0xff] %vm498, 0.0
        %510 = vst.msk [vmem:[#allocation2 + $0x50] sm:$0xff] %vm498, 0.0
        %511 = vst.msk [vmem:[#allocation2 + $0x58] sm:$0x3] %vm501, 0.0
        %512 = vst.msk [vmem:[#allocation2 + $0x60] sm:$0xff] %vm498, 0.0
        %513 = vst.msk [vmem:[#allocation2 + $0x68] sm:$0xff] %vm498, 0.0
        %514 = vst.msk [vmem:[#allocation2 + $0x70] sm:$0x3] %vm501, 0.0
        %515 = vst.msk [vmem:[#allocation2 + $0x78] sm:$0xff] %vm498, 0.0
        %516 = vst.msk [vmem:[#allocation2 + $0x80] sm:$0xff] %vm498, 0.0
        %517 = vst.msk [vmem:[#allocation2 + $0x88] sm:$0x3] %vm501, 0.0
        %518 = vst.msk [vmem:[#allocation2 + $0x90] sm:$0xff] %vm498, 0.0
        %519 = vst.msk [vmem:[#allocation2 + $0x98] sm:$0xff] %vm498, 0.0
        %520 = vst.msk [vmem:[#allocation2 + $0xa0] sm:$0x3] %vm501, 0.0
        %521 = vst.msk [vmem:[#allocation2 + $0xa8] sm:$0xff] %vm498, 0.0
        %522 = vst.msk [vmem:[#allocation2 + $0xb0] sm:$0xff] %vm498, 0.0
        %523 = vst.msk [vmem:[#allocation2 + $0xb8] sm:$0x3] %vm501, 0.0
        %524 = vst.msk [vmem:[#allocation2 + $0xc0] sm:$0xff] %vm498, 0.0
        %525 = vst.msk [vmem:[#allocation2 + $0xc8] sm:$0xff] %vm498, 0.0
        %526 = vst.msk [vmem:[#allocation2 + $0xd0] sm:$0x3] %vm501, 0.0
        %527 = vst.msk [vmem:[#allocation2 + $0xd8] sm:$0xff] %vm498, 0.0
        %528 = vst.msk [vmem:[#allocation2 + $0xe0] sm:$0xff] %vm498, 0.0
        %529 = vst.msk [vmem:[#allocation2 + $0xe8] sm:$0x3] %vm501, 0.0
        %530 = vst.msk [vmem:[#allocation2 + $0xf0] sm:$0xff] %vm498, 0.0
        %531 = vst.msk [vmem:[#allocation2 + $0xf8] sm:$0xff] %vm498, 0.0
        %532 = vst.msk [vmem:[#allocation2 + $0x100] sm:$0x3] %vm501, 0.0
        %533 = vst.msk [vmem:[#allocation2 + $0x108] sm:$0xff] %vm498, 0.0
        %534 = vst.msk [vmem:[#allocation2 + $0x110] sm:$0xff] %vm498, 0.0
        %535 = vst.msk [vmem:[#allocation2 + $0x118] sm:$0x3] %vm501, 0.0
        %536 = vst.msk [vmem:[#allocation2 + $0x120] sm:$0xff] %vm498, 0.0
        %537 = vst.msk [vmem:[#allocation2 + $0x128] sm:$0xff] %vm498, 0.0
        %538 = vst.msk [vmem:[#allocation2 + $0x130] sm:$0x3] %vm501, 0.0
        %539 = vst.msk [vmem:[#allocation2 + $0x138] sm:$0xff] %vm498, 0.0
        %540 = vst.msk [vmem:[#allocation2 + $0x140] sm:$0xff] %vm498, 0.0
        %541 = vst.msk [vmem:[#allocation2 + $0x148] sm:$0x3] %vm501, 0.0
        %542 = vst.msk [vmem:[#allocation2 + $0x150] sm:$0xff] %vm498, 0.0
        %543 = vst.msk [vmem:[#allocation2 + $0x158] sm:$0xff] %vm498, 0.0
        %544 = vst.msk [vmem:[#allocation2 + $0x160] sm:$0x3] %vm501, 0.0
        %545 = vst.msk [vmem:[#allocation2 + $0x168] sm:$0xff] %vm498, 0.0
        %546 = vst.msk [vmem:[#allocation2 + $0x170] sm:$0xff] %vm498, 0.0
        %547 = vst.msk [vmem:[#allocation2 + $0x178] sm:$0x3] %vm501, 0.0
        %548 = vst.msk [vmem:[#allocation2 + $0x180] sm:$0xff] %vm498, 0.0
        %549 = vst.msk [vmem:[#allocation2 + $0x188] sm:$0xff] %vm498, 0.0
        %550 = vst.msk [vmem:[#allocation2 + $0x190] sm:$0x3] %vm501, 0.0
        %551 = vst.msk [vmem:[#allocation2 + $0x198] sm:$0xff] %vm498, 0.0
        %552 = vst.msk [vmem:[#allocation2 + $0x1a0] sm:$0xff] %vm498, 0.0
        %553 = vst.msk [vmem:[#allocation2 + $0x1a8] sm:$0x3] %vm501, 0.0
        %s554 = scalar_lea.vmem [#allocation2], 24
        %555 = vst.msk [vmem:[%s554 + $0x1] sm:$0xff] %vm498, %v466
        %556 = vst.msk [vmem:[%s554 + $0x9] sm:$0xff] %vm498, %v467
        %557 = vst.msk [vmem:[%s554 + $0x19] sm:$0xff] %vm498, %v468
        %558 = vst.msk [vmem:[%s554 + $0x21] sm:$0xff] %vm498, %v469
        %559 = vst.msk [vmem:[%s554 + $0x31] sm:$0xff] %vm498, %v470
        %560 = vst.msk [vmem:[%s554 + $0x39] sm:$0xff] %vm498, %v471
        %561 = vst.msk [vmem:[%s554 + $0x49] sm:$0xff] %vm498, %v472
        %562 = vst.msk [vmem:[%s554 + $0x51] sm:$0xff] %vm498, %v473
        %563 = vst.msk [vmem:[%s554 + $0x61] sm:$0xff] %vm498, %v474
        %564 = vst.msk [vmem:[%s554 + $0x69] sm:$0xff] %vm498, %v475
        %565 = vst.msk [vmem:[%s554 + $0x79] sm:$0xff] %vm498, %v476
        %566 = vst.msk [vmem:[%s554 + $0x81] sm:$0xff] %vm498, %v477
        %567 = vst.msk [vmem:[%s554 + $0x91] sm:$0xff] %vm498, %v478
        %568 = vst.msk [vmem:[%s554 + $0x99] sm:$0xff] %vm498, %v479
        %569 = vst.msk [vmem:[%s554 + $0xa9] sm:$0xff] %vm498, %v480
        %570 = vst.msk [vmem:[%s554 + $0xb1] sm:$0xff] %vm498, %v481
        %571 = vst.msk [vmem:[%s554 + $0xc1] sm:$0xff] %vm498, %v482
        %572 = vst.msk [vmem:[%s554 + $0xc9] sm:$0xff] %vm498, %v483
        %573 = vst.msk [vmem:[%s554 + $0xd9] sm:$0xff] %vm498, %v484
        %574 = vst.msk [vmem:[%s554 + $0xe1] sm:$0xff] %vm498, %v485
        %575 = vst.msk [vmem:[%s554 + $0xf1] sm:$0xff] %vm498, %v486
        %576 = vst.msk [vmem:[%s554 + $0xf9] sm:$0xff] %vm498, %v487
        %577 = vst.msk [vmem:[%s554 + $0x109] sm:$0xff] %vm498, %v488
        %578 = vst.msk [vmem:[%s554 + $0x111] sm:$0xff] %vm498, %v489
        %579 = vst.msk [vmem:[%s554 + $0x121] sm:$0xff] %vm498, %v490
        %580 = vst.msk [vmem:[%s554 + $0x129] sm:$0xff] %vm498, %v491
        %581 = vst.msk [vmem:[%s554 + $0x139] sm:$0xff] %vm498, %v492
        %582 = vst.msk [vmem:[%s554 + $0x141] sm:$0xff] %vm498, %v493
        %583 = vst.msk [vmem:[%s554 + $0x151] sm:$0xff] %vm498, %v494
        %584 = vst.msk [vmem:[%s554 + $0x159] sm:$0xff] %vm498, %v495
        %585 = vst.msk [vmem:[%s554 + $0x169] sm:$0xff] %vm498, %v496
        %586 = vst.msk [vmem:[%s554 + $0x171] sm:$0xff] %vm498, %v497
        %v587 = vld [vmem:[#allocation2] sm:$0xff]
        %v588 = vld [vmem:[#allocation2 + $0x8] sm:$0xff]
        %v589 = vld [vmem:[#allocation2 + $0x18] sm:$0xff]
        %v590 = vld [vmem:[#allocation2 + $0x20] sm:$0xff]
        %v591 = vld [vmem:[#allocation2 + $0x30] sm:$0xff]
        %v592 = vld [vmem:[#allocation2 + $0x38] sm:$0xff]
        %v593 = vld [vmem:[#allocation2 + $0x48] sm:$0xff]
        %v594 = vld [vmem:[#allocation2 + $0x50] sm:$0xff]
        %v595 = vld [vmem:[#allocation2 + $0x60] sm:$0xff]
        %v596 = vld [vmem:[#allocation2 + $0x68] sm:$0xff]
        %v597 = vld [vmem:[#allocation2 + $0x78] sm:$0xff]
        %v598 = vld [vmem:[#allocation2 + $0x80] sm:$0xff]
        %v599 = vld [vmem:[#allocation2 + $0x90] sm:$0xff]
        %v600 = vld [vmem:[#allocation2 + $0x98] sm:$0xff]
        %v601 = vld [vmem:[#allocation2 + $0xa8] sm:$0xff]
        %v602 = vld [vmem:[#allocation2 + $0xb0] sm:$0xff]
        %v603 = vld [vmem:[#allocation2 + $0xc0] sm:$0xff]
        %v604 = vld [vmem:[#allocation2 + $0xc8] sm:$0xff]
        %v605 = vld [vmem:[#allocation2 + $0xd8] sm:$0xff]
        %v606 = vld [vmem:[#allocation2 + $0xe0] sm:$0xff]
        %v607 = vld [vmem:[#allocation2 + $0xf0] sm:$0xff]
        %v608 = vld [vmem:[#allocation2 + $0xf8] sm:$0xff]
        %v609 = vld [vmem:[#allocation2 + $0x108] sm:$0xff]
        %v610 = vld [vmem:[#allocation2 + $0x110] sm:$0xff]
        %v611 = vld [vmem:[#allocation2 + $0x120] sm:$0xff]
        %v612 = vld [vmem:[#allocation2 + $0x128] sm:$0xff]
        %v613 = vld [vmem:[#allocation2 + $0x138] sm:$0xff]
        %v614 = vld [vmem:[#allocation2 + $0x140] sm:$0xff]
        %v615 = vld [vmem:[#allocation2 + $0x150] sm:$0xff]
        %v616 = vld [vmem:[#allocation2 + $0x158] sm:$0xff]
        %v617 = vld [vmem:[#allocation2 + $0x168] sm:$0xff]
        %v618 = vld [vmem:[#allocation2 + $0x170] sm:$0xff]
        %v619 = vpack.c.bf16 %v588, %v587
        %v620 = vpack.c.bf16 %v590, %v589
        %v621 = vpack.c.bf16 %v592, %v591
        %v622 = vpack.c.bf16 %v594, %v593
        %v623 = vpack.c.bf16 %v596, %v595
        %v624 = vpack.c.bf16 %v598, %v597
        %v625 = vpack.c.bf16 %v600, %v599
        %v626 = vpack.c.bf16 %v602, %v601
        %v627 = vpack.c.bf16 %v604, %v603
        %v628 = vpack.c.bf16 %v606, %v605
        %v629 = vpack.c.bf16 %v608, %v607
        %v630 = vpack.c.bf16 %v610, %v609
        %v631 = vpack.c.bf16 %v612, %v611
        %v632 = vpack.c.bf16 %v614, %v613
        %v633 = vpack.c.bf16 %v616, %v615
        %v634 = vpack.c.bf16 %v618, %v617
        %v635 = vld [vmem:[#allocation7] sm:$0xf]
        %v636 = vld [vmem:[#allocation7 + $0x4] sm:$0xf]
        %v637 = vld [vmem:[#allocation7 + $0x8] sm:$0xf]
        %v638 = vld [vmem:[#allocation7 + $0xc] sm:$0xf]
        %v639 = vld [vmem:[#allocation2 + $0x1] sm:$0xff]
        %v640 = vld [vmem:[#allocation2 + $0x9] sm:$0xff]
        %v641 = vld [vmem:[#allocation2 + $0x19] sm:$0xff]
        %v642 = vld [vmem:[#allocation2 + $0x21] sm:$0xff]
        %v643 = vld [vmem:[#allocation2 + $0x31] sm:$0xff]
        %v644 = vld [vmem:[#allocation2 + $0x39] sm:$0xff]
        %v645 = vld [vmem:[#allocation2 + $0x49] sm:$0xff]
        %v646 = vld [vmem:[#allocation2 + $0x51] sm:$0xff]
        %v647 = vld [vmem:[#allocation2 + $0x61] sm:$0xff]
        %v648 = vld [vmem:[#allocation2 + $0x69] sm:$0xff]
        %v649 = vld [vmem:[#allocation2 + $0x79] sm:$0xff]
        %v650 = vld [vmem:[#allocation2 + $0x81] sm:$0xff]
        %v651 = vld [vmem:[#allocation2 + $0x91] sm:$0xff]
        %v652 = vld [vmem:[#allocation2 + $0x99] sm:$0xff]
        %v653 = vld [vmem:[#allocation2 + $0xa9] sm:$0xff]
        %v654 = vld [vmem:[#allocation2 + $0xb1] sm:$0xff]
        %v655 = vld [vmem:[#allocation2 + $0xc1] sm:$0xff]
        %v656 = vld [vmem:[#allocation2 + $0xc9] sm:$0xff]
        %v657 = vld [vmem:[#allocation2 + $0xd9] sm:$0xff]
        %v658 = vld [vmem:[#allocation2 + $0xe1] sm:$0xff]
        %v659 = vld [vmem:[#allocation2 + $0xf1] sm:$0xff]
        %v660 = vld [vmem:[#allocation2 + $0xf9] sm:$0xff]
        %v661 = vld [vmem:[#allocation2 + $0x109] sm:$0xff]
        %v662 = vld [vmem:[#allocation2 + $0x111] sm:$0xff]
        %v663 = vld [vmem:[#allocation2 + $0x121] sm:$0xff]
        %v664 = vld [vmem:[#allocation2 + $0x129] sm:$0xff]
        %v665 = vld [vmem:[#allocation2 + $0x139] sm:$0xff]
        %v666 = vld [vmem:[#allocation2 + $0x141] sm:$0xff]
        %v667 = vld [vmem:[#allocation2 + $0x151] sm:$0xff]
        %v668 = vld [vmem:[#allocation2 + $0x159] sm:$0xff]
        %v669 = vld [vmem:[#allocation2 + $0x169] sm:$0xff]
        %v670 = vld [vmem:[#allocation2 + $0x171] sm:$0xff]
        %v671 = vpack.c.bf16 %v640, %v639
        %v672 = vpack.c.bf16 %v642, %v641
        %v673 = vpack.c.bf16 %v644, %v643
        %v674 = vpack.c.bf16 %v646, %v645
        %v675 = vpack.c.bf16 %v648, %v647
        %v676 = vpack.c.bf16 %v650, %v649
        %v677 = vpack.c.bf16 %v652, %v651
        %v678 = vpack.c.bf16 %v654, %v653
        %v679 = vpack.c.bf16 %v656, %v655
        %v680 = vpack.c.bf16 %v658, %v657
        %v681 = vpack.c.bf16 %v660, %v659
        %v682 = vpack.c.bf16 %v662, %v661
        %v683 = vpack.c.bf16 %v664, %v663
        %v684 = vpack.c.bf16 %v666, %v665
        %v685 = vpack.c.bf16 %v668, %v667
        %v686 = vpack.c.bf16 %v670, %v669
        %s687 = scalar_lea.vmem [#allocation7], 16
        %v688 = vld [vmem:[%s687] sm:$0xf]
        %v689 = vld [vmem:[%s687 + $0x4] sm:$0xf]
        %v690 = vld [vmem:[%s687 + $0x8] sm:$0xf]
        %v691 = vld [vmem:[%s687 + $0xc] sm:$0xf]
        %v696 = vunpack.c.l.b16 %v688
        %v697 = vunpack.c.l.b16 %v689
        %v698 = vunpack.c.l.b16 %v690
        %v699 = vunpack.c.l.b16 %v691
        %v700 = vpack.c.b16 %v697, %v696
        %v701 = vpack.c.b16 %v699, %v698
        %v705 = vsel %vm498, %v671, 0
        %v708 = vsel %vm498, %v672, 0
        %v711 = vsel %vm498, %v673, 0
        %v714 = vsel %vm498, %v674, 0
        %v717 = vsel %vm498, %v675, 0
        %v720 = vsel %vm498, %v676, 0
        %v723 = vsel %vm498, %v677, 0
        %v726 = vsel %vm498, %v678, 0
        %v729 = vsel %vm498, %v679, 0
        %v732 = vsel %vm498, %v680, 0
        %v735 = vsel %vm498, %v681, 0
        %v738 = vsel %vm498, %v682, 0
        %v741 = vsel %vm498, %v683, 0
        %v744 = vsel %vm498, %v684, 0
        %v747 = vsel %vm498, %v685, 0
        %v750 = vsel %vm498, %v686, 0
        %752 = vmatpush.bf16.msra.mxu0 0
        %753 = vmatpush.bf16.msra.mxu0 0
        %754 = vmatpush.bf16.msra.mxu0 0
        %755 = vmatpush.bf16.msra.mxu0 0
        %756 = vmatpush.bf16.msra.mxu0 0
        %757 = vmatpush.bf16.msra.mxu0 0
        %758 = vmatpush.bf16.msra.mxu0 %v701
        %759 = vmatpush.bf16.msra.mxu0 %v700
        %760 = vmatmul.bf16.gmra.mxu0 %v705
        %v761 = vpop.f32.mrf.mxu0
        %v762 = vadd.f32 0.0, %v761
        %v763 = vpop.f32.mrf.mxu0
        %v764 = vadd.f32 0.0, %v763
        %765 = vmatmul.bf16.gmra.mxu0 %v708
        %v766 = vpop.f32.mrf.mxu0
        %v767 = vadd.f32 0.0, %v766
        %v768 = vpop.f32.mrf.mxu0
        %v769 = vadd.f32 0.0, %v768
        %770 = vmatmul.bf16.gmra.mxu0 %v711
        %v771 = vpop.f32.mrf.mxu0
        %v772 = vadd.f32 0.0, %v771
        %v773 = vpop.f32.mrf.mxu0
        %v774 = vadd.f32 0.0, %v773
        %775 = vmatmul.bf16.gmra.mxu0 %v714
        %v776 = vpop.f32.mrf.mxu0
        %v777 = vadd.f32 0.0, %v776
        %v778 = vpop.f32.mrf.mxu0
        %v779 = vadd.f32 0.0, %v778
        %780 = vmatmul.bf16.gmra.mxu0 %v717
        %v781 = vpop.f32.mrf.mxu0
        %v782 = vadd.f32 0.0, %v781
        %v783 = vpop.f32.mrf.mxu0
        %v784 = vadd.f32 0.0, %v783
        %785 = vmatmul.bf16.gmra.mxu0 %v720
        %v786 = vpop.f32.mrf.mxu0
        %v787 = vadd.f32 0.0, %v786
        %v788 = vpop.f32.mrf.mxu0
        %v789 = vadd.f32 0.0, %v788
        %790 = vmatmul.bf16.gmra.mxu0 %v723
        %v791 = vpop.f32.mrf.mxu0
        %v792 = vadd.f32 0.0, %v791
        %v793 = vpop.f32.mrf.mxu0
        %v794 = vadd.f32 0.0, %v793
        %795 = vmatmul.bf16.gmra.mxu0 %v726
        %v796 = vpop.f32.mrf.mxu0
        %v797 = vadd.f32 0.0, %v796
        %v798 = vpop.f32.mrf.mxu0
        %v799 = vadd.f32 0.0, %v798
        %800 = vmatmul.bf16.gmra.mxu0 %v729
        %v801 = vpop.f32.mrf.mxu0
        %v802 = vadd.f32 0.0, %v801
        %v803 = vpop.f32.mrf.mxu0
        %v804 = vadd.f32 0.0, %v803
        %805 = vmatmul.bf16.gmra.mxu0 %v732
        %v806 = vpop.f32.mrf.mxu0
        %v807 = vadd.f32 0.0, %v806
        %v808 = vpop.f32.mrf.mxu0
        %v809 = vadd.f32 0.0, %v808
        %810 = vmatmul.bf16.gmra.mxu0 %v735
        %v811 = vpop.f32.mrf.mxu0
        %v812 = vadd.f32 0.0, %v811
        %v813 = vpop.f32.mrf.mxu0
        %v814 = vadd.f32 0.0, %v813
        %815 = vmatmul.bf16.gmra.mxu0 %v738
        %v816 = vpop.f32.mrf.mxu0
        %v817 = vadd.f32 0.0, %v816
        %v818 = vpop.f32.mrf.mxu0
        %v819 = vadd.f32 0.0, %v818
        %820 = vmatmul.bf16.gmra.mxu0 %v741
        %v821 = vpop.f32.mrf.mxu0
        %v822 = vadd.f32 0.0, %v821
        %v823 = vpop.f32.mrf.mxu0
        %v824 = vadd.f32 0.0, %v823
        %825 = vmatmul.bf16.gmra.mxu0 %v744
        %v826 = vpop.f32.mrf.mxu0
        %v827 = vadd.f32 0.0, %v826
        %v828 = vpop.f32.mrf.mxu0
        %v829 = vadd.f32 0.0, %v828
        %830 = vmatmul.bf16.gmra.mxu0 %v747
        %v831 = vpop.f32.mrf.mxu0
        %v832 = vadd.f32 0.0, %v831
        %v833 = vpop.f32.mrf.mxu0
        %v834 = vadd.f32 0.0, %v833
        %835 = vmatmul.bf16.gmra.mxu0 %v750
        %v836 = vpop.f32.mrf.mxu0
        %v837 = vadd.f32 0.0, %v836
        %v838 = vpop.f32.mrf.mxu0
        %v839 = vadd.f32 0.0, %v838
        %840 = vdwg.mxu0
        %v845 = vunpack.c.l.b16 %v635
        %v846 = vunpack.c.l.b16 %v636
        %v847 = vunpack.c.l.b16 %v637
        %v848 = vunpack.c.l.b16 %v638
        %v849 = vpack.c.b16 %v846, %v845
        %v850 = vpack.c.b16 %v848, %v847
        %v854 = vsel %vm498, %v619, 0
        %v857 = vsel %vm498, %v620, 0
        %v860 = vsel %vm498, %v621, 0
        %v863 = vsel %vm498, %v622, 0
        %v866 = vsel %vm498, %v623, 0
        %v869 = vsel %vm498, %v624, 0
        %v872 = vsel %vm498, %v625, 0
        %v875 = vsel %vm498, %v626, 0
        %v878 = vsel %vm498, %v627, 0
        %v881 = vsel %vm498, %v628, 0
        %v884 = vsel %vm498, %v629, 0
        %v887 = vsel %vm498, %v630, 0
        %v890 = vsel %vm498, %v631, 0
        %v893 = vsel %vm498, %v632, 0
        %v896 = vsel %vm498, %v633, 0
        %v899 = vsel %vm498, %v634, 0
        %901 = vmatpush.bf16.msra.mxu0 0
        %902 = vmatpush.bf16.msra.mxu0 0
        %903 = vmatpush.bf16.msra.mxu0 0
        %904 = vmatpush.bf16.msra.mxu0 0
        %905 = vmatpush.bf16.msra.mxu0 0
        %906 = vmatpush.bf16.msra.mxu0 0
        %907 = vmatpush.bf16.msra.mxu0 %v850
        %908 = vmatpush.bf16.msra.mxu0 %v849
        %909 = vmatmul.bf16.gmra.mxu0 %v854
        %v910 = vpop.f32.mrf.mxu0
        %v911 = vadd.f32 %v762, %v910
        %v912 = vpop.f32.mrf.mxu0
        %v913 = vadd.f32 %v764, %v912
        %914 = vmatmul.bf16.gmra.mxu0 %v857
        %v915 = vpop.f32.mrf.mxu0
        %v916 = vadd.f32 %v767, %v915
        %v917 = vpop.f32.mrf.mxu0
        %v918 = vadd.f32 %v769, %v917
        %919 = vmatmul.bf16.gmra.mxu0 %v860
        %v920 = vpop.f32.mrf.mxu0
        %v921 = vadd.f32 %v772, %v920
        %v922 = vpop.f32.mrf.mxu0
        %v923 = vadd.f32 %v774, %v922
        %924 = vmatmul.bf16.gmra.mxu0 %v863
        %v925 = vpop.f32.mrf.mxu0
        %v926 = vadd.f32 %v777, %v925
        %v927 = vpop.f32.mrf.mxu0
        %v928 = vadd.f32 %v779, %v927
        %929 = vmatmul.bf16.gmra.mxu0 %v866
        %v930 = vpop.f32.mrf.mxu0
        %v931 = vadd.f32 %v782, %v930
        %v932 = vpop.f32.mrf.mxu0
        %v933 = vadd.f32 %v784, %v932
        %934 = vmatmul.bf16.gmra.mxu0 %v869
        %v935 = vpop.f32.mrf.mxu0
        %v936 = vadd.f32 %v787, %v935
        %v937 = vpop.f32.mrf.mxu0
        %v938 = vadd.f32 %v789, %v937
        %939 = vmatmul.bf16.gmra.mxu0 %v872
        %v940 = vpop.f32.mrf.mxu0
        %v941 = vadd.f32 %v792, %v940
        %v942 = vpop.f32.mrf.mxu0
        %v943 = vadd.f32 %v794, %v942
        %944 = vmatmul.bf16.gmra.mxu0 %v875
        %v945 = vpop.f32.mrf.mxu0
        %v946 = vadd.f32 %v797, %v945
        %v947 = vpop.f32.mrf.mxu0
        %v948 = vadd.f32 %v799, %v947
        %949 = vmatmul.bf16.gmra.mxu0 %v878
        %v950 = vpop.f32.mrf.mxu0
        %v951 = vadd.f32 %v802, %v950
        %v952 = vpop.f32.mrf.mxu0
        %v953 = vadd.f32 %v804, %v952
        %954 = vmatmul.bf16.gmra.mxu0 %v881
        %v955 = vpop.f32.mrf.mxu0
        %v956 = vadd.f32 %v807, %v955
        %v957 = vpop.f32.mrf.mxu0
        %v958 = vadd.f32 %v809, %v957
        %959 = vmatmul.bf16.gmra.mxu0 %v884
        %v960 = vpop.f32.mrf.mxu0
        %v961 = vadd.f32 %v812, %v960
        %v962 = vpop.f32.mrf.mxu0
        %v963 = vadd.f32 %v814, %v962
        %964 = vmatmul.bf16.gmra.mxu0 %v887
        %v965 = vpop.f32.mrf.mxu0
        %v966 = vadd.f32 %v817, %v965
        %v967 = vpop.f32.mrf.mxu0
        %v968 = vadd.f32 %v819, %v967
        %969 = vmatmul.bf16.gmra.mxu0 %v890
        %v970 = vpop.f32.mrf.mxu0
        %v971 = vadd.f32 %v822, %v970
        %v972 = vpop.f32.mrf.mxu0
        %v973 = vadd.f32 %v824, %v972
        %974 = vmatmul.bf16.gmra.mxu0 %v893
        %v975 = vpop.f32.mrf.mxu0
        %v976 = vadd.f32 %v827, %v975
        %v977 = vpop.f32.mrf.mxu0
        %v978 = vadd.f32 %v829, %v977
        %979 = vmatmul.bf16.gmra.mxu0 %v896
        %v980 = vpop.f32.mrf.mxu0
        %v981 = vadd.f32 %v832, %v980
        %v982 = vpop.f32.mrf.mxu0
        %v983 = vadd.f32 %v834, %v982
        %984 = vmatmul.bf16.gmra.mxu0 %v899
        %v985 = vpop.f32.mrf.mxu0
        %v986 = vadd.f32 %v837, %v985
        %v987 = vpop.f32.mrf.mxu0
        %v988 = vadd.f32 %v839, %v987
        %989 = vdwg.mxu0
        %v990 = vld [vmem:[#allocation2 + $0x2] sm:$0xff]
        %v991 = vld [vmem:[#allocation2 + $0xa] sm:$0xff]
        %v992 = vld [vmem:[#allocation2 + $0x1a] sm:$0xff]
        %v993 = vld [vmem:[#allocation2 + $0x22] sm:$0xff]
        %v994 = vld [vmem:[#allocation2 + $0x32] sm:$0xff]
        %v995 = vld [vmem:[#allocation2 + $0x3a] sm:$0xff]
        %v996 = vld [vmem:[#allocation2 + $0x4a] sm:$0xff]
        %v997 = vld [vmem:[#allocation2 + $0x52] sm:$0xff]
        %v998 = vld [vmem:[#allocation2 + $0x62] sm:$0xff]
        %v999 = vld [vmem:[#allocation2 + $0x6a] sm:$0xff]
        %v1000 = vld [vmem:[#allocation2 + $0x7a] sm:$0xff]
        %v1001 = vld [vmem:[#allocation2 + $0x82] sm:$0xff]
        %v1002 = vld [vmem:[#allocation2 + $0x92] sm:$0xff]
        %v1003 = vld [vmem:[#allocation2 + $0x9a] sm:$0xff]
        %v1004 = vld [vmem:[#allocation2 + $0xaa] sm:$0xff]
        %v1005 = vld [vmem:[#allocation2 + $0xb2] sm:$0xff]
        %v1006 = vld [vmem:[#allocation2 + $0xc2] sm:$0xff]
        %v1007 = vld [vmem:[#allocation2 + $0xca] sm:$0xff]
        %v1008 = vld [vmem:[#allocation2 + $0xda] sm:$0xff]
        %v1009 = vld [vmem:[#allocation2 + $0xe2] sm:$0xff]
        %v1010 = vld [vmem:[#allocation2 + $0xf2] sm:$0xff]
        %v1011 = vld [vmem:[#allocation2 + $0xfa] sm:$0xff]
        %v1012 = vld [vmem:[#allocation2 + $0x10a] sm:$0xff]
        %v1013 = vld [vmem:[#allocation2 + $0x112] sm:$0xff]
        %v1014 = vld [vmem:[#allocation2 + $0x122] sm:$0xff]
        %v1015 = vld [vmem:[#allocation2 + $0x12a] sm:$0xff]
        %v1016 = vld [vmem:[#allocation2 + $0x13a] sm:$0xff]
        %v1017 = vld [vmem:[#allocation2 + $0x142] sm:$0xff]
        %v1018 = vld [vmem:[#allocation2 + $0x152] sm:$0xff]
        %v1019 = vld [vmem:[#allocation2 + $0x15a] sm:$0xff]
        %v1020 = vld [vmem:[#allocation2 + $0x16a] sm:$0xff]
        %v1021 = vld [vmem:[#allocation2 + $0x172] sm:$0xff]
        %v1022 = vpack.c.bf16 %v991, %v990
        %v1023 = vpack.c.bf16 %v993, %v992
        %v1024 = vpack.c.bf16 %v995, %v994
        %v1025 = vpack.c.bf16 %v997, %v996
        %v1026 = vpack.c.bf16 %v999, %v998
        %v1027 = vpack.c.bf16 %v1001, %v1000
        %v1028 = vpack.c.bf16 %v1003, %v1002
        %v1029 = vpack.c.bf16 %v1005, %v1004
        %v1030 = vpack.c.bf16 %v1007, %v1006
        %v1031 = vpack.c.bf16 %v1009, %v1008
        %v1032 = vpack.c.bf16 %v1011, %v1010
        %v1033 = vpack.c.bf16 %v1013, %v1012
        %v1034 = vpack.c.bf16 %v1015, %v1014
        %v1035 = vpack.c.bf16 %v1017, %v1016
        %v1036 = vpack.c.bf16 %v1019, %v1018
        %v1037 = vpack.c.bf16 %v1021, %v1020
        %s1038 = scalar_lea.vmem [#allocation7], 32
        %v1039 = vld [vmem:[%s1038] sm:$0xf]
        %v1040 = vld [vmem:[%s1038 + $0x4] sm:$0xf]
        %v1041 = vld [vmem:[%s1038 + $0x8] sm:$0xf]
        %v1042 = vld [vmem:[%s1038 + $0xc] sm:$0xf]
        %v1047 = vunpack.c.l.b16 %v1039
        %v1048 = vunpack.c.l.b16 %v1040
        %v1049 = vunpack.c.l.b16 %v1041
        %v1050 = vunpack.c.l.b16 %v1042
        %v1051 = vpack.c.b16 %v1048, %v1047
        %v1052 = vpack.c.b16 %v1050, %v1049
        %v1056 = vsel %vm498, %v1022, 0
        %v1059 = vsel %vm498, %v1023, 0
        %v1062 = vsel %vm498, %v1024, 0
        %v1065 = vsel %vm498, %v1025, 0
        %v1068 = vsel %vm498, %v1026, 0
        %v1071 = vsel %vm498, %v1027, 0
        %v1074 = vsel %vm498, %v1028, 0
        %v1077 = vsel %vm498, %v1029, 0
        %v1080 = vsel %vm498, %v1030, 0
        %v1083 = vsel %vm498, %v1031, 0
        %v1086 = vsel %vm498, %v1032, 0
        %v1089 = vsel %vm498, %v1033, 0
        %v1092 = vsel %vm498, %v1034, 0
        %v1095 = vsel %vm498, %v1035, 0
        %v1098 = vsel %vm498, %v1036, 0
        %v1101 = vsel %vm498, %v1037, 0
        %1103 = vmatpush.bf16.msra.mxu0 0
        %1104 = vmatpush.bf16.msra.mxu0 0
        %1105 = vmatpush.bf16.msra.mxu0 0
        %1106 = vmatpush.bf16.msra.mxu0 0
        %1107 = vmatpush.bf16.msra.mxu0 0
        %1108 = vmatpush.bf16.msra.mxu0 0
        %1109 = vmatpush.bf16.msra.mxu0 %v1052
        %1110 = vmatpush.bf16.msra.mxu0 %v1051
        %1111 = vmatmul.bf16.gmra.mxu0 %v1056
        %v1112 = vpop.f32.mrf.mxu0
        %v1113 = vadd.f32 0.0, %v1112
        %v1114 = vpop.f32.mrf.mxu0
        %v1115 = vadd.f32 0.0, %v1114
        %1116 = vmatmul.bf16.gmra.mxu0 %v1059
        %v1117 = vpop.f32.mrf.mxu0
        %v1118 = vadd.f32 0.0, %v1117
        %v1119 = vpop.f32.mrf.mxu0
        %v1120 = vadd.f32 0.0, %v1119
        %1121 = vmatmul.bf16.gmra.mxu0 %v1062
        %v1122 = vpop.f32.mrf.mxu0
        %v1123 = vadd.f32 0.0, %v1122
        %v1124 = vpop.f32.mrf.mxu0
        %v1125 = vadd.f32 0.0, %v1124
        %1126 = vmatmul.bf16.gmra.mxu0 %v1065
        %v1127 = vpop.f32.mrf.mxu0
        %v1128 = vadd.f32 0.0, %v1127
        %v1129 = vpop.f32.mrf.mxu0
        %v1130 = vadd.f32 0.0, %v1129
        %1131 = vmatmul.bf16.gmra.mxu0 %v1068
        %v1132 = vpop.f32.mrf.mxu0
        %v1133 = vadd.f32 0.0, %v1132
        %v1134 = vpop.f32.mrf.mxu0
        %v1135 = vadd.f32 0.0, %v1134
        %1136 = vmatmul.bf16.gmra.mxu0 %v1071
        %v1137 = vpop.f32.mrf.mxu0
        %v1138 = vadd.f32 0.0, %v1137
        %v1139 = vpop.f32.mrf.mxu0
        %v1140 = vadd.f32 0.0, %v1139
        %1141 = vmatmul.bf16.gmra.mxu0 %v1074
        %v1142 = vpop.f32.mrf.mxu0
        %v1143 = vadd.f32 0.0, %v1142
        %v1144 = vpop.f32.mrf.mxu0
        %v1145 = vadd.f32 0.0, %v1144
        %1146 = vmatmul.bf16.gmra.mxu0 %v1077
        %v1147 = vpop.f32.mrf.mxu0
        %v1148 = vadd.f32 0.0, %v1147
        %v1149 = vpop.f32.mrf.mxu0
        %v1150 = vadd.f32 0.0, %v1149
        %1151 = vmatmul.bf16.gmra.mxu0 %v1080
        %v1152 = vpop.f32.mrf.mxu0
        %v1153 = vadd.f32 0.0, %v1152
        %v1154 = vpop.f32.mrf.mxu0
        %v1155 = vadd.f32 0.0, %v1154
        %1156 = vmatmul.bf16.gmra.mxu0 %v1083
        %v1157 = vpop.f32.mrf.mxu0
        %v1158 = vadd.f32 0.0, %v1157
        %v1159 = vpop.f32.mrf.mxu0
        %v1160 = vadd.f32 0.0, %v1159
        %1161 = vmatmul.bf16.gmra.mxu0 %v1086
        %v1162 = vpop.f32.mrf.mxu0
        %v1163 = vadd.f32 0.0, %v1162
        %v1164 = vpop.f32.mrf.mxu0
        %v1165 = vadd.f32 0.0, %v1164
        %1166 = vmatmul.bf16.gmra.mxu0 %v1089
        %v1167 = vpop.f32.mrf.mxu0
        %v1168 = vadd.f32 0.0, %v1167
        %v1169 = vpop.f32.mrf.mxu0
        %v1170 = vadd.f32 0.0, %v1169
        %1171 = vmatmul.bf16.gmra.mxu0 %v1092
        %v1172 = vpop.f32.mrf.mxu0
        %v1173 = vadd.f32 0.0, %v1172
        %v1174 = vpop.f32.mrf.mxu0
        %v1175 = vadd.f32 0.0, %v1174
        %1176 = vmatmul.bf16.gmra.mxu0 %v1095
        %v1177 = vpop.f32.mrf.mxu0
        %v1178 = vadd.f32 0.0, %v1177
        %v1179 = vpop.f32.mrf.mxu0
        %v1180 = vadd.f32 0.0, %v1179
        %1181 = vmatmul.bf16.gmra.mxu0 %v1098
        %v1182 = vpop.f32.mrf.mxu0
        %v1183 = vadd.f32 0.0, %v1182
        %v1184 = vpop.f32.mrf.mxu0
        %v1185 = vadd.f32 0.0, %v1184
        %1186 = vmatmul.bf16.gmra.mxu0 %v1101
        %v1187 = vpop.f32.mrf.mxu0
        %v1188 = vadd.f32 0.0, %v1187
        %v1189 = vpop.f32.mrf.mxu0
        %v1190 = vadd.f32 0.0, %v1189
        %1191 = vdwg.mxu0
        %v1192 = vadd.f32 %v911, %v1113
        %v1193 = vadd.f32 %v913, %v1115
        %v1194 = vadd.f32 %v916, %v1118
        %v1195 = vadd.f32 %v918, %v1120
        %v1196 = vadd.f32 %v921, %v1123
        %v1197 = vadd.f32 %v923, %v1125
        %v1198 = vadd.f32 %v926, %v1128
        %v1199 = vadd.f32 %v928, %v1130
        %v1200 = vadd.f32 %v931, %v1133
        %v1201 = vadd.f32 %v933, %v1135
        %v1202 = vadd.f32 %v936, %v1138
        %v1203 = vadd.f32 %v938, %v1140
        %v1204 = vadd.f32 %v941, %v1143
        %v1205 = vadd.f32 %v943, %v1145
        %v1206 = vadd.f32 %v946, %v1148
        %v1207 = vadd.f32 %v948, %v1150
        %v1208 = vadd.f32 %v951, %v1153
        %v1209 = vadd.f32 %v953, %v1155
        %v1210 = vadd.f32 %v956, %v1158
        %v1211 = vadd.f32 %v958, %v1160
        %v1212 = vadd.f32 %v961, %v1163
        %v1213 = vadd.f32 %v963, %v1165
        %v1214 = vadd.f32 %v966, %v1168
        %v1215 = vadd.f32 %v968, %v1170
        %v1216 = vadd.f32 %v971, %v1173
        %v1217 = vadd.f32 %v973, %v1175
        %v1218 = vadd.f32 %v976, %v1178
        %v1219 = vadd.f32 %v978, %v1180
        %v1220 = vadd.f32 %v981, %v1183
        %v1221 = vadd.f32 %v983, %v1185
        %v1222 = vadd.f32 %v986, %v1188
        %v1223 = vadd.f32 %v988, %v1190
        %v1224 = vld [vmem:[%s554] sm:$0xff]
        %v1225 = vld [vmem:[%s554 + $0x8] sm:$0xff]
        %v1226 = vld [vmem:[%s554 + $0x18] sm:$0xff]
        %v1227 = vld [vmem:[%s554 + $0x20] sm:$0xff]
        %v1228 = vld [vmem:[%s554 + $0x30] sm:$0xff]
        %v1229 = vld [vmem:[%s554 + $0x38] sm:$0xff]
        %v1230 = vld [vmem:[%s554 + $0x48] sm:$0xff]
        %v1231 = vld [vmem:[%s554 + $0x50] sm:$0xff]
        %v1232 = vld [vmem:[%s554 + $0x60] sm:$0xff]
        %v1233 = vld [vmem:[%s554 + $0x68] sm:$0xff]
        %v1234 = vld [vmem:[%s554 + $0x78] sm:$0xff]
        %v1235 = vld [vmem:[%s554 + $0x80] sm:$0xff]
        %v1236 = vld [vmem:[%s554 + $0x90] sm:$0xff]
        %v1237 = vld [vmem:[%s554 + $0x98] sm:$0xff]
        %v1238 = vld [vmem:[%s554 + $0xa8] sm:$0xff]
        %v1239 = vld [vmem:[%s554 + $0xb0] sm:$0xff]
        %v1240 = vld [vmem:[%s554 + $0xc0] sm:$0xff]
        %v1241 = vld [vmem:[%s554 + $0xc8] sm:$0xff]
        %v1242 = vld [vmem:[%s554 + $0xd8] sm:$0xff]
        %v1243 = vld [vmem:[%s554 + $0xe0] sm:$0xff]
        %v1244 = vld [vmem:[%s554 + $0xf0] sm:$0xff]
        %v1245 = vld [vmem:[%s554 + $0xf8] sm:$0xff]
        %v1246 = vld [vmem:[%s554 + $0x108] sm:$0xff]
        %v1247 = vld [vmem:[%s554 + $0x110] sm:$0xff]
        %v1248 = vld [vmem:[%s554 + $0x120] sm:$0xff]
        %v1249 = vld [vmem:[%s554 + $0x128] sm:$0xff]
        %v1250 = vld [vmem:[%s554 + $0x138] sm:$0xff]
        %v1251 = vld [vmem:[%s554 + $0x140] sm:$0xff]
        %v1252 = vld [vmem:[%s554 + $0x150] sm:$0xff]
        %v1253 = vld [vmem:[%s554 + $0x158] sm:$0xff]
        %v1254 = vld [vmem:[%s554 + $0x168] sm:$0xff]
        %v1255 = vld [vmem:[%s554 + $0x170] sm:$0xff]
        %v1256 = vpack.c.bf16 %v1225, %v1224
        %v1257 = vpack.c.bf16 %v1227, %v1226
        %v1258 = vpack.c.bf16 %v1229, %v1228
        %v1259 = vpack.c.bf16 %v1231, %v1230
        %v1260 = vpack.c.bf16 %v1233, %v1232
        %v1261 = vpack.c.bf16 %v1235, %v1234
        %v1262 = vpack.c.bf16 %v1237, %v1236
        %v1263 = vpack.c.bf16 %v1239, %v1238
        %v1264 = vpack.c.bf16 %v1241, %v1240
        %v1265 = vpack.c.bf16 %v1243, %v1242
        %v1266 = vpack.c.bf16 %v1245, %v1244
        %v1267 = vpack.c.bf16 %v1247, %v1246
        %v1268 = vpack.c.bf16 %v1249, %v1248
        %v1269 = vpack.c.bf16 %v1251, %v1250
        %v1270 = vpack.c.bf16 %v1253, %v1252
        %v1271 = vpack.c.bf16 %v1255, %v1254
        %s1272 = scalar_lea.vmem [#allocation7], 48
        %v1273 = vld [vmem:[%s1272] sm:$0xf]
        %v1274 = vld [vmem:[%s1272 + $0x4] sm:$0xf]
        %v1275 = vld [vmem:[%s1272 + $0x8] sm:$0xf]
        %v1276 = vld [vmem:[%s1272 + $0xc] sm:$0xf]
        %v1281 = vunpack.c.l.b16 %v1273
        %v1282 = vunpack.c.l.b16 %v1274
        %v1283 = vunpack.c.l.b16 %v1275
        %v1284 = vunpack.c.l.b16 %v1276
        %v1285 = vpack.c.b16 %v1282, %v1281
        %v1286 = vpack.c.b16 %v1284, %v1283
        %v1290 = vsel %vm498, %v1256, 0
        %v1293 = vsel %vm498, %v1257, 0
        %v1296 = vsel %vm498, %v1258, 0
        %v1299 = vsel %vm498, %v1259, 0
        %v1302 = vsel %vm498, %v1260, 0
        %v1305 = vsel %vm498, %v1261, 0
        %v1308 = vsel %vm498, %v1262, 0
        %v1311 = vsel %vm498, %v1263, 0
        %v1314 = vsel %vm498, %v1264, 0
        %v1317 = vsel %vm498, %v1265, 0
        %v1320 = vsel %vm498, %v1266, 0
        %v1323 = vsel %vm498, %v1267, 0
        %v1326 = vsel %vm498, %v1268, 0
        %v1329 = vsel %vm498, %v1269, 0
        %v1332 = vsel %vm498, %v1270, 0
        %v1335 = vsel %vm498, %v1271, 0
        %1337 = vmatpush.bf16.msra.mxu0 0
        %1338 = vmatpush.bf16.msra.mxu0 0
        %1339 = vmatpush.bf16.msra.mxu0 0
        %1340 = vmatpush.bf16.msra.mxu0 0
        %1341 = vmatpush.bf16.msra.mxu0 0
        %1342 = vmatpush.bf16.msra.mxu0 0
        %1343 = vmatpush.bf16.msra.mxu0 %v1286
        %1344 = vmatpush.bf16.msra.mxu0 %v1285
        %1345 = vmatmul.bf16.gmra.mxu0 %v1290
        %v1346 = vpop.f32.mrf.mxu0
        %v1347 = vadd.f32 0.0, %v1346
        %v1348 = vpop.f32.mrf.mxu0
        %v1349 = vadd.f32 0.0, %v1348
        %1350 = vmatmul.bf16.gmra.mxu0 %v1293
        %v1351 = vpop.f32.mrf.mxu0
        %v1352 = vadd.f32 0.0, %v1351
        %v1353 = vpop.f32.mrf.mxu0
        %v1354 = vadd.f32 0.0, %v1353
        %1355 = vmatmul.bf16.gmra.mxu0 %v1296
        %v1356 = vpop.f32.mrf.mxu0
        %v1357 = vadd.f32 0.0, %v1356
        %v1358 = vpop.f32.mrf.mxu0
        %v1359 = vadd.f32 0.0, %v1358
        %1360 = vmatmul.bf16.gmra.mxu0 %v1299
        %v1361 = vpop.f32.mrf.mxu0
        %v1362 = vadd.f32 0.0, %v1361
        %v1363 = vpop.f32.mrf.mxu0
        %v1364 = vadd.f32 0.0, %v1363
        %1365 = vmatmul.bf16.gmra.mxu0 %v1302
        %v1366 = vpop.f32.mrf.mxu0
        %v1367 = vadd.f32 0.0, %v1366
        %v1368 = vpop.f32.mrf.mxu0
        %v1369 = vadd.f32 0.0, %v1368
        %1370 = vmatmul.bf16.gmra.mxu0 %v1305
        %v1371 = vpop.f32.mrf.mxu0
        %v1372 = vadd.f32 0.0, %v1371
        %v1373 = vpop.f32.mrf.mxu0
        %v1374 = vadd.f32 0.0, %v1373
        %1375 = vmatmul.bf16.gmra.mxu0 %v1308
        %v1376 = vpop.f32.mrf.mxu0
        %v1377 = vadd.f32 0.0, %v1376
        %v1378 = vpop.f32.mrf.mxu0
        %v1379 = vadd.f32 0.0, %v1378
        %1380 = vmatmul.bf16.gmra.mxu0 %v1311
        %v1381 = vpop.f32.mrf.mxu0
        %v1382 = vadd.f32 0.0, %v1381
        %v1383 = vpop.f32.mrf.mxu0
        %v1384 = vadd.f32 0.0, %v1383
        %1385 = vmatmul.bf16.gmra.mxu0 %v1314
        %v1386 = vpop.f32.mrf.mxu0
        %v1387 = vadd.f32 0.0, %v1386
        %v1388 = vpop.f32.mrf.mxu0
        %v1389 = vadd.f32 0.0, %v1388
        %1390 = vmatmul.bf16.gmra.mxu0 %v1317
        %v1391 = vpop.f32.mrf.mxu0
        %v1392 = vadd.f32 0.0, %v1391
        %v1393 = vpop.f32.mrf.mxu0
        %v1394 = vadd.f32 0.0, %v1393
        %1395 = vmatmul.bf16.gmra.mxu0 %v1320
        %v1396 = vpop.f32.mrf.mxu0
        %v1397 = vadd.f32 0.0, %v1396
        %v1398 = vpop.f32.mrf.mxu0
        %v1399 = vadd.f32 0.0, %v1398
        %1400 = vmatmul.bf16.gmra.mxu0 %v1323
        %v1401 = vpop.f32.mrf.mxu0
        %v1402 = vadd.f32 0.0, %v1401
        %v1403 = vpop.f32.mrf.mxu0
        %v1404 = vadd.f32 0.0, %v1403
        %1405 = vmatmul.bf16.gmra.mxu0 %v1326
        %v1406 = vpop.f32.mrf.mxu0
        %v1407 = vadd.f32 0.0, %v1406
        %v1408 = vpop.f32.mrf.mxu0
        %v1409 = vadd.f32 0.0, %v1408
        %1410 = vmatmul.bf16.gmra.mxu0 %v1329
        %v1411 = vpop.f32.mrf.mxu0
        %v1412 = vadd.f32 0.0, %v1411
        %v1413 = vpop.f32.mrf.mxu0
        %v1414 = vadd.f32 0.0, %v1413
        %1415 = vmatmul.bf16.gmra.mxu0 %v1332
        %v1416 = vpop.f32.mrf.mxu0
        %v1417 = vadd.f32 0.0, %v1416
        %v1418 = vpop.f32.mrf.mxu0
        %v1419 = vadd.f32 0.0, %v1418
        %1420 = vmatmul.bf16.gmra.mxu0 %v1335
        %v1421 = vpop.f32.mrf.mxu0
        %v1422 = vadd.f32 0.0, %v1421
        %v1423 = vpop.f32.mrf.mxu0
        %v1424 = vadd.f32 0.0, %v1423
        %1425 = vdwg.mxu0
        %v1426 = vadd.f32 %v1192, %v1347
        %v1427 = vadd.f32 %v1193, %v1349
        %v1428 = vadd.f32 %v1194, %v1352
        %v1429 = vadd.f32 %v1195, %v1354
        %v1430 = vadd.f32 %v1196, %v1357
        %v1431 = vadd.f32 %v1197, %v1359
        %v1432 = vadd.f32 %v1198, %v1362
        %v1433 = vadd.f32 %v1199, %v1364
        %v1434 = vadd.f32 %v1200, %v1367
        %v1435 = vadd.f32 %v1201, %v1369
        %v1436 = vadd.f32 %v1202, %v1372
        %v1437 = vadd.f32 %v1203, %v1374
        %v1438 = vadd.f32 %v1204, %v1377
        %v1439 = vadd.f32 %v1205, %v1379
        %v1440 = vadd.f32 %v1206, %v1382
        %v1441 = vadd.f32 %v1207, %v1384
        %v1442 = vadd.f32 %v1208, %v1387
        %v1443 = vadd.f32 %v1209, %v1389
        %v1444 = vadd.f32 %v1210, %v1392
        %v1445 = vadd.f32 %v1211, %v1394
        %v1446 = vadd.f32 %v1212, %v1397
        %v1447 = vadd.f32 %v1213, %v1399
        %v1448 = vadd.f32 %v1214, %v1402
        %v1449 = vadd.f32 %v1215, %v1404
        %v1450 = vadd.f32 %v1216, %v1407
        %v1451 = vadd.f32 %v1217, %v1409
        %v1452 = vadd.f32 %v1218, %v1412
        %v1453 = vadd.f32 %v1219, %v1414
        %v1454 = vadd.f32 %v1220, %v1417
        %v1455 = vadd.f32 %v1221, %v1419
        %v1456 = vadd.f32 %v1222, %v1422
        %v1457 = vadd.f32 %v1223, %v1424
        %v1458 = vld [vmem:[%s554 + $0x1] sm:$0xff]
        %v1459 = vld [vmem:[%s554 + $0x9] sm:$0xff]
        %v1460 = vld [vmem:[%s554 + $0x19] sm:$0xff]
        %v1461 = vld [vmem:[%s554 + $0x21] sm:$0xff]
        %v1462 = vld [vmem:[%s554 + $0x31] sm:$0xff]
        %v1463 = vld [vmem:[%s554 + $0x39] sm:$0xff]
        %v1464 = vld [vmem:[%s554 + $0x49] sm:$0xff]
        %v1465 = vld [vmem:[%s554 + $0x51] sm:$0xff]
        %v1466 = vld [vmem:[%s554 + $0x61] sm:$0xff]
        %v1467 = vld [vmem:[%s554 + $0x69] sm:$0xff]
        %v1468 = vld [vmem:[%s554 + $0x79] sm:$0xff]
        %v1469 = vld [vmem:[%s554 + $0x81] sm:$0xff]
        %v1470 = vld [vmem:[%s554 + $0x91] sm:$0xff]
        %v1471 = vld [vmem:[%s554 + $0x99] sm:$0xff]
        %v1472 = vld [vmem:[%s554 + $0xa9] sm:$0xff]
        %v1473 = vld [vmem:[%s554 + $0xb1] sm:$0xff]
        %v1474 = vld [vmem:[%s554 + $0xc1] sm:$0xff]
        %v1475 = vld [vmem:[%s554 + $0xc9] sm:$0xff]
        %v1476 = vld [vmem:[%s554 + $0xd9] sm:$0xff]
        %v1477 = vld [vmem:[%s554 + $0xe1] sm:$0xff]
        %v1478 = vld [vmem:[%s554 + $0xf1] sm:$0xff]
        %v1479 = vld [vmem:[%s554 + $0xf9] sm:$0xff]
        %v1480 = vld [vmem:[%s554 + $0x109] sm:$0xff]
        %v1481 = vld [vmem:[%s554 + $0x111] sm:$0xff]
        %v1482 = vld [vmem:[%s554 + $0x121] sm:$0xff]
        %v1483 = vld [vmem:[%s554 + $0x129] sm:$0xff]
        %v1484 = vld [vmem:[%s554 + $0x139] sm:$0xff]
        %v1485 = vld [vmem:[%s554 + $0x141] sm:$0xff]
        %v1486 = vld [vmem:[%s554 + $0x151] sm:$0xff]
        %v1487 = vld [vmem:[%s554 + $0x159] sm:$0xff]
        %v1488 = vld [vmem:[%s554 + $0x169] sm:$0xff]
        %v1489 = vld [vmem:[%s554 + $0x171] sm:$0xff]
        %v1490 = vpack.c.bf16 %v1459, %v1458
        %v1491 = vpack.c.bf16 %v1461, %v1460
        %v1492 = vpack.c.bf16 %v1463, %v1462
        %v1493 = vpack.c.bf16 %v1465, %v1464
        %v1494 = vpack.c.bf16 %v1467, %v1466
        %v1495 = vpack.c.bf16 %v1469, %v1468
        %v1496 = vpack.c.bf16 %v1471, %v1470
        %v1497 = vpack.c.bf16 %v1473, %v1472
        %v1498 = vpack.c.bf16 %v1475, %v1474
        %v1499 = vpack.c.bf16 %v1477, %v1476
        %v1500 = vpack.c.bf16 %v1479, %v1478
        %v1501 = vpack.c.bf16 %v1481, %v1480
        %v1502 = vpack.c.bf16 %v1483, %v1482
        %v1503 = vpack.c.bf16 %v1485, %v1484
        %v1504 = vpack.c.bf16 %v1487, %v1486
        %v1505 = vpack.c.bf16 %v1489, %v1488
        %s1506 = scalar_lea.vmem [#allocation7], 64
        %v1507 = vld [vmem:[%s1506] sm:$0xf]
        %v1508 = vld [vmem:[%s1506 + $0x4] sm:$0xf]
        %v1509 = vld [vmem:[%s1506 + $0x8] sm:$0xf]
        %v1510 = vld [vmem:[%s1506 + $0xc] sm:$0xf]
        %v1515 = vunpack.c.l.b16 %v1507
        %v1516 = vunpack.c.l.b16 %v1508
        %v1517 = vunpack.c.l.b16 %v1509
        %v1518 = vunpack.c.l.b16 %v1510
        %v1519 = vpack.c.b16 %v1516, %v1515
        %v1520 = vpack.c.b16 %v1518, %v1517
        %v1524 = vsel %vm498, %v1490, 0
        %v1527 = vsel %vm498, %v1491, 0
        %v1530 = vsel %vm498, %v1492, 0
        %v1533 = vsel %vm498, %v1493, 0
        %v1536 = vsel %vm498, %v1494, 0
        %v1539 = vsel %vm498, %v1495, 0
        %v1542 = vsel %vm498, %v1496, 0
        %v1545 = vsel %vm498, %v1497, 0
        %v1548 = vsel %vm498, %v1498, 0
        %v1551 = vsel %vm498, %v1499, 0
        %v1554 = vsel %vm498, %v1500, 0
        %v1557 = vsel %vm498, %v1501, 0
        %v1560 = vsel %vm498, %v1502, 0
        %v1563 = vsel %vm498, %v1503, 0
        %v1566 = vsel %vm498, %v1504, 0
        %v1569 = vsel %vm498, %v1505, 0
        %1571 = vmatpush.bf16.msra.mxu0 0
        %1572 = vmatpush.bf16.msra.mxu0 0
        %1573 = vmatpush.bf16.msra.mxu0 0
        %1574 = vmatpush.bf16.msra.mxu0 0
        %1575 = vmatpush.bf16.msra.mxu0 0
        %1576 = vmatpush.bf16.msra.mxu0 0
        %1577 = vmatpush.bf16.msra.mxu0 %v1520
        %1578 = vmatpush.bf16.msra.mxu0 %v1519
        %1579 = vmatmul.bf16.gmra.mxu0 %v1524
        %v1580 = vpop.f32.mrf.mxu0
        %v1581 = vadd.f32 0.0, %v1580
        %v1582 = vpop.f32.mrf.mxu0
        %v1583 = vadd.f32 0.0, %v1582
        %1584 = vmatmul.bf16.gmra.mxu0 %v1527
        %v1585 = vpop.f32.mrf.mxu0
        %v1586 = vadd.f32 0.0, %v1585
        %v1587 = vpop.f32.mrf.mxu0
        %v1588 = vadd.f32 0.0, %v1587
        %1589 = vmatmul.bf16.gmra.mxu0 %v1530
        %v1590 = vpop.f32.mrf.mxu0
        %v1591 = vadd.f32 0.0, %v1590
        %v1592 = vpop.f32.mrf.mxu0
        %v1593 = vadd.f32 0.0, %v1592
        %1594 = vmatmul.bf16.gmra.mxu0 %v1533
        %v1595 = vpop.f32.mrf.mxu0
        %v1596 = vadd.f32 0.0, %v1595
        %v1597 = vpop.f32.mrf.mxu0
        %v1598 = vadd.f32 0.0, %v1597
        %1599 = vmatmul.bf16.gmra.mxu0 %v1536
        %v1600 = vpop.f32.mrf.mxu0
        %v1601 = vadd.f32 0.0, %v1600
        %v1602 = vpop.f32.mrf.mxu0
        %v1603 = vadd.f32 0.0, %v1602
        %1604 = vmatmul.bf16.gmra.mxu0 %v1539
        %v1605 = vpop.f32.mrf.mxu0
        %v1606 = vadd.f32 0.0, %v1605
        %v1607 = vpop.f32.mrf.mxu0
        %v1608 = vadd.f32 0.0, %v1607
        %1609 = vmatmul.bf16.gmra.mxu0 %v1542
        %v1610 = vpop.f32.mrf.mxu0
        %v1611 = vadd.f32 0.0, %v1610
        %v1612 = vpop.f32.mrf.mxu0
        %v1613 = vadd.f32 0.0, %v1612
        %1614 = vmatmul.bf16.gmra.mxu0 %v1545
        %v1615 = vpop.f32.mrf.mxu0
        %v1616 = vadd.f32 0.0, %v1615
        %v1617 = vpop.f32.mrf.mxu0
        %v1618 = vadd.f32 0.0, %v1617
        %1619 = vmatmul.bf16.gmra.mxu0 %v1548
        %v1620 = vpop.f32.mrf.mxu0
        %v1621 = vadd.f32 0.0, %v1620
        %v1622 = vpop.f32.mrf.mxu0
        %v1623 = vadd.f32 0.0, %v1622
        %1624 = vmatmul.bf16.gmra.mxu0 %v1551
        %v1625 = vpop.f32.mrf.mxu0
        %v1626 = vadd.f32 0.0, %v1625
        %v1627 = vpop.f32.mrf.mxu0
        %v1628 = vadd.f32 0.0, %v1627
        %1629 = vmatmul.bf16.gmra.mxu0 %v1554
        %v1630 = vpop.f32.mrf.mxu0
        %v1631 = vadd.f32 0.0, %v1630
        %v1632 = vpop.f32.mrf.mxu0
        %v1633 = vadd.f32 0.0, %v1632
        %1634 = vmatmul.bf16.gmra.mxu0 %v1557
        %v1635 = vpop.f32.mrf.mxu0
        %v1636 = vadd.f32 0.0, %v1635
        %v1637 = vpop.f32.mrf.mxu0
        %v1638 = vadd.f32 0.0, %v1637
        %1639 = vmatmul.bf16.gmra.mxu0 %v1560
        %v1640 = vpop.f32.mrf.mxu0
        %v1641 = vadd.f32 0.0, %v1640
        %v1642 = vpop.f32.mrf.mxu0
        %v1643 = vadd.f32 0.0, %v1642
        %1644 = vmatmul.bf16.gmra.mxu0 %v1563
        %v1645 = vpop.f32.mrf.mxu0
        %v1646 = vadd.f32 0.0, %v1645
        %v1647 = vpop.f32.mrf.mxu0
        %v1648 = vadd.f32 0.0, %v1647
        %1649 = vmatmul.bf16.gmra.mxu0 %v1566
        %v1650 = vpop.f32.mrf.mxu0
        %v1651 = vadd.f32 0.0, %v1650
        %v1652 = vpop.f32.mrf.mxu0
        %v1653 = vadd.f32 0.0, %v1652
        %1654 = vmatmul.bf16.gmra.mxu0 %v1569
        %v1655 = vpop.f32.mrf.mxu0
        %v1656 = vadd.f32 0.0, %v1655
        %v1657 = vpop.f32.mrf.mxu0
        %v1658 = vadd.f32 0.0, %v1657
        %1659 = vdwg.mxu0
        %v1660 = vadd.f32 %v1426, %v1581
        %v1661 = vadd.f32 %v1427, %v1583
        %v1662 = vadd.f32 %v1428, %v1586
        %v1663 = vadd.f32 %v1429, %v1588
        %v1664 = vadd.f32 %v1430, %v1591
        %v1665 = vadd.f32 %v1431, %v1593
        %v1666 = vadd.f32 %v1432, %v1596
        %v1667 = vadd.f32 %v1433, %v1598
        %v1668 = vadd.f32 %v1434, %v1601
        %v1669 = vadd.f32 %v1435, %v1603
        %v1670 = vadd.f32 %v1436, %v1606
        %v1671 = vadd.f32 %v1437, %v1608
        %v1672 = vadd.f32 %v1438, %v1611
        %v1673 = vadd.f32 %v1439, %v1613
        %v1674 = vadd.f32 %v1440, %v1616
        %v1675 = vadd.f32 %v1441, %v1618
        %v1676 = vadd.f32 %v1442, %v1621
        %v1677 = vadd.f32 %v1443, %v1623
        %v1678 = vadd.f32 %v1444, %v1626
        %v1679 = vadd.f32 %v1445, %v1628
        %v1680 = vadd.f32 %v1446, %v1631
        %v1681 = vadd.f32 %v1447, %v1633
        %v1682 = vadd.f32 %v1448, %v1636
        %v1683 = vadd.f32 %v1449, %v1638
        %v1684 = vadd.f32 %v1450, %v1641
        %v1685 = vadd.f32 %v1451, %v1643
        %v1686 = vadd.f32 %v1452, %v1646
        %v1687 = vadd.f32 %v1453, %v1648
        %v1688 = vadd.f32 %v1454, %v1651
        %v1689 = vadd.f32 %v1455, %v1653
        %v1690 = vadd.f32 %v1456, %v1656
        %v1691 = vadd.f32 %v1457, %v1658
        %v1692 = vld [vmem:[%s554 + $0x2] sm:$0xff]
        %v1693 = vld [vmem:[%s554 + $0xa] sm:$0xff]
        %v1694 = vld [vmem:[%s554 + $0x1a] sm:$0xff]
        %v1695 = vld [vmem:[%s554 + $0x22] sm:$0xff]
        %v1696 = vld [vmem:[%s554 + $0x32] sm:$0xff]
        %v1697 = vld [vmem:[%s554 + $0x3a] sm:$0xff]
        %v1698 = vld [vmem:[%s554 + $0x4a] sm:$0xff]
        %v1699 = vld [vmem:[%s554 + $0x52] sm:$0xff]
        %v1700 = vld [vmem:[%s554 + $0x62] sm:$0xff]
        %v1701 = vld [vmem:[%s554 + $0x6a] sm:$0xff]
        %v1702 = vld [vmem:[%s554 + $0x7a] sm:$0xff]
        %v1703 = vld [vmem:[%s554 + $0x82] sm:$0xff]
        %v1704 = vld [vmem:[%s554 + $0x92] sm:$0xff]
        %v1705 = vld [vmem:[%s554 + $0x9a] sm:$0xff]
        %v1706 = vld [vmem:[%s554 + $0xaa] sm:$0xff]
        %v1707 = vld [vmem:[%s554 + $0xb2] sm:$0xff]
        %v1708 = vld [vmem:[%s554 + $0xc2] sm:$0xff]
        %v1709 = vld [vmem:[%s554 + $0xca] sm:$0xff]
        %v1710 = vld [vmem:[%s554 + $0xda] sm:$0xff]
        %v1711 = vld [vmem:[%s554 + $0xe2] sm:$0xff]
        %v1712 = vld [vmem:[%s554 + $0xf2] sm:$0xff]
        %v1713 = vld [vmem:[%s554 + $0xfa] sm:$0xff]
        %v1714 = vld [vmem:[%s554 + $0x10a] sm:$0xff]
        %v1715 = vld [vmem:[%s554 + $0x112] sm:$0xff]
        %v1716 = vld [vmem:[%s554 + $0x122] sm:$0xff]
        %v1717 = vld [vmem:[%s554 + $0x12a] sm:$0xff]
        %v1718 = vld [vmem:[%s554 + $0x13a] sm:$0xff]
        %v1719 = vld [vmem:[%s554 + $0x142] sm:$0xff]
        %v1720 = vld [vmem:[%s554 + $0x152] sm:$0xff]
        %v1721 = vld [vmem:[%s554 + $0x15a] sm:$0xff]
        %v1722 = vld [vmem:[%s554 + $0x16a] sm:$0xff]
        %v1723 = vld [vmem:[%s554 + $0x172] sm:$0xff]
        %v1724 = vpack.c.bf16 %v1693, %v1692
        %v1725 = vpack.c.bf16 %v1695, %v1694
        %v1726 = vpack.c.bf16 %v1697, %v1696
        %v1727 = vpack.c.bf16 %v1699, %v1698
        %v1728 = vpack.c.bf16 %v1701, %v1700
        %v1729 = vpack.c.bf16 %v1703, %v1702
        %v1730 = vpack.c.bf16 %v1705, %v1704
        %v1731 = vpack.c.bf16 %v1707, %v1706
        %v1732 = vpack.c.bf16 %v1709, %v1708
        %v1733 = vpack.c.bf16 %v1711, %v1710
        %v1734 = vpack.c.bf16 %v1713, %v1712
        %v1735 = vpack.c.bf16 %v1715, %v1714
        %v1736 = vpack.c.bf16 %v1717, %v1716
        %v1737 = vpack.c.bf16 %v1719, %v1718
        %v1738 = vpack.c.bf16 %v1721, %v1720
        %v1739 = vpack.c.bf16 %v1723, %v1722
        %s1740 = scalar_lea.vmem [#allocation7], 80
        %v1741 = vld [vmem:[%s1740] sm:$0xf]
        %v1742 = vld [vmem:[%s1740 + $0x4] sm:$0xf]
        %v1743 = vld [vmem:[%s1740 + $0x8] sm:$0xf]
        %v1744 = vld [vmem:[%s1740 + $0xc] sm:$0xf]
        %v1749 = vunpack.c.l.b16 %v1741
        %v1750 = vunpack.c.l.b16 %v1742
        %v1751 = vunpack.c.l.b16 %v1743
        %v1752 = vunpack.c.l.b16 %v1744
        %v1753 = vpack.c.b16 %v1750, %v1749
        %v1754 = vpack.c.b16 %v1752, %v1751
        %v1758 = vsel %vm498, %v1724, 0
        %v1761 = vsel %vm498, %v1725, 0
        %v1764 = vsel %vm498, %v1726, 0
        %v1767 = vsel %vm498, %v1727, 0
        %v1770 = vsel %vm498, %v1728, 0
        %v1773 = vsel %vm498, %v1729, 0
        %v1776 = vsel %vm498, %v1730, 0
        %v1779 = vsel %vm498, %v1731, 0
        %v1782 = vsel %vm498, %v1732, 0
        %v1785 = vsel %vm498, %v1733, 0
        %v1788 = vsel %vm498, %v1734, 0
        %v1791 = vsel %vm498, %v1735, 0
        %v1794 = vsel %vm498, %v1736, 0
        %v1797 = vsel %vm498, %v1737, 0
        %v1800 = vsel %vm498, %v1738, 0
        %v1803 = vsel %vm498, %v1739, 0
        %1805 = vmatpush.bf16.msra.mxu0 0
        %1806 = vmatpush.bf16.msra.mxu0 0
        %1807 = vmatpush.bf16.msra.mxu0 0
        %1808 = vmatpush.bf16.msra.mxu0 0
        %1809 = vmatpush.bf16.msra.mxu0 0
        %1810 = vmatpush.bf16.msra.mxu0 0
        %1811 = vmatpush.bf16.msra.mxu0 %v1754
        %1812 = vmatpush.bf16.msra.mxu0 %v1753
        %1813 = vmatmul.bf16.gmra.mxu0 %v1758
        %v1814 = vpop.f32.mrf.mxu0
        %v1815 = vadd.f32 0.0, %v1814
        %v1816 = vpop.f32.mrf.mxu0
        %v1817 = vadd.f32 0.0, %v1816
        %1818 = vmatmul.bf16.gmra.mxu0 %v1761
        %v1819 = vpop.f32.mrf.mxu0
        %v1820 = vadd.f32 0.0, %v1819
        %v1821 = vpop.f32.mrf.mxu0
        %v1822 = vadd.f32 0.0, %v1821
        %1823 = vmatmul.bf16.gmra.mxu0 %v1764
        %v1824 = vpop.f32.mrf.mxu0
        %v1825 = vadd.f32 0.0, %v1824
        %v1826 = vpop.f32.mrf.mxu0
        %v1827 = vadd.f32 0.0, %v1826
        %1828 = vmatmul.bf16.gmra.mxu0 %v1767
        %v1829 = vpop.f32.mrf.mxu0
        %v1830 = vadd.f32 0.0, %v1829
        %v1831 = vpop.f32.mrf.mxu0
        %v1832 = vadd.f32 0.0, %v1831
        %1833 = vmatmul.bf16.gmra.mxu0 %v1770
        %v1834 = vpop.f32.mrf.mxu0
        %v1835 = vadd.f32 0.0, %v1834
        %v1836 = vpop.f32.mrf.mxu0
        %v1837 = vadd.f32 0.0, %v1836
        %1838 = vmatmul.bf16.gmra.mxu0 %v1773
        %v1839 = vpop.f32.mrf.mxu0
        %v1840 = vadd.f32 0.0, %v1839
        %v1841 = vpop.f32.mrf.mxu0
        %v1842 = vadd.f32 0.0, %v1841
        %1843 = vmatmul.bf16.gmra.mxu0 %v1776
        %v1844 = vpop.f32.mrf.mxu0
        %v1845 = vadd.f32 0.0, %v1844
        %v1846 = vpop.f32.mrf.mxu0
        %v1847 = vadd.f32 0.0, %v1846
        %1848 = vmatmul.bf16.gmra.mxu0 %v1779
        %v1849 = vpop.f32.mrf.mxu0
        %v1850 = vadd.f32 0.0, %v1849
        %v1851 = vpop.f32.mrf.mxu0
        %v1852 = vadd.f32 0.0, %v1851
        %1853 = vmatmul.bf16.gmra.mxu0 %v1782
        %v1854 = vpop.f32.mrf.mxu0
        %v1855 = vadd.f32 0.0, %v1854
        %v1856 = vpop.f32.mrf.mxu0
        %v1857 = vadd.f32 0.0, %v1856
        %1858 = vmatmul.bf16.gmra.mxu0 %v1785
        %v1859 = vpop.f32.mrf.mxu0
        %v1860 = vadd.f32 0.0, %v1859
        %v1861 = vpop.f32.mrf.mxu0
        %v1862 = vadd.f32 0.0, %v1861
        %1863 = vmatmul.bf16.gmra.mxu0 %v1788
        %v1864 = vpop.f32.mrf.mxu0
        %v1865 = vadd.f32 0.0, %v1864
        %v1866 = vpop.f32.mrf.mxu0
        %v1867 = vadd.f32 0.0, %v1866
        %1868 = vmatmul.bf16.gmra.mxu0 %v1791
        %v1869 = vpop.f32.mrf.mxu0
        %v1870 = vadd.f32 0.0, %v1869
        %v1871 = vpop.f32.mrf.mxu0
        %v1872 = vadd.f32 0.0, %v1871
        %1873 = vmatmul.bf16.gmra.mxu0 %v1794
        %v1874 = vpop.f32.mrf.mxu0
        %v1875 = vadd.f32 0.0, %v1874
        %v1876 = vpop.f32.mrf.mxu0
        %v1877 = vadd.f32 0.0, %v1876
        %1878 = vmatmul.bf16.gmra.mxu0 %v1797
        %v1879 = vpop.f32.mrf.mxu0
        %v1880 = vadd.f32 0.0, %v1879
        %v1881 = vpop.f32.mrf.mxu0
        %v1882 = vadd.f32 0.0, %v1881
        %1883 = vmatmul.bf16.gmra.mxu0 %v1800
        %v1884 = vpop.f32.mrf.mxu0
        %v1885 = vadd.f32 0.0, %v1884
        %v1886 = vpop.f32.mrf.mxu0
        %v1887 = vadd.f32 0.0, %v1886
        %1888 = vmatmul.bf16.gmra.mxu0 %v1803
        %v1889 = vpop.f32.mrf.mxu0
        %v1890 = vadd.f32 0.0, %v1889
        %v1891 = vpop.f32.mrf.mxu0
        %v1892 = vadd.f32 0.0, %v1891
        %1893 = vdwg.mxu0
        %v1894 = vadd.f32 %v1660, %v1815
        %v1895 = vadd.f32 %v1661, %v1817
        %v1896 = vadd.f32 %v1662, %v1820
        %v1897 = vadd.f32 %v1663, %v1822
        %v1898 = vadd.f32 %v1664, %v1825
        %v1899 = vadd.f32 %v1665, %v1827
        %v1900 = vadd.f32 %v1666, %v1830
        %v1901 = vadd.f32 %v1667, %v1832
        %v1902 = vadd.f32 %v1668, %v1835
        %v1903 = vadd.f32 %v1669, %v1837
        %v1904 = vadd.f32 %v1670, %v1840
        %v1905 = vadd.f32 %v1671, %v1842
        %v1906 = vadd.f32 %v1672, %v1845
        %v1907 = vadd.f32 %v1673, %v1847
        %v1908 = vadd.f32 %v1674, %v1850
        %v1909 = vadd.f32 %v1675, %v1852
        %v1910 = vadd.f32 %v1676, %v1855
        %v1911 = vadd.f32 %v1677, %v1857
        %v1912 = vadd.f32 %v1678, %v1860
        %v1913 = vadd.f32 %v1679, %v1862
        %v1914 = vadd.f32 %v1680, %v1865
        %v1915 = vadd.f32 %v1681, %v1867
        %v1916 = vadd.f32 %v1682, %v1870
        %v1917 = vadd.f32 %v1683, %v1872
        %v1918 = vadd.f32 %v1684, %v1875
        %v1919 = vadd.f32 %v1685, %v1877
        %v1920 = vadd.f32 %v1686, %v1880
        %v1921 = vadd.f32 %v1687, %v1882
        %v1922 = vadd.f32 %v1688, %v1885
        %v1923 = vadd.f32 %v1689, %v1887
        %v1924 = vadd.f32 %v1690, %v1890
        %v1925 = vadd.f32 %v1691, %v1892
        %s1926 = scalar_lea.vmem [#allocation2], 48
        %v1927 = vld [vmem:[%s1926] sm:$0xff]
        %v1928 = vld [vmem:[%s1926 + $0x8] sm:$0xff]
        %v1929 = vld [vmem:[%s1926 + $0x18] sm:$0xff]
        %v1930 = vld [vmem:[%s1926 + $0x20] sm:$0xff]
        %v1931 = vld [vmem:[%s1926 + $0x30] sm:$0xff]
        %v1932 = vld [vmem:[%s1926 + $0x38] sm:$0xff]
        %v1933 = vld [vmem:[%s1926 + $0x48] sm:$0xff]
        %v1934 = vld [vmem:[%s1926 + $0x50] sm:$0xff]
        %v1935 = vld [vmem:[%s1926 + $0x60] sm:$0xff]
        %v1936 = vld [vmem:[%s1926 + $0x68] sm:$0xff]
        %v1937 = vld [vmem:[%s1926 + $0x78] sm:$0xff]
        %v1938 = vld [vmem:[%s1926 + $0x80] sm:$0xff]
        %v1939 = vld [vmem:[%s1926 + $0x90] sm:$0xff]
        %v1940 = vld [vmem:[%s1926 + $0x98] sm:$0xff]
        %v1941 = vld [vmem:[%s1926 + $0xa8] sm:$0xff]
        %v1942 = vld [vmem:[%s1926 + $0xb0] sm:$0xff]
        %v1943 = vld [vmem:[%s1926 + $0xc0] sm:$0xff]
        %v1944 = vld [vmem:[%s1926 + $0xc8] sm:$0xff]
        %v1945 = vld [vmem:[%s1926 + $0xd8] sm:$0xff]
        %v1946 = vld [vmem:[%s1926 + $0xe0] sm:$0xff]
        %v1947 = vld [vmem:[%s1926 + $0xf0] sm:$0xff]
        %v1948 = vld [vmem:[%s1926 + $0xf8] sm:$0xff]
        %v1949 = vld [vmem:[%s1926 + $0x108] sm:$0xff]
        %v1950 = vld [vmem:[%s1926 + $0x110] sm:$0xff]
        %v1951 = vld [vmem:[%s1926 + $0x120] sm:$0xff]
        %v1952 = vld [vmem:[%s1926 + $0x128] sm:$0xff]
        %v1953 = vld [vmem:[%s1926 + $0x138] sm:$0xff]
        %v1954 = vld [vmem:[%s1926 + $0x140] sm:$0xff]
        %v1955 = vld [vmem:[%s1926 + $0x150] sm:$0xff]
        %v1956 = vld [vmem:[%s1926 + $0x158] sm:$0xff]
        %v1957 = vld [vmem:[%s1926 + $0x168] sm:$0xff]
        %v1958 = vld [vmem:[%s1926 + $0x170] sm:$0xff]
        %v1959 = vpack.c.bf16 %v1928, %v1927
        %v1960 = vpack.c.bf16 %v1930, %v1929
        %v1961 = vpack.c.bf16 %v1932, %v1931
        %v1962 = vpack.c.bf16 %v1934, %v1933
        %v1963 = vpack.c.bf16 %v1936, %v1935
        %v1964 = vpack.c.bf16 %v1938, %v1937
        %v1965 = vpack.c.bf16 %v1940, %v1939
        %v1966 = vpack.c.bf16 %v1942, %v1941
        %v1967 = vpack.c.bf16 %v1944, %v1943
        %v1968 = vpack.c.bf16 %v1946, %v1945
        %v1969 = vpack.c.bf16 %v1948, %v1947
        %v1970 = vpack.c.bf16 %v1950, %v1949
        %v1971 = vpack.c.bf16 %v1952, %v1951
        %v1972 = vpack.c.bf16 %v1954, %v1953
        %v1973 = vpack.c.bf16 %v1956, %v1955
        %v1974 = vpack.c.bf16 %v1958, %v1957
        %s1975 = scalar_lea.vmem [#allocation7], 96
        %v1976 = vld [vmem:[%s1975] sm:$0xf]
        %v1977 = vld [vmem:[%s1975 + $0x4] sm:$0xf]
        %v1978 = vld [vmem:[%s1975 + $0x8] sm:$0xf]
        %v1979 = vld [vmem:[%s1975 + $0xc] sm:$0xf]
        %v1984 = vunpack.c.l.b16 %v1976
        %v1985 = vunpack.c.l.b16 %v1977
        %v1986 = vunpack.c.l.b16 %v1978
        %v1987 = vunpack.c.l.b16 %v1979
        %v1988 = vpack.c.b16 %v1985, %v1984
        %v1989 = vpack.c.b16 %v1987, %v1986
        %v1993 = vsel %vm498, %v1959, 0
        %v1996 = vsel %vm498, %v1960, 0
        %v1999 = vsel %vm498, %v1961, 0
        %v2002 = vsel %vm498, %v1962, 0
        %v2005 = vsel %vm498, %v1963, 0
        %v2008 = vsel %vm498, %v1964, 0
        %v2011 = vsel %vm498, %v1965, 0
        %v2014 = vsel %vm498, %v1966, 0
        %v2017 = vsel %vm498, %v1967, 0
        %v2020 = vsel %vm498, %v1968, 0
        %v2023 = vsel %vm498, %v1969, 0
        %v2026 = vsel %vm498, %v1970, 0
        %v2029 = vsel %vm498, %v1971, 0
        %v2032 = vsel %vm498, %v1972, 0
        %v2035 = vsel %vm498, %v1973, 0
        %v2038 = vsel %vm498, %v1974, 0
        %2040 = vmatpush.bf16.msra.mxu0 0
        %2041 = vmatpush.bf16.msra.mxu0 0
        %2042 = vmatpush.bf16.msra.mxu0 0
        %2043 = vmatpush.bf16.msra.mxu0 0
        %2044 = vmatpush.bf16.msra.mxu0 0
        %2045 = vmatpush.bf16.msra.mxu0 0
        %2046 = vmatpush.bf16.msra.mxu0 %v1989
        %2047 = vmatpush.bf16.msra.mxu0 %v1988
        %2048 = vmatmul.bf16.gmra.mxu0 %v1993
        %v2049 = vpop.f32.mrf.mxu0
        %v2050 = vadd.f32 0.0, %v2049
        %v2051 = vpop.f32.mrf.mxu0
        %v2052 = vadd.f32 0.0, %v2051
        %2053 = vmatmul.bf16.gmra.mxu0 %v1996
        %v2054 = vpop.f32.mrf.mxu0
        %v2055 = vadd.f32 0.0, %v2054
        %v2056 = vpop.f32.mrf.mxu0
        %v2057 = vadd.f32 0.0, %v2056
        %2058 = vmatmul.bf16.gmra.mxu0 %v1999
        %v2059 = vpop.f32.mrf.mxu0
        %v2060 = vadd.f32 0.0, %v2059
        %v2061 = vpop.f32.mrf.mxu0
        %v2062 = vadd.f32 0.0, %v2061
        %2063 = vmatmul.bf16.gmra.mxu0 %v2002
        %v2064 = vpop.f32.mrf.mxu0
        %v2065 = vadd.f32 0.0, %v2064
        %v2066 = vpop.f32.mrf.mxu0
        %v2067 = vadd.f32 0.0, %v2066
        %2068 = vmatmul.bf16.gmra.mxu0 %v2005
        %v2069 = vpop.f32.mrf.mxu0
        %v2070 = vadd.f32 0.0, %v2069
        %v2071 = vpop.f32.mrf.mxu0
        %v2072 = vadd.f32 0.0, %v2071
        %2073 = vmatmul.bf16.gmra.mxu0 %v2008
        %v2074 = vpop.f32.mrf.mxu0
        %v2075 = vadd.f32 0.0, %v2074
        %v2076 = vpop.f32.mrf.mxu0
        %v2077 = vadd.f32 0.0, %v2076
        %2078 = vmatmul.bf16.gmra.mxu0 %v2011
        %v2079 = vpop.f32.mrf.mxu0
        %v2080 = vadd.f32 0.0, %v2079
        %v2081 = vpop.f32.mrf.mxu0
        %v2082 = vadd.f32 0.0, %v2081
        %2083 = vmatmul.bf16.gmra.mxu0 %v2014
        %v2084 = vpop.f32.mrf.mxu0
        %v2085 = vadd.f32 0.0, %v2084
        %v2086 = vpop.f32.mrf.mxu0
        %v2087 = vadd.f32 0.0, %v2086
        %2088 = vmatmul.bf16.gmra.mxu0 %v2017
        %v2089 = vpop.f32.mrf.mxu0
        %v2090 = vadd.f32 0.0, %v2089
        %v2091 = vpop.f32.mrf.mxu0
        %v2092 = vadd.f32 0.0, %v2091
        %2093 = vmatmul.bf16.gmra.mxu0 %v2020
        %v2094 = vpop.f32.mrf.mxu0
        %v2095 = vadd.f32 0.0, %v2094
        %v2096 = vpop.f32.mrf.mxu0
        %v2097 = vadd.f32 0.0, %v2096
        %2098 = vmatmul.bf16.gmra.mxu0 %v2023
        %v2099 = vpop.f32.mrf.mxu0
        %v2100 = vadd.f32 0.0, %v2099
        %v2101 = vpop.f32.mrf.mxu0
        %v2102 = vadd.f32 0.0, %v2101
        %2103 = vmatmul.bf16.gmra.mxu0 %v2026
        %v2104 = vpop.f32.mrf.mxu0
        %v2105 = vadd.f32 0.0, %v2104
        %v2106 = vpop.f32.mrf.mxu0
        %v2107 = vadd.f32 0.0, %v2106
        %2108 = vmatmul.bf16.gmra.mxu0 %v2029
        %v2109 = vpop.f32.mrf.mxu0
        %v2110 = vadd.f32 0.0, %v2109
        %v2111 = vpop.f32.mrf.mxu0
        %v2112 = vadd.f32 0.0, %v2111
        %2113 = vmatmul.bf16.gmra.mxu0 %v2032
        %v2114 = vpop.f32.mrf.mxu0
        %v2115 = vadd.f32 0.0, %v2114
        %v2116 = vpop.f32.mrf.mxu0
        %v2117 = vadd.f32 0.0, %v2116
        %2118 = vmatmul.bf16.gmra.mxu0 %v2035
        %v2119 = vpop.f32.mrf.mxu0
        %v2120 = vadd.f32 0.0, %v2119
        %v2121 = vpop.f32.mrf.mxu0
        %v2122 = vadd.f32 0.0, %v2121
        %2123 = vmatmul.bf16.gmra.mxu0 %v2038
        %v2124 = vpop.f32.mrf.mxu0
        %v2125 = vadd.f32 0.0, %v2124
        %v2126 = vpop.f32.mrf.mxu0
        %v2127 = vadd.f32 0.0, %v2126
        %2128 = vdwg.mxu0
        %v2129 = vadd.f32 %v1894, %v2050
        %v2130 = vadd.f32 %v1895, %v2052
        %v2131 = vadd.f32 %v1896, %v2055
        %v2132 = vadd.f32 %v1897, %v2057
        %v2133 = vadd.f32 %v1898, %v2060
        %v2134 = vadd.f32 %v1899, %v2062
        %v2135 = vadd.f32 %v1900, %v2065
        %v2136 = vadd.f32 %v1901, %v2067
        %v2137 = vadd.f32 %v1902, %v2070
        %v2138 = vadd.f32 %v1903, %v2072
        %v2139 = vadd.f32 %v1904, %v2075
        %v2140 = vadd.f32 %v1905, %v2077
        %v2141 = vadd.f32 %v1906, %v2080
        %v2142 = vadd.f32 %v1907, %v2082
        %v2143 = vadd.f32 %v1908, %v2085
        %v2144 = vadd.f32 %v1909, %v2087
        %v2145 = vadd.f32 %v1910, %v2090
        %v2146 = vadd.f32 %v1911, %v2092
        %v2147 = vadd.f32 %v1912, %v2095
        %v2148 = vadd.f32 %v1913, %v2097
        %v2149 = vadd.f32 %v1914, %v2100
        %v2150 = vadd.f32 %v1915, %v2102
        %v2151 = vadd.f32 %v1916, %v2105
        %v2152 = vadd.f32 %v1917, %v2107
        %v2153 = vadd.f32 %v1918, %v2110
        %v2154 = vadd.f32 %v1919, %v2112
        %v2155 = vadd.f32 %v1920, %v2115
        %v2156 = vadd.f32 %v1921, %v2117
        %v2157 = vadd.f32 %v1922, %v2120
        %v2158 = vadd.f32 %v1923, %v2122
        %v2159 = vadd.f32 %v1924, %v2125
        %v2160 = vadd.f32 %v1925, %v2127
        %v2161 = vld [vmem:[%s1926 + $0x1] sm:$0xff]
        %v2162 = vld [vmem:[%s1926 + $0x9] sm:$0xff]
        %v2163 = vld [vmem:[%s1926 + $0x19] sm:$0xff]
        %v2164 = vld [vmem:[%s1926 + $0x21] sm:$0xff]
        %v2165 = vld [vmem:[%s1926 + $0x31] sm:$0xff]
        %v2166 = vld [vmem:[%s1926 + $0x39] sm:$0xff]
        %v2167 = vld [vmem:[%s1926 + $0x49] sm:$0xff]
        %v2168 = vld [vmem:[%s1926 + $0x51] sm:$0xff]
        %v2169 = vld [vmem:[%s1926 + $0x61] sm:$0xff]
        %v2170 = vld [vmem:[%s1926 + $0x69] sm:$0xff]
        %v2171 = vld [vmem:[%s1926 + $0x79] sm:$0xff]
        %v2172 = vld [vmem:[%s1926 + $0x81] sm:$0xff]
        %v2173 = vld [vmem:[%s1926 + $0x91] sm:$0xff]
        %v2174 = vld [vmem:[%s1926 + $0x99] sm:$0xff]
        %v2175 = vld [vmem:[%s1926 + $0xa9] sm:$0xff]
        %v2176 = vld [vmem:[%s1926 + $0xb1] sm:$0xff]
        %v2177 = vld [vmem:[%s1926 + $0xc1] sm:$0xff]
        %v2178 = vld [vmem:[%s1926 + $0xc9] sm:$0xff]
        %v2179 = vld [vmem:[%s1926 + $0xd9] sm:$0xff]
        %v2180 = vld [vmem:[%s1926 + $0xe1] sm:$0xff]
        %v2181 = vld [vmem:[%s1926 + $0xf1] sm:$0xff]
        %v2182 = vld [vmem:[%s1926 + $0xf9] sm:$0xff]
        %v2183 = vld [vmem:[%s1926 + $0x109] sm:$0xff]
        %v2184 = vld [vmem:[%s1926 + $0x111] sm:$0xff]
        %v2185 = vld [vmem:[%s1926 + $0x121] sm:$0xff]
        %v2186 = vld [vmem:[%s1926 + $0x129] sm:$0xff]
        %v2187 = vld [vmem:[%s1926 + $0x139] sm:$0xff]
        %v2188 = vld [vmem:[%s1926 + $0x141] sm:$0xff]
        %v2189 = vld [vmem:[%s1926 + $0x151] sm:$0xff]
        %v2190 = vld [vmem:[%s1926 + $0x159] sm:$0xff]
        %v2191 = vld [vmem:[%s1926 + $0x169] sm:$0xff]
        %v2192 = vld [vmem:[%s1926 + $0x171] sm:$0xff]
        %v2193 = vpack.c.bf16 %v2162, %v2161
        %v2194 = vpack.c.bf16 %v2164, %v2163
        %v2195 = vpack.c.bf16 %v2166, %v2165
        %v2196 = vpack.c.bf16 %v2168, %v2167
        %v2197 = vpack.c.bf16 %v2170, %v2169
        %v2198 = vpack.c.bf16 %v2172, %v2171
        %v2199 = vpack.c.bf16 %v2174, %v2173
        %v2200 = vpack.c.bf16 %v2176, %v2175
        %v2201 = vpack.c.bf16 %v2178, %v2177
        %v2202 = vpack.c.bf16 %v2180, %v2179
        %v2203 = vpack.c.bf16 %v2182, %v2181
        %v2204 = vpack.c.bf16 %v2184, %v2183
        %v2205 = vpack.c.bf16 %v2186, %v2185
        %v2206 = vpack.c.bf16 %v2188, %v2187
        %v2207 = vpack.c.bf16 %v2190, %v2189
        %v2208 = vpack.c.bf16 %v2192, %v2191
        %s2209 = scalar_lea.vmem [#allocation7], 112
        %v2210 = vld [vmem:[%s2209] sm:$0xf]
        %v2211 = vld [vmem:[%s2209 + $0x4] sm:$0xf]
        %v2212 = vld [vmem:[%s2209 + $0x8] sm:$0xf]
        %v2213 = vld [vmem:[%s2209 + $0xc] sm:$0xf]
        %v2218 = vunpack.c.l.b16 %v2210
        %v2219 = vunpack.c.l.b16 %v2211
        %v2220 = vunpack.c.l.b16 %v2212
        %v2221 = vunpack.c.l.b16 %v2213
        %v2222 = vpack.c.b16 %v2219, %v2218
        %v2223 = vpack.c.b16 %v2221, %v2220
        %v2227 = vsel %vm498, %v2193, 0
        %v2230 = vsel %vm498, %v2194, 0
        %v2233 = vsel %vm498, %v2195, 0
        %v2236 = vsel %vm498, %v2196, 0
        %v2239 = vsel %vm498, %v2197, 0
        %v2242 = vsel %vm498, %v2198, 0
        %v2245 = vsel %vm498, %v2199, 0
        %v2248 = vsel %vm498, %v2200, 0
        %v2251 = vsel %vm498, %v2201, 0
        %v2254 = vsel %vm498, %v2202, 0
        %v2257 = vsel %vm498, %v2203, 0
        %v2260 = vsel %vm498, %v2204, 0
        %v2263 = vsel %vm498, %v2205, 0
        %v2266 = vsel %vm498, %v2206, 0
        %v2269 = vsel %vm498, %v2207, 0
        %v2272 = vsel %vm498, %v2208, 0
        %2274 = vmatpush.bf16.msra.mxu0 0
        %2275 = vmatpush.bf16.msra.mxu0 0
        %2276 = vmatpush.bf16.msra.mxu0 0
        %2277 = vmatpush.bf16.msra.mxu0 0
        %2278 = vmatpush.bf16.msra.mxu0 0
        %2279 = vmatpush.bf16.msra.mxu0 0
        %2280 = vmatpush.bf16.msra.mxu0 %v2223
        %2281 = vmatpush.bf16.msra.mxu0 %v2222
        %2282 = vmatmul.bf16.gmra.mxu0 %v2227
        %v2283 = vpop.f32.mrf.mxu0
        %v2284 = vadd.f32 0.0, %v2283
        %v2285 = vpop.f32.mrf.mxu0
        %v2286 = vadd.f32 0.0, %v2285
        %2287 = vmatmul.bf16.gmra.mxu0 %v2230
        %v2288 = vpop.f32.mrf.mxu0
        %v2289 = vadd.f32 0.0, %v2288
        %v2290 = vpop.f32.mrf.mxu0
        %v2291 = vadd.f32 0.0, %v2290
        %2292 = vmatmul.bf16.gmra.mxu0 %v2233
        %v2293 = vpop.f32.mrf.mxu0
        %v2294 = vadd.f32 0.0, %v2293
        %v2295 = vpop.f32.mrf.mxu0
        %v2296 = vadd.f32 0.0, %v2295
        %2297 = vmatmul.bf16.gmra.mxu0 %v2236
        %v2298 = vpop.f32.mrf.mxu0
        %v2299 = vadd.f32 0.0, %v2298
        %v2300 = vpop.f32.mrf.mxu0
        %v2301 = vadd.f32 0.0, %v2300
        %2302 = vmatmul.bf16.gmra.mxu0 %v2239
        %v2303 = vpop.f32.mrf.mxu0
        %v2304 = vadd.f32 0.0, %v2303
        %v2305 = vpop.f32.mrf.mxu0
        %v2306 = vadd.f32 0.0, %v2305
        %2307 = vmatmul.bf16.gmra.mxu0 %v2242
        %v2308 = vpop.f32.mrf.mxu0
        %v2309 = vadd.f32 0.0, %v2308
        %v2310 = vpop.f32.mrf.mxu0
        %v2311 = vadd.f32 0.0, %v2310
        %2312 = vmatmul.bf16.gmra.mxu0 %v2245
        %v2313 = vpop.f32.mrf.mxu0
        %v2314 = vadd.f32 0.0, %v2313
        %v2315 = vpop.f32.mrf.mxu0
        %v2316 = vadd.f32 0.0, %v2315
        %2317 = vmatmul.bf16.gmra.mxu0 %v2248
        %v2318 = vpop.f32.mrf.mxu0
        %v2319 = vadd.f32 0.0, %v2318
        %v2320 = vpop.f32.mrf.mxu0
        %v2321 = vadd.f32 0.0, %v2320
        %2322 = vmatmul.bf16.gmra.mxu0 %v2251
        %v2323 = vpop.f32.mrf.mxu0
        %v2324 = vadd.f32 0.0, %v2323
        %v2325 = vpop.f32.mrf.mxu0
        %v2326 = vadd.f32 0.0, %v2325
        %2327 = vmatmul.bf16.gmra.mxu0 %v2254
        %v2328 = vpop.f32.mrf.mxu0
        %v2329 = vadd.f32 0.0, %v2328
        %v2330 = vpop.f32.mrf.mxu0
        %v2331 = vadd.f32 0.0, %v2330
        %2332 = vmatmul.bf16.gmra.mxu0 %v2257
        %v2333 = vpop.f32.mrf.mxu0
        %v2334 = vadd.f32 0.0, %v2333
        %v2335 = vpop.f32.mrf.mxu0
        %v2336 = vadd.f32 0.0, %v2335
        %2337 = vmatmul.bf16.gmra.mxu0 %v2260
        %v2338 = vpop.f32.mrf.mxu0
        %v2339 = vadd.f32 0.0, %v2338
        %v2340 = vpop.f32.mrf.mxu0
        %v2341 = vadd.f32 0.0, %v2340
        %2342 = vmatmul.bf16.gmra.mxu0 %v2263
        %v2343 = vpop.f32.mrf.mxu0
        %v2344 = vadd.f32 0.0, %v2343
        %v2345 = vpop.f32.mrf.mxu0
        %v2346 = vadd.f32 0.0, %v2345
        %2347 = vmatmul.bf16.gmra.mxu0 %v2266
        %v2348 = vpop.f32.mrf.mxu0
        %v2349 = vadd.f32 0.0, %v2348
        %v2350 = vpop.f32.mrf.mxu0
        %v2351 = vadd.f32 0.0, %v2350
        %2352 = vmatmul.bf16.gmra.mxu0 %v2269
        %v2353 = vpop.f32.mrf.mxu0
        %v2354 = vadd.f32 0.0, %v2353
        %v2355 = vpop.f32.mrf.mxu0
        %v2356 = vadd.f32 0.0, %v2355
        %2357 = vmatmul.bf16.gmra.mxu0 %v2272
        %v2358 = vpop.f32.mrf.mxu0
        %v2359 = vadd.f32 0.0, %v2358
        %v2360 = vpop.f32.mrf.mxu0
        %v2361 = vadd.f32 0.0, %v2360
        %2362 = vdwg.mxu0
        %v2363 = vadd.f32 %v2129, %v2284
        %v2364 = vadd.f32 %v2130, %v2286
        %v2365 = vadd.f32 %v2131, %v2289
        %v2366 = vadd.f32 %v2132, %v2291
        %v2367 = vadd.f32 %v2133, %v2294
        %v2368 = vadd.f32 %v2134, %v2296
        %v2369 = vadd.f32 %v2135, %v2299
        %v2370 = vadd.f32 %v2136, %v2301
        %v2371 = vadd.f32 %v2137, %v2304
        %v2372 = vadd.f32 %v2138, %v2306
        %v2373 = vadd.f32 %v2139, %v2309
        %v2374 = vadd.f32 %v2140, %v2311
        %v2375 = vadd.f32 %v2141, %v2314
        %v2376 = vadd.f32 %v2142, %v2316
        %v2377 = vadd.f32 %v2143, %v2319
        %v2378 = vadd.f32 %v2144, %v2321
        %v2379 = vadd.f32 %v2145, %v2324
        %v2380 = vadd.f32 %v2146, %v2326
        %v2381 = vadd.f32 %v2147, %v2329
        %v2382 = vadd.f32 %v2148, %v2331
        %v2383 = vadd.f32 %v2149, %v2334
        %v2384 = vadd.f32 %v2150, %v2336
        %v2385 = vadd.f32 %v2151, %v2339
        %v2386 = vadd.f32 %v2152, %v2341
        %v2387 = vadd.f32 %v2153, %v2344
        %v2388 = vadd.f32 %v2154, %v2346
        %v2389 = vadd.f32 %v2155, %v2349
        %v2390 = vadd.f32 %v2156, %v2351
        %v2391 = vadd.f32 %v2157, %v2354
        %v2392 = vadd.f32 %v2158, %v2356
        %v2393 = vadd.f32 %v2159, %v2359
        %v2394 = vadd.f32 %v2160, %v2361
        %v2395 = vld [vmem:[%s1926 + $0x2] sm:$0xff]
        %v2396 = vld [vmem:[%s1926 + $0xa] sm:$0xff]
        %v2397 = vld [vmem:[%s1926 + $0x1a] sm:$0xff]
        %v2398 = vld [vmem:[%s1926 + $0x22] sm:$0xff]
        %v2399 = vld [vmem:[%s1926 + $0x32] sm:$0xff]
        %v2400 = vld [vmem:[%s1926 + $0x3a] sm:$0xff]
        %v2401 = vld [vmem:[%s1926 + $0x4a] sm:$0xff]
        %v2402 = vld [vmem:[%s1926 + $0x52] sm:$0xff]
        %v2403 = vld [vmem:[%s1926 + $0x62] sm:$0xff]
        %v2404 = vld [vmem:[%s1926 + $0x6a] sm:$0xff]
        %v2405 = vld [vmem:[%s1926 + $0x7a] sm:$0xff]
        %v2406 = vld [vmem:[%s1926 + $0x82] sm:$0xff]
        %v2407 = vld [vmem:[%s1926 + $0x92] sm:$0xff]
        %v2408 = vld [vmem:[%s1926 + $0x9a] sm:$0xff]
        %v2409 = vld [vmem:[%s1926 + $0xaa] sm:$0xff]
        %v2410 = vld [vmem:[%s1926 + $0xb2] sm:$0xff]
        %v2411 = vld [vmem:[%s1926 + $0xc2] sm:$0xff]
        %v2412 = vld [vmem:[%s1926 + $0xca] sm:$0xff]
        %v2413 = vld [vmem:[%s1926 + $0xda] sm:$0xff]
        %v2414 = vld [vmem:[%s1926 + $0xe2] sm:$0xff]
        %v2415 = vld [vmem:[%s1926 + $0xf2] sm:$0xff]
        %v2416 = vld [vmem:[%s1926 + $0xfa] sm:$0xff]
        %v2417 = vld [vmem:[%s1926 + $0x10a] sm:$0xff]
        %v2418 = vld [vmem:[%s1926 + $0x112] sm:$0xff]
        %v2419 = vld [vmem:[%s1926 + $0x122] sm:$0xff]
        %v2420 = vld [vmem:[%s1926 + $0x12a] sm:$0xff]
        %v2421 = vld [vmem:[%s1926 + $0x13a] sm:$0xff]
        %v2422 = vld [vmem:[%s1926 + $0x142] sm:$0xff]
        %v2423 = vld [vmem:[%s1926 + $0x152] sm:$0xff]
        %v2424 = vld [vmem:[%s1926 + $0x15a] sm:$0xff]
        %v2425 = vld [vmem:[%s1926 + $0x16a] sm:$0xff]
        %v2426 = vld [vmem:[%s1926 + $0x172] sm:$0xff]
        %v2427 = vpack.c.bf16 %v2396, %v2395
        %v2428 = vpack.c.bf16 %v2398, %v2397
        %v2429 = vpack.c.bf16 %v2400, %v2399
        %v2430 = vpack.c.bf16 %v2402, %v2401
        %v2431 = vpack.c.bf16 %v2404, %v2403
        %v2432 = vpack.c.bf16 %v2406, %v2405
        %v2433 = vpack.c.bf16 %v2408, %v2407
        %v2434 = vpack.c.bf16 %v2410, %v2409
        %v2435 = vpack.c.bf16 %v2412, %v2411
        %v2436 = vpack.c.bf16 %v2414, %v2413
        %v2437 = vpack.c.bf16 %v2416, %v2415
        %v2438 = vpack.c.bf16 %v2418, %v2417
        %v2439 = vpack.c.bf16 %v2420, %v2419
        %v2440 = vpack.c.bf16 %v2422, %v2421
        %v2441 = vpack.c.bf16 %v2424, %v2423
        %v2442 = vpack.c.bf16 %v2426, %v2425
        %s2443 = scalar_lea.vmem [#allocation7], 128
        %v2444 = vld [vmem:[%s2443] sm:$0xf]
        %v2445 = vld [vmem:[%s2443 + $0x4] sm:$0xf]
        %v2446 = vld [vmem:[%s2443 + $0x8] sm:$0xf]
        %v2447 = vld [vmem:[%s2443 + $0xc] sm:$0xf]
        %v2452 = vunpack.c.l.b16 %v2444
        %v2453 = vunpack.c.l.b16 %v2445
        %v2454 = vunpack.c.l.b16 %v2446
        %v2455 = vunpack.c.l.b16 %v2447
        %v2456 = vpack.c.b16 %v2453, %v2452
        %v2457 = vpack.c.b16 %v2455, %v2454
        %v2461 = vsel %vm498, %v2427, 0
        %v2464 = vsel %vm498, %v2428, 0
        %v2467 = vsel %vm498, %v2429, 0
        %v2470 = vsel %vm498, %v2430, 0
        %v2473 = vsel %vm498, %v2431, 0
        %v2476 = vsel %vm498, %v2432, 0
        %v2479 = vsel %vm498, %v2433, 0
        %v2482 = vsel %vm498, %v2434, 0
        %v2485 = vsel %vm498, %v2435, 0
        %v2488 = vsel %vm498, %v2436, 0
        %v2491 = vsel %vm498, %v2437, 0
        %v2494 = vsel %vm498, %v2438, 0
        %v2497 = vsel %vm498, %v2439, 0
        %v2500 = vsel %vm498, %v2440, 0
        %v2503 = vsel %vm498, %v2441, 0
        %v2506 = vsel %vm498, %v2442, 0
        %2508 = vmatpush.bf16.msra.mxu0 0
        %2509 = vmatpush.bf16.msra.mxu0 0
        %2510 = vmatpush.bf16.msra.mxu0 0
        %2511 = vmatpush.bf16.msra.mxu0 0
        %2512 = vmatpush.bf16.msra.mxu0 0
        %2513 = vmatpush.bf16.msra.mxu0 0
        %2514 = vmatpush.bf16.msra.mxu0 %v2457
        %2515 = vmatpush.bf16.msra.mxu0 %v2456
        %2516 = vmatmul.bf16.gmra.mxu0 %v2461
        %v2517 = vpop.f32.mrf.mxu0
        %v2518 = vadd.f32 0.0, %v2517
        %v2519 = vpop.f32.mrf.mxu0
        %v2520 = vadd.f32 0.0, %v2519
        %2521 = vmatmul.bf16.gmra.mxu0 %v2464
        %v2522 = vpop.f32.mrf.mxu0
        %v2523 = vadd.f32 0.0, %v2522
        %v2524 = vpop.f32.mrf.mxu0
        %v2525 = vadd.f32 0.0, %v2524
        %2526 = vmatmul.bf16.gmra.mxu0 %v2467
        %v2527 = vpop.f32.mrf.mxu0
        %v2528 = vadd.f32 0.0, %v2527
        %v2529 = vpop.f32.mrf.mxu0
        %v2530 = vadd.f32 0.0, %v2529
        %2531 = vmatmul.bf16.gmra.mxu0 %v2470
        %v2532 = vpop.f32.mrf.mxu0
        %v2533 = vadd.f32 0.0, %v2532
        %v2534 = vpop.f32.mrf.mxu0
        %v2535 = vadd.f32 0.0, %v2534
        %2536 = vmatmul.bf16.gmra.mxu0 %v2473
        %v2537 = vpop.f32.mrf.mxu0
        %v2538 = vadd.f32 0.0, %v2537
        %v2539 = vpop.f32.mrf.mxu0
        %v2540 = vadd.f32 0.0, %v2539
        %2541 = vmatmul.bf16.gmra.mxu0 %v2476
        %v2542 = vpop.f32.mrf.mxu0
        %v2543 = vadd.f32 0.0, %v2542
        %v2544 = vpop.f32.mrf.mxu0
        %v2545 = vadd.f32 0.0, %v2544
        %2546 = vmatmul.bf16.gmra.mxu0 %v2479
        %v2547 = vpop.f32.mrf.mxu0
        %v2548 = vadd.f32 0.0, %v2547
        %v2549 = vpop.f32.mrf.mxu0
        %v2550 = vadd.f32 0.0, %v2549
        %2551 = vmatmul.bf16.gmra.mxu0 %v2482
        %v2552 = vpop.f32.mrf.mxu0
        %v2553 = vadd.f32 0.0, %v2552
        %v2554 = vpop.f32.mrf.mxu0
        %v2555 = vadd.f32 0.0, %v2554
        %2556 = vmatmul.bf16.gmra.mxu0 %v2485
        %v2557 = vpop.f32.mrf.mxu0
        %v2558 = vadd.f32 0.0, %v2557
        %v2559 = vpop.f32.mrf.mxu0
        %v2560 = vadd.f32 0.0, %v2559
        %2561 = vmatmul.bf16.gmra.mxu0 %v2488
        %v2562 = vpop.f32.mrf.mxu0
        %v2563 = vadd.f32 0.0, %v2562
        %v2564 = vpop.f32.mrf.mxu0
        %v2565 = vadd.f32 0.0, %v2564
        %2566 = vmatmul.bf16.gmra.mxu0 %v2491
        %v2567 = vpop.f32.mrf.mxu0
        %v2568 = vadd.f32 0.0, %v2567
        %v2569 = vpop.f32.mrf.mxu0
        %v2570 = vadd.f32 0.0, %v2569
        %2571 = vmatmul.bf16.gmra.mxu0 %v2494
        %v2572 = vpop.f32.mrf.mxu0
        %v2573 = vadd.f32 0.0, %v2572
        %v2574 = vpop.f32.mrf.mxu0
        %v2575 = vadd.f32 0.0, %v2574
        %2576 = vmatmul.bf16.gmra.mxu0 %v2497
        %v2577 = vpop.f32.mrf.mxu0
        %v2578 = vadd.f32 0.0, %v2577
        %v2579 = vpop.f32.mrf.mxu0
        %v2580 = vadd.f32 0.0, %v2579
        %2581 = vmatmul.bf16.gmra.mxu0 %v2500
        %v2582 = vpop.f32.mrf.mxu0
        %v2583 = vadd.f32 0.0, %v2582
        %v2584 = vpop.f32.mrf.mxu0
        %v2585 = vadd.f32 0.0, %v2584
        %2586 = vmatmul.bf16.gmra.mxu0 %v2503
        %v2587 = vpop.f32.mrf.mxu0
        %v2588 = vadd.f32 0.0, %v2587
        %v2589 = vpop.f32.mrf.mxu0
        %v2590 = vadd.f32 0.0, %v2589
        %2591 = vmatmul.bf16.gmra.mxu0 %v2506
        %v2592 = vpop.f32.mrf.mxu0
        %v2593 = vadd.f32 0.0, %v2592
        %v2594 = vpop.f32.mrf.mxu0
        %v2595 = vadd.f32 0.0, %v2594
        %2596 = vdwg.mxu0
        %v2597 = vadd.f32 %v2363, %v2518
        %v2598 = vadd.f32 %v2364, %v2520
        %v2599 = vadd.f32 %v2365, %v2523
        %v2600 = vadd.f32 %v2366, %v2525
        %v2601 = vadd.f32 %v2367, %v2528
        %v2602 = vadd.f32 %v2368, %v2530
        %v2603 = vadd.f32 %v2369, %v2533
        %v2604 = vadd.f32 %v2370, %v2535
        %v2605 = vadd.f32 %v2371, %v2538
        %v2606 = vadd.f32 %v2372, %v2540
        %v2607 = vadd.f32 %v2373, %v2543
        %v2608 = vadd.f32 %v2374, %v2545
        %v2609 = vadd.f32 %v2375, %v2548
        %v2610 = vadd.f32 %v2376, %v2550
        %v2611 = vadd.f32 %v2377, %v2553
        %v2612 = vadd.f32 %v2378, %v2555
        %v2613 = vadd.f32 %v2379, %v2558
        %v2614 = vadd.f32 %v2380, %v2560
        %v2615 = vadd.f32 %v2381, %v2563
        %v2616 = vadd.f32 %v2382, %v2565
        %v2617 = vadd.f32 %v2383, %v2568
        %v2618 = vadd.f32 %v2384, %v2570
        %v2619 = vadd.f32 %v2385, %v2573
        %v2620 = vadd.f32 %v2386, %v2575
        %v2621 = vadd.f32 %v2387, %v2578
        %v2622 = vadd.f32 %v2388, %v2580
        %v2623 = vadd.f32 %v2389, %v2583
        %v2624 = vadd.f32 %v2390, %v2585
        %v2625 = vadd.f32 %v2391, %v2588
        %v2626 = vadd.f32 %v2392, %v2590
        %v2627 = vadd.f32 %v2393, %v2593
        %v2628 = vadd.f32 %v2394, %v2595
        %v2629 = vld [vmem:[%s5] sm:$0x1]
        %v2631 = vperm.slane %v2629, 0
        %v2633 = vmul.f32 %v2597, %v2631
        %v2634 = vmul.f32 %v2598, %v2631
        %v2635 = vmul.f32 %v2599, %v2631
        %v2636 = vmul.f32 %v2600, %v2631
        %v2637 = vmul.f32 %v2601, %v2631
        %v2638 = vmul.f32 %v2602, %v2631
        %v2639 = vmul.f32 %v2603, %v2631
        %v2640 = vmul.f32 %v2604, %v2631
        %v2641 = vmul.f32 %v2605, %v2631
        %v2642 = vmul.f32 %v2606, %v2631
        %v2643 = vmul.f32 %v2607, %v2631
        %v2644 = vmul.f32 %v2608, %v2631
        %v2645 = vmul.f32 %v2609, %v2631
        %v2646 = vmul.f32 %v2610, %v2631
        %v2647 = vmul.f32 %v2611, %v2631
        %v2648 = vmul.f32 %v2612, %v2631
        %v2649 = vmul.f32 %v2613, %v2631
        %v2650 = vmul.f32 %v2614, %v2631
        %v2651 = vmul.f32 %v2615, %v2631
        %v2652 = vmul.f32 %v2616, %v2631
        %v2653 = vmul.f32 %v2617, %v2631
        %v2654 = vmul.f32 %v2618, %v2631
        %v2655 = vmul.f32 %v2619, %v2631
        %v2656 = vmul.f32 %v2620, %v2631
        %v2657 = vmul.f32 %v2621, %v2631
        %v2658 = vmul.f32 %v2622, %v2631
        %v2659 = vmul.f32 %v2623, %v2631
        %v2660 = vmul.f32 %v2624, %v2631
        %v2661 = vmul.f32 %v2625, %v2631
        %v2662 = vmul.f32 %v2626, %v2631
        %v2663 = vmul.f32 %v2627, %v2631
        %v2664 = vmul.f32 %v2628, %v2631
        %v2665 = vld [vmem:[#allocation12] sm:$0x1]
        %v2667 = vperm.slane %v2665, 0
        %v2669 = vadd.f32 %v2633, %v2667
        %v2670 = vadd.f32 %v2634, %v2667
        %v2671 = vadd.f32 %v2635, %v2667
        %v2672 = vadd.f32 %v2636, %v2667
        %v2673 = vadd.f32 %v2637, %v2667
        %v2674 = vadd.f32 %v2638, %v2667
        %v2675 = vadd.f32 %v2639, %v2667
        %v2676 = vadd.f32 %v2640, %v2667
        %v2677 = vadd.f32 %v2641, %v2667
        %v2678 = vadd.f32 %v2642, %v2667
        %v2679 = vadd.f32 %v2643, %v2667
        %v2680 = vadd.f32 %v2644, %v2667
        %v2681 = vadd.f32 %v2645, %v2667
        %v2682 = vadd.f32 %v2646, %v2667
        %v2683 = vadd.f32 %v2647, %v2667
        %v2684 = vadd.f32 %v2648, %v2667
        %v2685 = vadd.f32 %v2649, %v2667
        %v2686 = vadd.f32 %v2650, %v2667
        %v2687 = vadd.f32 %v2651, %v2667
        %v2688 = vadd.f32 %v2652, %v2667
        %v2689 = vadd.f32 %v2653, %v2667
        %v2690 = vadd.f32 %v2654, %v2667
        %v2691 = vadd.f32 %v2655, %v2667
        %v2692 = vadd.f32 %v2656, %v2667
        %v2693 = vadd.f32 %v2657, %v2667
        %v2694 = vadd.f32 %v2658, %v2667
        %v2695 = vadd.f32 %v2659, %v2667
        %v2696 = vadd.f32 %v2660, %v2667
        %v2697 = vadd.f32 %v2661, %v2667
        %v2698 = vadd.f32 %v2662, %v2667
        %v2699 = vadd.f32 %v2663, %v2667
        %v2700 = vadd.f32 %v2664, %v2667
        %v2701 = vmax.f32 %v2669, 0.0
        %v2702 = vmax.f32 %v2670, 0.0
        %v2703 = vmax.f32 %v2671, 0.0
        %v2704 = vmax.f32 %v2672, 0.0
        %v2705 = vmax.f32 %v2673, 0.0
        %v2706 = vmax.f32 %v2674, 0.0
        %v2707 = vmax.f32 %v2675, 0.0
        %v2708 = vmax.f32 %v2676, 0.0
        %v2709 = vmax.f32 %v2677, 0.0
        %v2710 = vmax.f32 %v2678, 0.0
        %v2711 = vmax.f32 %v2679, 0.0
        %v2712 = vmax.f32 %v2680, 0.0
        %v2713 = vmax.f32 %v2681, 0.0
        %v2714 = vmax.f32 %v2682, 0.0
        %v2715 = vmax.f32 %v2683, 0.0
        %v2716 = vmax.f32 %v2684, 0.0
        %v2717 = vmax.f32 %v2685, 0.0
        %v2718 = vmax.f32 %v2686, 0.0
        %v2719 = vmax.f32 %v2687, 0.0
        %v2720 = vmax.f32 %v2688, 0.0
        %v2721 = vmax.f32 %v2689, 0.0
        %v2722 = vmax.f32 %v2690, 0.0
        %v2723 = vmax.f32 %v2691, 0.0
        %v2724 = vmax.f32 %v2692, 0.0
        %v2725 = vmax.f32 %v2693, 0.0
        %v2726 = vmax.f32 %v2694, 0.0
        %v2727 = vmax.f32 %v2695, 0.0
        %v2728 = vmax.f32 %v2696, 0.0
        %v2729 = vmax.f32 %v2697, 0.0
        %v2730 = vmax.f32 %v2698, 0.0
        %v2731 = vmax.f32 %v2699, 0.0
        %v2732 = vmax.f32 %v2700, 0.0
        %2733 = vst.msk [vmem:[#allocation3] sm:$0xff] %vm498, 0.0
        %2734 = vst.msk [vmem:[#allocation3 + $0x8] sm:$0xff] %vm498, 0.0
        %2735 = vst.msk [vmem:[#allocation3 + $0x10] sm:$0x3] %vm501, 0.0
        %2736 = vst.msk [vmem:[#allocation3 + $0x18] sm:$0xff] %vm498, 0.0
        %2737 = vst.msk [vmem:[#allocation3 + $0x20] sm:$0xff] %vm498, 0.0
        %2738 = vst.msk [vmem:[#allocation3 + $0x28] sm:$0x3] %vm501, 0.0
        %2739 = vst.msk [vmem:[#allocation3 + $0x30] sm:$0xff] %vm498, 0.0
        %2740 = vst.msk [vmem:[#allocation3 + $0x38] sm:$0xff] %vm498, 0.0
        %2741 = vst.msk [vmem:[#allocation3 + $0x40] sm:$0x3] %vm501, 0.0
        %2742 = vst.msk [vmem:[#allocation3 + $0x48] sm:$0xff] %vm498, 0.0
        %2743 = vst.msk [vmem:[#allocation3 + $0x50] sm:$0xff] %vm498, 0.0
        %2744 = vst.msk [vmem:[#allocation3 + $0x58] sm:$0x3] %vm501, 0.0
        %2745 = vst.msk [vmem:[#allocation3 + $0x60] sm:$0xff] %vm498, 0.0
        %2746 = vst.msk [vmem:[#allocation3 + $0x68] sm:$0xff] %vm498, 0.0
        %2747 = vst.msk [vmem:[#allocation3 + $0x70] sm:$0x3] %vm501, 0.0
        %2748 = vst.msk [vmem:[#allocation3 + $0x78] sm:$0xff] %vm498, 0.0
        %2749 = vst.msk [vmem:[#allocation3 + $0x80] sm:$0xff] %vm498, 0.0
        %2750 = vst.msk [vmem:[#allocation3 + $0x88] sm:$0x3] %vm501, 0.0
        %2751 = vst.msk [vmem:[#allocation3 + $0x90] sm:$0xff] %vm498, 0.0
        %2752 = vst.msk [vmem:[#allocation3 + $0x98] sm:$0xff] %vm498, 0.0
        %2753 = vst.msk [vmem:[#allocation3 + $0xa0] sm:$0x3] %vm501, 0.0
        %2754 = vst.msk [vmem:[#allocation3 + $0xa8] sm:$0xff] %vm498, 0.0
        %2755 = vst.msk [vmem:[#allocation3 + $0xb0] sm:$0xff] %vm498, 0.0
        %2756 = vst.msk [vmem:[#allocation3 + $0xb8] sm:$0x3] %vm501, 0.0
        %2757 = vst.msk [vmem:[#allocation3 + $0xc0] sm:$0xff] %vm498, 0.0
        %2758 = vst.msk [vmem:[#allocation3 + $0xc8] sm:$0xff] %vm498, 0.0
        %2759 = vst.msk [vmem:[#allocation3 + $0xd0] sm:$0x3] %vm501, 0.0
        %2760 = vst.msk [vmem:[#allocation3 + $0xd8] sm:$0xff] %vm498, 0.0
        %2761 = vst.msk [vmem:[#allocation3 + $0xe0] sm:$0xff] %vm498, 0.0
        %2762 = vst.msk [vmem:[#allocation3 + $0xe8] sm:$0x3] %vm501, 0.0
        %2763 = vst.msk [vmem:[#allocation3 + $0xf0] sm:$0xff] %vm498, 0.0
        %2764 = vst.msk [vmem:[#allocation3 + $0xf8] sm:$0xff] %vm498, 0.0
        %2765 = vst.msk [vmem:[#allocation3 + $0x100] sm:$0x3] %vm501, 0.0
        %2766 = vst.msk [vmem:[#allocation3 + $0x108] sm:$0xff] %vm498, 0.0
        %2767 = vst.msk [vmem:[#allocation3 + $0x110] sm:$0xff] %vm498, 0.0
        %2768 = vst.msk [vmem:[#allocation3 + $0x118] sm:$0x3] %vm501, 0.0
        %2769 = vst.msk [vmem:[#allocation3 + $0x120] sm:$0xff] %vm498, 0.0
        %2770 = vst.msk [vmem:[#allocation3 + $0x128] sm:$0xff] %vm498, 0.0
        %2771 = vst.msk [vmem:[#allocation3 + $0x130] sm:$0x3] %vm501, 0.0
        %2772 = vst.msk [vmem:[#allocation3 + $0x138] sm:$0xff] %vm498, 0.0
        %2773 = vst.msk [vmem:[#allocation3 + $0x140] sm:$0xff] %vm498, 0.0
        %2774 = vst.msk [vmem:[#allocation3 + $0x148] sm:$0x3] %vm501, 0.0
        %2775 = vst.msk [vmem:[#allocation3 + $0x150] sm:$0xff] %vm498, 0.0
        %2776 = vst.msk [vmem:[#allocation3 + $0x158] sm:$0xff] %vm498, 0.0
        %2777 = vst.msk [vmem:[#allocation3 + $0x160] sm:$0x3] %vm501, 0.0
        %2778 = vst.msk [vmem:[#allocation3 + $0x168] sm:$0xff] %vm498, 0.0
        %2779 = vst.msk [vmem:[#allocation3 + $0x170] sm:$0xff] %vm498, 0.0
        %2780 = vst.msk [vmem:[#allocation3 + $0x178] sm:$0x3] %vm501, 0.0
        %2781 = vst.msk [vmem:[#allocation3 + $0x180] sm:$0xff] %vm498, 0.0
        %2782 = vst.msk [vmem:[#allocation3 + $0x188] sm:$0xff] %vm498, 0.0
        %2783 = vst.msk [vmem:[#allocation3 + $0x190] sm:$0x3] %vm501, 0.0
        %2784 = vst.msk [vmem:[#allocation3 + $0x198] sm:$0xff] %vm498, 0.0
        %2785 = vst.msk [vmem:[#allocation3 + $0x1a0] sm:$0xff] %vm498, 0.0
        %2786 = vst.msk [vmem:[#allocation3 + $0x1a8] sm:$0x3] %vm501, 0.0
        %s2787 = scalar_lea.vmem [#allocation3], 24
        %2788 = vst.msk [vmem:[%s2787 + $0x1] sm:$0xff] %vm498, %v2701
        %2789 = vst.msk [vmem:[%s2787 + $0x9] sm:$0xff] %vm498, %v2702
        %2790 = vst.msk [vmem:[%s2787 + $0x19] sm:$0xff] %vm498, %v2703
        %2791 = vst.msk [vmem:[%s2787 + $0x21] sm:$0xff] %vm498, %v2704
        %2792 = vst.msk [vmem:[%s2787 + $0x31] sm:$0xff] %vm498, %v2705
        %2793 = vst.msk [vmem:[%s2787 + $0x39] sm:$0xff] %vm498, %v2706
        %2794 = vst.msk [vmem:[%s2787 + $0x49] sm:$0xff] %vm498, %v2707
        %2795 = vst.msk [vmem:[%s2787 + $0x51] sm:$0xff] %vm498, %v2708
        %2796 = vst.msk [vmem:[%s2787 + $0x61] sm:$0xff] %vm498, %v2709
        %2797 = vst.msk [vmem:[%s2787 + $0x69] sm:$0xff] %vm498, %v2710
        %2798 = vst.msk [vmem:[%s2787 + $0x79] sm:$0xff] %vm498, %v2711
        %2799 = vst.msk [vmem:[%s2787 + $0x81] sm:$0xff] %vm498, %v2712
        %2800 = vst.msk [vmem:[%s2787 + $0x91] sm:$0xff] %vm498, %v2713
        %2801 = vst.msk [vmem:[%s2787 + $0x99] sm:$0xff] %vm498, %v2714
        %2802 = vst.msk [vmem:[%s2787 + $0xa9] sm:$0xff] %vm498, %v2715
        %2803 = vst.msk [vmem:[%s2787 + $0xb1] sm:$0xff] %vm498, %v2716
        %2804 = vst.msk [vmem:[%s2787 + $0xc1] sm:$0xff] %vm498, %v2717
        %2805 = vst.msk [vmem:[%s2787 + $0xc9] sm:$0xff] %vm498, %v2718
        %2806 = vst.msk [vmem:[%s2787 + $0xd9] sm:$0xff] %vm498, %v2719
        %2807 = vst.msk [vmem:[%s2787 + $0xe1] sm:$0xff] %vm498, %v2720
        %2808 = vst.msk [vmem:[%s2787 + $0xf1] sm:$0xff] %vm498, %v2721
        %2809 = vst.msk [vmem:[%s2787 + $0xf9] sm:$0xff] %vm498, %v2722
        %2810 = vst.msk [vmem:[%s2787 + $0x109] sm:$0xff] %vm498, %v2723
        %2811 = vst.msk [vmem:[%s2787 + $0x111] sm:$0xff] %vm498, %v2724
        %2812 = vst.msk [vmem:[%s2787 + $0x121] sm:$0xff] %vm498, %v2725
        %2813 = vst.msk [vmem:[%s2787 + $0x129] sm:$0xff] %vm498, %v2726
        %2814 = vst.msk [vmem:[%s2787 + $0x139] sm:$0xff] %vm498, %v2727
        %2815 = vst.msk [vmem:[%s2787 + $0x141] sm:$0xff] %vm498, %v2728
        %2816 = vst.msk [vmem:[%s2787 + $0x151] sm:$0xff] %vm498, %v2729
        %2817 = vst.msk [vmem:[%s2787 + $0x159] sm:$0xff] %vm498, %v2730
        %2818 = vst.msk [vmem:[%s2787 + $0x169] sm:$0xff] %vm498, %v2731
        %2819 = vst.msk [vmem:[%s2787 + $0x171] sm:$0xff] %vm498, %v2732
        %v2820 = vld [vmem:[#allocation3] sm:$0xff]
        %v2821 = vld [vmem:[#allocation3 + $0x8] sm:$0xff]
        %v2822 = vld [vmem:[#allocation3 + $0x18] sm:$0xff]
        %v2823 = vld [vmem:[#allocation3 + $0x20] sm:$0xff]
        %v2824 = vld [vmem:[#allocation3 + $0x30] sm:$0xff]
        %v2825 = vld [vmem:[#allocation3 + $0x38] sm:$0xff]
        %v2826 = vld [vmem:[#allocation3 + $0x48] sm:$0xff]
        %v2827 = vld [vmem:[#allocation3 + $0x50] sm:$0xff]
        %v2828 = vld [vmem:[#allocation3 + $0x60] sm:$0xff]
        %v2829 = vld [vmem:[#allocation3 + $0x68] sm:$0xff]
        %v2830 = vld [vmem:[#allocation3 + $0x78] sm:$0xff]
        %v2831 = vld [vmem:[#allocation3 + $0x80] sm:$0xff]
        %v2832 = vld [vmem:[#allocation3 + $0x90] sm:$0xff]
        %v2833 = vld [vmem:[#allocation3 + $0x98] sm:$0xff]
        %v2834 = vld [vmem:[#allocation3 + $0xa8] sm:$0xff]
        %v2835 = vld [vmem:[#allocation3 + $0xb0] sm:$0xff]
        %v2836 = vld [vmem:[#allocation3 + $0xc0] sm:$0xff]
        %v2837 = vld [vmem:[#allocation3 + $0xc8] sm:$0xff]
        %v2838 = vld [vmem:[#allocation3 + $0xd8] sm:$0xff]
        %v2839 = vld [vmem:[#allocation3 + $0xe0] sm:$0xff]
        %v2840 = vld [vmem:[#allocation3 + $0xf0] sm:$0xff]
        %v2841 = vld [vmem:[#allocation3 + $0xf8] sm:$0xff]
        %v2842 = vld [vmem:[#allocation3 + $0x108] sm:$0xff]
        %v2843 = vld [vmem:[#allocation3 + $0x110] sm:$0xff]
        %v2844 = vld [vmem:[#allocation3 + $0x120] sm:$0xff]
        %v2845 = vld [vmem:[#allocation3 + $0x128] sm:$0xff]
        %v2846 = vld [vmem:[#allocation3 + $0x138] sm:$0xff]
        %v2847 = vld [vmem:[#allocation3 + $0x140] sm:$0xff]
        %v2848 = vld [vmem:[#allocation3 + $0x150] sm:$0xff]
        %v2849 = vld [vmem:[#allocation3 + $0x158] sm:$0xff]
        %v2850 = vld [vmem:[#allocation3 + $0x168] sm:$0xff]
        %v2851 = vld [vmem:[#allocation3 + $0x170] sm:$0xff]
        %v2852 = vpack.c.bf16 %v2821, %v2820
        %v2853 = vpack.c.bf16 %v2823, %v2822
        %v2854 = vpack.c.bf16 %v2825, %v2824
        %v2855 = vpack.c.bf16 %v2827, %v2826
        %v2856 = vpack.c.bf16 %v2829, %v2828
        %v2857 = vpack.c.bf16 %v2831, %v2830
        %v2858 = vpack.c.bf16 %v2833, %v2832
        %v2859 = vpack.c.bf16 %v2835, %v2834
        %v2860 = vpack.c.bf16 %v2837, %v2836
        %v2861 = vpack.c.bf16 %v2839, %v2838
        %v2862 = vpack.c.bf16 %v2841, %v2840
        %v2863 = vpack.c.bf16 %v2843, %v2842
        %v2864 = vpack.c.bf16 %v2845, %v2844
        %v2865 = vpack.c.bf16 %v2847, %v2846
        %v2866 = vpack.c.bf16 %v2849, %v2848
        %v2867 = vpack.c.bf16 %v2851, %v2850
        %v2868 = vld [vmem:[#allocation9] sm:$0xf]
        %v2869 = vld [vmem:[#allocation9 + $0x4] sm:$0xf]
        %v2870 = vld [vmem:[#allocation9 + $0x8] sm:$0xf]
        %v2871 = vld [vmem:[#allocation9 + $0xc] sm:$0xf]
        %v2872 = vld [vmem:[#allocation3 + $0x1] sm:$0xff]
        %v2873 = vld [vmem:[#allocation3 + $0x9] sm:$0xff]
        %v2874 = vld [vmem:[#allocation3 + $0x19] sm:$0xff]
        %v2875 = vld [vmem:[#allocation3 + $0x21] sm:$0xff]
        %v2876 = vld [vmem:[#allocation3 + $0x31] sm:$0xff]
        %v2877 = vld [vmem:[#allocation3 + $0x39] sm:$0xff]
        %v2878 = vld [vmem:[#allocation3 + $0x49] sm:$0xff]
        %v2879 = vld [vmem:[#allocation3 + $0x51] sm:$0xff]
        %v2880 = vld [vmem:[#allocation3 + $0x61] sm:$0xff]
        %v2881 = vld [vmem:[#allocation3 + $0x69] sm:$0xff]
        %v2882 = vld [vmem:[#allocation3 + $0x79] sm:$0xff]
        %v2883 = vld [vmem:[#allocation3 + $0x81] sm:$0xff]
        %v2884 = vld [vmem:[#allocation3 + $0x91] sm:$0xff]
        %v2885 = vld [vmem:[#allocation3 + $0x99] sm:$0xff]
        %v2886 = vld [vmem:[#allocation3 + $0xa9] sm:$0xff]
        %v2887 = vld [vmem:[#allocation3 + $0xb1] sm:$0xff]
        %v2888 = vld [vmem:[#allocation3 + $0xc1] sm:$0xff]
        %v2889 = vld [vmem:[#allocation3 + $0xc9] sm:$0xff]
        %v2890 = vld [vmem:[#allocation3 + $0xd9] sm:$0xff]
        %v2891 = vld [vmem:[#allocation3 + $0xe1] sm:$0xff]
        %v2892 = vld [vmem:[#allocation3 + $0xf1] sm:$0xff]
        %v2893 = vld [vmem:[#allocation3 + $0xf9] sm:$0xff]
        %v2894 = vld [vmem:[#allocation3 + $0x109] sm:$0xff]
        %v2895 = vld [vmem:[#allocation3 + $0x111] sm:$0xff]
        %v2896 = vld [vmem:[#allocation3 + $0x121] sm:$0xff]
        %v2897 = vld [vmem:[#allocation3 + $0x129] sm:$0xff]
        %v2898 = vld [vmem:[#allocation3 + $0x139] sm:$0xff]
        %v2899 = vld [vmem:[#allocation3 + $0x141] sm:$0xff]
        %v2900 = vld [vmem:[#allocation3 + $0x151] sm:$0xff]
        %v2901 = vld [vmem:[#allocation3 + $0x159] sm:$0xff]
        %v2902 = vld [vmem:[#allocation3 + $0x169] sm:$0xff]
        %v2903 = vld [vmem:[#allocation3 + $0x171] sm:$0xff]
        %v2904 = vpack.c.bf16 %v2873, %v2872
        %v2905 = vpack.c.bf16 %v2875, %v2874
        %v2906 = vpack.c.bf16 %v2877, %v2876
        %v2907 = vpack.c.bf16 %v2879, %v2878
        %v2908 = vpack.c.bf16 %v2881, %v2880
        %v2909 = vpack.c.bf16 %v2883, %v2882
        %v2910 = vpack.c.bf16 %v2885, %v2884
        %v2911 = vpack.c.bf16 %v2887, %v2886
        %v2912 = vpack.c.bf16 %v2889, %v2888
        %v2913 = vpack.c.bf16 %v2891, %v2890
        %v2914 = vpack.c.bf16 %v2893, %v2892
        %v2915 = vpack.c.bf16 %v2895, %v2894
        %v2916 = vpack.c.bf16 %v2897, %v2896
        %v2917 = vpack.c.bf16 %v2899, %v2898
        %v2918 = vpack.c.bf16 %v2901, %v2900
        %v2919 = vpack.c.bf16 %v2903, %v2902
        %s2920 = scalar_lea.vmem [#allocation9], 16
        %v2921 = vld [vmem:[%s2920] sm:$0xf]
        %v2922 = vld [vmem:[%s2920 + $0x4] sm:$0xf]
        %v2923 = vld [vmem:[%s2920 + $0x8] sm:$0xf]
        %v2924 = vld [vmem:[%s2920 + $0xc] sm:$0xf]
        %v2929 = vunpack.c.l.b16 %v2921
        %v2930 = vunpack.c.l.b16 %v2922
        %v2931 = vunpack.c.l.b16 %v2923
        %v2932 = vunpack.c.l.b16 %v2924
        %v2933 = vpack.c.b16 %v2930, %v2929
        %v2934 = vpack.c.b16 %v2932, %v2931
        %v2938 = vsel %vm498, %v2904, 0
        %v2941 = vsel %vm498, %v2905, 0
        %v2944 = vsel %vm498, %v2906, 0
        %v2947 = vsel %vm498, %v2907, 0
        %v2950 = vsel %vm498, %v2908, 0
        %v2953 = vsel %vm498, %v2909, 0
        %v2956 = vsel %vm498, %v2910, 0
        %v2959 = vsel %vm498, %v2911, 0
        %v2962 = vsel %vm498, %v2912, 0
        %v2965 = vsel %vm498, %v2913, 0
        %v2968 = vsel %vm498, %v2914, 0
        %v2971 = vsel %vm498, %v2915, 0
        %v2974 = vsel %vm498, %v2916, 0
        %v2977 = vsel %vm498, %v2917, 0
        %v2980 = vsel %vm498, %v2918, 0
        %v2983 = vsel %vm498, %v2919, 0
        %2985 = vmatpush.bf16.msra.mxu0 0
        %2986 = vmatpush.bf16.msra.mxu0 0
        %2987 = vmatpush.bf16.msra.mxu0 0
        %2988 = vmatpush.bf16.msra.mxu0 0
        %2989 = vmatpush.bf16.msra.mxu0 0
        %2990 = vmatpush.bf16.msra.mxu0 0
        %2991 = vmatpush.bf16.msra.mxu0 %v2934
        %2992 = vmatpush.bf16.msra.mxu0 %v2933
        %2993 = vmatmul.bf16.gmra.mxu0 %v2938
        %v2994 = vpop.f32.mrf.mxu0
        %v2995 = vadd.f32 0.0, %v2994
        %v2996 = vpop.f32.mrf.mxu0
        %v2997 = vadd.f32 0.0, %v2996
        %2998 = vmatmul.bf16.gmra.mxu0 %v2941
        %v2999 = vpop.f32.mrf.mxu0
        %v3000 = vadd.f32 0.0, %v2999
        %v3001 = vpop.f32.mrf.mxu0
        %v3002 = vadd.f32 0.0, %v3001
        %3003 = vmatmul.bf16.gmra.mxu0 %v2944
        %v3004 = vpop.f32.mrf.mxu0
        %v3005 = vadd.f32 0.0, %v3004
        %v3006 = vpop.f32.mrf.mxu0
        %v3007 = vadd.f32 0.0, %v3006
        %3008 = vmatmul.bf16.gmra.mxu0 %v2947
        %v3009 = vpop.f32.mrf.mxu0
        %v3010 = vadd.f32 0.0, %v3009
        %v3011 = vpop.f32.mrf.mxu0
        %v3012 = vadd.f32 0.0, %v3011
        %3013 = vmatmul.bf16.gmra.mxu0 %v2950
        %v3014 = vpop.f32.mrf.mxu0
        %v3015 = vadd.f32 0.0, %v3014
        %v3016 = vpop.f32.mrf.mxu0
        %v3017 = vadd.f32 0.0, %v3016
        %3018 = vmatmul.bf16.gmra.mxu0 %v2953
        %v3019 = vpop.f32.mrf.mxu0
        %v3020 = vadd.f32 0.0, %v3019
        %v3021 = vpop.f32.mrf.mxu0
        %v3022 = vadd.f32 0.0, %v3021
        %3023 = vmatmul.bf16.gmra.mxu0 %v2956
        %v3024 = vpop.f32.mrf.mxu0
        %v3025 = vadd.f32 0.0, %v3024
        %v3026 = vpop.f32.mrf.mxu0
        %v3027 = vadd.f32 0.0, %v3026
        %3028 = vmatmul.bf16.gmra.mxu0 %v2959
        %v3029 = vpop.f32.mrf.mxu0
        %v3030 = vadd.f32 0.0, %v3029
        %v3031 = vpop.f32.mrf.mxu0
        %v3032 = vadd.f32 0.0, %v3031
        %3033 = vmatmul.bf16.gmra.mxu0 %v2962
        %v3034 = vpop.f32.mrf.mxu0
        %v3035 = vadd.f32 0.0, %v3034
        %v3036 = vpop.f32.mrf.mxu0
        %v3037 = vadd.f32 0.0, %v3036
        %3038 = vmatmul.bf16.gmra.mxu0 %v2965
        %v3039 = vpop.f32.mrf.mxu0
        %v3040 = vadd.f32 0.0, %v3039
        %v3041 = vpop.f32.mrf.mxu0
        %v3042 = vadd.f32 0.0, %v3041
        %3043 = vmatmul.bf16.gmra.mxu0 %v2968
        %v3044 = vpop.f32.mrf.mxu0
        %v3045 = vadd.f32 0.0, %v3044
        %v3046 = vpop.f32.mrf.mxu0
        %v3047 = vadd.f32 0.0, %v3046
        %3048 = vmatmul.bf16.gmra.mxu0 %v2971
        %v3049 = vpop.f32.mrf.mxu0
        %v3050 = vadd.f32 0.0, %v3049
        %v3051 = vpop.f32.mrf.mxu0
        %v3052 = vadd.f32 0.0, %v3051
        %3053 = vmatmul.bf16.gmra.mxu0 %v2974
        %v3054 = vpop.f32.mrf.mxu0
        %v3055 = vadd.f32 0.0, %v3054
        %v3056 = vpop.f32.mrf.mxu0
        %v3057 = vadd.f32 0.0, %v3056
        %3058 = vmatmul.bf16.gmra.mxu0 %v2977
        %v3059 = vpop.f32.mrf.mxu0
        %v3060 = vadd.f32 0.0, %v3059
        %v3061 = vpop.f32.mrf.mxu0
        %v3062 = vadd.f32 0.0, %v3061
        %3063 = vmatmul.bf16.gmra.mxu0 %v2980
        %v3064 = vpop.f32.mrf.mxu0
        %v3065 = vadd.f32 0.0, %v3064
        %v3066 = vpop.f32.mrf.mxu0
        %v3067 = vadd.f32 0.0, %v3066
        %3068 = vmatmul.bf16.gmra.mxu0 %v2983
        %v3069 = vpop.f32.mrf.mxu0
        %v3070 = vadd.f32 0.0, %v3069
        %v3071 = vpop.f32.mrf.mxu0
        %v3072 = vadd.f32 0.0, %v3071
        %3073 = vdwg.mxu0
        %v3078 = vunpack.c.l.b16 %v2868
        %v3079 = vunpack.c.l.b16 %v2869
        %v3080 = vunpack.c.l.b16 %v2870
        %v3081 = vunpack.c.l.b16 %v2871
        %v3082 = vpack.c.b16 %v3079, %v3078
        %v3083 = vpack.c.b16 %v3081, %v3080
        %v3087 = vsel %vm498, %v2852, 0
        %v3090 = vsel %vm498, %v2853, 0
        %v3093 = vsel %vm498, %v2854, 0
        %v3096 = vsel %vm498, %v2855, 0
        %v3099 = vsel %vm498, %v2856, 0
        %v3102 = vsel %vm498, %v2857, 0
        %v3105 = vsel %vm498, %v2858, 0
        %v3108 = vsel %vm498, %v2859, 0
        %v3111 = vsel %vm498, %v2860, 0
        %v3114 = vsel %vm498, %v2861, 0
        %v3117 = vsel %vm498, %v2862, 0
        %v3120 = vsel %vm498, %v2863, 0
        %v3123 = vsel %vm498, %v2864, 0
        %v3126 = vsel %vm498, %v2865, 0
        %v3129 = vsel %vm498, %v2866, 0
        %v3132 = vsel %vm498, %v2867, 0
        %3134 = vmatpush.bf16.msra.mxu0 0
        %3135 = vmatpush.bf16.msra.mxu0 0
        %3136 = vmatpush.bf16.msra.mxu0 0
        %3137 = vmatpush.bf16.msra.mxu0 0
        %3138 = vmatpush.bf16.msra.mxu0 0
        %3139 = vmatpush.bf16.msra.mxu0 0
        %3140 = vmatpush.bf16.msra.mxu0 %v3083
        %3141 = vmatpush.bf16.msra.mxu0 %v3082
        %3142 = vmatmul.bf16.gmra.mxu0 %v3087
        %v3143 = vpop.f32.mrf.mxu0
        %v3144 = vadd.f32 %v2995, %v3143
        %v3145 = vpop.f32.mrf.mxu0
        %v3146 = vadd.f32 %v2997, %v3145
        %3147 = vmatmul.bf16.gmra.mxu0 %v3090
        %v3148 = vpop.f32.mrf.mxu0
        %v3149 = vadd.f32 %v3000, %v3148
        %v3150 = vpop.f32.mrf.mxu0
        %v3151 = vadd.f32 %v3002, %v3150
        %3152 = vmatmul.bf16.gmra.mxu0 %v3093
        %v3153 = vpop.f32.mrf.mxu0
        %v3154 = vadd.f32 %v3005, %v3153
        %v3155 = vpop.f32.mrf.mxu0
        %v3156 = vadd.f32 %v3007, %v3155
        %3157 = vmatmul.bf16.gmra.mxu0 %v3096
        %v3158 = vpop.f32.mrf.mxu0
        %v3159 = vadd.f32 %v3010, %v3158
        %v3160 = vpop.f32.mrf.mxu0
        %v3161 = vadd.f32 %v3012, %v3160
        %3162 = vmatmul.bf16.gmra.mxu0 %v3099
        %v3163 = vpop.f32.mrf.mxu0
        %v3164 = vadd.f32 %v3015, %v3163
        %v3165 = vpop.f32.mrf.mxu0
        %v3166 = vadd.f32 %v3017, %v3165
        %3167 = vmatmul.bf16.gmra.mxu0 %v3102
        %v3168 = vpop.f32.mrf.mxu0
        %v3169 = vadd.f32 %v3020, %v3168
        %v3170 = vpop.f32.mrf.mxu0
        %v3171 = vadd.f32 %v3022, %v3170
        %3172 = vmatmul.bf16.gmra.mxu0 %v3105
        %v3173 = vpop.f32.mrf.mxu0
        %v3174 = vadd.f32 %v3025, %v3173
        %v3175 = vpop.f32.mrf.mxu0
        %v3176 = vadd.f32 %v3027, %v3175
        %3177 = vmatmul.bf16.gmra.mxu0 %v3108
        %v3178 = vpop.f32.mrf.mxu0
        %v3179 = vadd.f32 %v3030, %v3178
        %v3180 = vpop.f32.mrf.mxu0
        %v3181 = vadd.f32 %v3032, %v3180
        %3182 = vmatmul.bf16.gmra.mxu0 %v3111
        %v3183 = vpop.f32.mrf.mxu0
        %v3184 = vadd.f32 %v3035, %v3183
        %v3185 = vpop.f32.mrf.mxu0
        %v3186 = vadd.f32 %v3037, %v3185
        %3187 = vmatmul.bf16.gmra.mxu0 %v3114
        %v3188 = vpop.f32.mrf.mxu0
        %v3189 = vadd.f32 %v3040, %v3188
        %v3190 = vpop.f32.mrf.mxu0
        %v3191 = vadd.f32 %v3042, %v3190
        %3192 = vmatmul.bf16.gmra.mxu0 %v3117
        %v3193 = vpop.f32.mrf.mxu0
        %v3194 = vadd.f32 %v3045, %v3193
        %v3195 = vpop.f32.mrf.mxu0
        %v3196 = vadd.f32 %v3047, %v3195
        %3197 = vmatmul.bf16.gmra.mxu0 %v3120
        %v3198 = vpop.f32.mrf.mxu0
        %v3199 = vadd.f32 %v3050, %v3198
        %v3200 = vpop.f32.mrf.mxu0
        %v3201 = vadd.f32 %v3052, %v3200
        %3202 = vmatmul.bf16.gmra.mxu0 %v3123
        %v3203 = vpop.f32.mrf.mxu0
        %v3204 = vadd.f32 %v3055, %v3203
        %v3205 = vpop.f32.mrf.mxu0
        %v3206 = vadd.f32 %v3057, %v3205
        %3207 = vmatmul.bf16.gmra.mxu0 %v3126
        %v3208 = vpop.f32.mrf.mxu0
        %v3209 = vadd.f32 %v3060, %v3208
        %v3210 = vpop.f32.mrf.mxu0
        %v3211 = vadd.f32 %v3062, %v3210
        %3212 = vmatmul.bf16.gmra.mxu0 %v3129
        %v3213 = vpop.f32.mrf.mxu0
        %v3214 = vadd.f32 %v3065, %v3213
        %v3215 = vpop.f32.mrf.mxu0
        %v3216 = vadd.f32 %v3067, %v3215
        %3217 = vmatmul.bf16.gmra.mxu0 %v3132
        %v3218 = vpop.f32.mrf.mxu0
        %v3219 = vadd.f32 %v3070, %v3218
        %v3220 = vpop.f32.mrf.mxu0
        %v3221 = vadd.f32 %v3072, %v3220
        %3222 = vdwg.mxu0
        %v3223 = vld [vmem:[#allocation3 + $0x2] sm:$0xff]
        %v3224 = vld [vmem:[#allocation3 + $0xa] sm:$0xff]
        %v3225 = vld [vmem:[#allocation3 + $0x1a] sm:$0xff]
        %v3226 = vld [vmem:[#allocation3 + $0x22] sm:$0xff]
        %v3227 = vld [vmem:[#allocation3 + $0x32] sm:$0xff]
        %v3228 = vld [vmem:[#allocation3 + $0x3a] sm:$0xff]
        %v3229 = vld [vmem:[#allocation3 + $0x4a] sm:$0xff]
        %v3230 = vld [vmem:[#allocation3 + $0x52] sm:$0xff]
        %v3231 = vld [vmem:[#allocation3 + $0x62] sm:$0xff]
        %v3232 = vld [vmem:[#allocation3 + $0x6a] sm:$0xff]
        %v3233 = vld [vmem:[#allocation3 + $0x7a] sm:$0xff]
        %v3234 = vld [vmem:[#allocation3 + $0x82] sm:$0xff]
        %v3235 = vld [vmem:[#allocation3 + $0x92] sm:$0xff]
        %v3236 = vld [vmem:[#allocation3 + $0x9a] sm:$0xff]
        %v3237 = vld [vmem:[#allocation3 + $0xaa] sm:$0xff]
        %v3238 = vld [vmem:[#allocation3 + $0xb2] sm:$0xff]
        %v3239 = vld [vmem:[#allocation3 + $0xc2] sm:$0xff]
        %v3240 = vld [vmem:[#allocation3 + $0xca] sm:$0xff]
        %v3241 = vld [vmem:[#allocation3 + $0xda] sm:$0xff]
        %v3242 = vld [vmem:[#allocation3 + $0xe2] sm:$0xff]
        %v3243 = vld [vmem:[#allocation3 + $0xf2] sm:$0xff]
        %v3244 = vld [vmem:[#allocation3 + $0xfa] sm:$0xff]
        %v3245 = vld [vmem:[#allocation3 + $0x10a] sm:$0xff]
        %v3246 = vld [vmem:[#allocation3 + $0x112] sm:$0xff]
        %v3247 = vld [vmem:[#allocation3 + $0x122] sm:$0xff]
        %v3248 = vld [vmem:[#allocation3 + $0x12a] sm:$0xff]
        %v3249 = vld [vmem:[#allocation3 + $0x13a] sm:$0xff]
        %v3250 = vld [vmem:[#allocation3 + $0x142] sm:$0xff]
        %v3251 = vld [vmem:[#allocation3 + $0x152] sm:$0xff]
        %v3252 = vld [vmem:[#allocation3 + $0x15a] sm:$0xff]
        %v3253 = vld [vmem:[#allocation3 + $0x16a] sm:$0xff]
        %v3254 = vld [vmem:[#allocation3 + $0x172] sm:$0xff]
        %v3255 = vpack.c.bf16 %v3224, %v3223
        %v3256 = vpack.c.bf16 %v3226, %v3225
        %v3257 = vpack.c.bf16 %v3228, %v3227
        %v3258 = vpack.c.bf16 %v3230, %v3229
        %v3259 = vpack.c.bf16 %v3232, %v3231
        %v3260 = vpack.c.bf16 %v3234, %v3233
        %v3261 = vpack.c.bf16 %v3236, %v3235
        %v3262 = vpack.c.bf16 %v3238, %v3237
        %v3263 = vpack.c.bf16 %v3240, %v3239
        %v3264 = vpack.c.bf16 %v3242, %v3241
        %v3265 = vpack.c.bf16 %v3244, %v3243
        %v3266 = vpack.c.bf16 %v3246, %v3245
        %v3267 = vpack.c.bf16 %v3248, %v3247
        %v3268 = vpack.c.bf16 %v3250, %v3249
        %v3269 = vpack.c.bf16 %v3252, %v3251
        %v3270 = vpack.c.bf16 %v3254, %v3253
        %s3271 = scalar_lea.vmem [#allocation9], 32
        %v3272 = vld [vmem:[%s3271] sm:$0xf]
        %v3273 = vld [vmem:[%s3271 + $0x4] sm:$0xf]
        %v3274 = vld [vmem:[%s3271 + $0x8] sm:$0xf]
        %v3275 = vld [vmem:[%s3271 + $0xc] sm:$0xf]
        %v3280 = vunpack.c.l.b16 %v3272
        %v3281 = vunpack.c.l.b16 %v3273
        %v3282 = vunpack.c.l.b16 %v3274
        %v3283 = vunpack.c.l.b16 %v3275
        %v3284 = vpack.c.b16 %v3281, %v3280
        %v3285 = vpack.c.b16 %v3283, %v3282
        %v3289 = vsel %vm498, %v3255, 0
        %v3292 = vsel %vm498, %v3256, 0
        %v3295 = vsel %vm498, %v3257, 0
        %v3298 = vsel %vm498, %v3258, 0
        %v3301 = vsel %vm498, %v3259, 0
        %v3304 = vsel %vm498, %v3260, 0
        %v3307 = vsel %vm498, %v3261, 0
        %v3310 = vsel %vm498, %v3262, 0
        %v3313 = vsel %vm498, %v3263, 0
        %v3316 = vsel %vm498, %v3264, 0
        %v3319 = vsel %vm498, %v3265, 0
        %v3322 = vsel %vm498, %v3266, 0
        %v3325 = vsel %vm498, %v3267, 0
        %v3328 = vsel %vm498, %v3268, 0
        %v3331 = vsel %vm498, %v3269, 0
        %v3334 = vsel %vm498, %v3270, 0
        %3336 = vmatpush.bf16.msra.mxu0 0
        %3337 = vmatpush.bf16.msra.mxu0 0
        %3338 = vmatpush.bf16.msra.mxu0 0
        %3339 = vmatpush.bf16.msra.mxu0 0
        %3340 = vmatpush.bf16.msra.mxu0 0
        %3341 = vmatpush.bf16.msra.mxu0 0
        %3342 = vmatpush.bf16.msra.mxu0 %v3285
        %3343 = vmatpush.bf16.msra.mxu0 %v3284
        %3344 = vmatmul.bf16.gmra.mxu0 %v3289
        %v3345 = vpop.f32.mrf.mxu0
        %v3346 = vadd.f32 0.0, %v3345
        %v3347 = vpop.f32.mrf.mxu0
        %v3348 = vadd.f32 0.0, %v3347
        %3349 = vmatmul.bf16.gmra.mxu0 %v3292
        %v3350 = vpop.f32.mrf.mxu0
        %v3351 = vadd.f32 0.0, %v3350
        %v3352 = vpop.f32.mrf.mxu0
        %v3353 = vadd.f32 0.0, %v3352
        %3354 = vmatmul.bf16.gmra.mxu0 %v3295
        %v3355 = vpop.f32.mrf.mxu0
        %v3356 = vadd.f32 0.0, %v3355
        %v3357 = vpop.f32.mrf.mxu0
        %v3358 = vadd.f32 0.0, %v3357
        %3359 = vmatmul.bf16.gmra.mxu0 %v3298
        %v3360 = vpop.f32.mrf.mxu0
        %v3361 = vadd.f32 0.0, %v3360
        %v3362 = vpop.f32.mrf.mxu0
        %v3363 = vadd.f32 0.0, %v3362
        %3364 = vmatmul.bf16.gmra.mxu0 %v3301
        %v3365 = vpop.f32.mrf.mxu0
        %v3366 = vadd.f32 0.0, %v3365
        %v3367 = vpop.f32.mrf.mxu0
        %v3368 = vadd.f32 0.0, %v3367
        %3369 = vmatmul.bf16.gmra.mxu0 %v3304
        %v3370 = vpop.f32.mrf.mxu0
        %v3371 = vadd.f32 0.0, %v3370
        %v3372 = vpop.f32.mrf.mxu0
        %v3373 = vadd.f32 0.0, %v3372
        %3374 = vmatmul.bf16.gmra.mxu0 %v3307
        %v3375 = vpop.f32.mrf.mxu0
        %v3376 = vadd.f32 0.0, %v3375
        %v3377 = vpop.f32.mrf.mxu0
        %v3378 = vadd.f32 0.0, %v3377
        %3379 = vmatmul.bf16.gmra.mxu0 %v3310
        %v3380 = vpop.f32.mrf.mxu0
        %v3381 = vadd.f32 0.0, %v3380
        %v3382 = vpop.f32.mrf.mxu0
        %v3383 = vadd.f32 0.0, %v3382
        %3384 = vmatmul.bf16.gmra.mxu0 %v3313
        %v3385 = vpop.f32.mrf.mxu0
        %v3386 = vadd.f32 0.0, %v3385
        %v3387 = vpop.f32.mrf.mxu0
        %v3388 = vadd.f32 0.0, %v3387
        %3389 = vmatmul.bf16.gmra.mxu0 %v3316
        %v3390 = vpop.f32.mrf.mxu0
        %v3391 = vadd.f32 0.0, %v3390
        %v3392 = vpop.f32.mrf.mxu0
        %v3393 = vadd.f32 0.0, %v3392
        %3394 = vmatmul.bf16.gmra.mxu0 %v3319
        %v3395 = vpop.f32.mrf.mxu0
        %v3396 = vadd.f32 0.0, %v3395
        %v3397 = vpop.f32.mrf.mxu0
        %v3398 = vadd.f32 0.0, %v3397
        %3399 = vmatmul.bf16.gmra.mxu0 %v3322
        %v3400 = vpop.f32.mrf.mxu0
        %v3401 = vadd.f32 0.0, %v3400
        %v3402 = vpop.f32.mrf.mxu0
        %v3403 = vadd.f32 0.0, %v3402
        %3404 = vmatmul.bf16.gmra.mxu0 %v3325
        %v3405 = vpop.f32.mrf.mxu0
        %v3406 = vadd.f32 0.0, %v3405
        %v3407 = vpop.f32.mrf.mxu0
        %v3408 = vadd.f32 0.0, %v3407
        %3409 = vmatmul.bf16.gmra.mxu0 %v3328
        %v3410 = vpop.f32.mrf.mxu0
        %v3411 = vadd.f32 0.0, %v3410
        %v3412 = vpop.f32.mrf.mxu0
        %v3413 = vadd.f32 0.0, %v3412
        %3414 = vmatmul.bf16.gmra.mxu0 %v3331
        %v3415 = vpop.f32.mrf.mxu0
        %v3416 = vadd.f32 0.0, %v3415
        %v3417 = vpop.f32.mrf.mxu0
        %v3418 = vadd.f32 0.0, %v3417
        %3419 = vmatmul.bf16.gmra.mxu0 %v3334
        %v3420 = vpop.f32.mrf.mxu0
        %v3421 = vadd.f32 0.0, %v3420
        %v3422 = vpop.f32.mrf.mxu0
        %v3423 = vadd.f32 0.0, %v3422
        %3424 = vdwg.mxu0
        %v3425 = vadd.f32 %v3144, %v3346
        %v3426 = vadd.f32 %v3146, %v3348
        %v3427 = vadd.f32 %v3149, %v3351
        %v3428 = vadd.f32 %v3151, %v3353
        %v3429 = vadd.f32 %v3154, %v3356
        %v3430 = vadd.f32 %v3156, %v3358
        %v3431 = vadd.f32 %v3159, %v3361
        %v3432 = vadd.f32 %v3161, %v3363
        %v3433 = vadd.f32 %v3164, %v3366
        %v3434 = vadd.f32 %v3166, %v3368
        %v3435 = vadd.f32 %v3169, %v3371
        %v3436 = vadd.f32 %v3171, %v3373
        %v3437 = vadd.f32 %v3174, %v3376
        %v3438 = vadd.f32 %v3176, %v3378
        %v3439 = vadd.f32 %v3179, %v3381
        %v3440 = vadd.f32 %v3181, %v3383
        %v3441 = vadd.f32 %v3184, %v3386
        %v3442 = vadd.f32 %v3186, %v3388
        %v3443 = vadd.f32 %v3189, %v3391
        %v3444 = vadd.f32 %v3191, %v3393
        %v3445 = vadd.f32 %v3194, %v3396
        %v3446 = vadd.f32 %v3196, %v3398
        %v3447 = vadd.f32 %v3199, %v3401
        %v3448 = vadd.f32 %v3201, %v3403
        %v3449 = vadd.f32 %v3204, %v3406
        %v3450 = vadd.f32 %v3206, %v3408
        %v3451 = vadd.f32 %v3209, %v3411
        %v3452 = vadd.f32 %v3211, %v3413
        %v3453 = vadd.f32 %v3214, %v3416
        %v3454 = vadd.f32 %v3216, %v3418
        %v3455 = vadd.f32 %v3219, %v3421
        %v3456 = vadd.f32 %v3221, %v3423
        %v3457 = vld [vmem:[%s2787] sm:$0xff]
        %v3458 = vld [vmem:[%s2787 + $0x8] sm:$0xff]
        %v3459 = vld [vmem:[%s2787 + $0x18] sm:$0xff]
        %v3460 = vld [vmem:[%s2787 + $0x20] sm:$0xff]
        %v3461 = vld [vmem:[%s2787 + $0x30] sm:$0xff]
        %v3462 = vld [vmem:[%s2787 + $0x38] sm:$0xff]
        %v3463 = vld [vmem:[%s2787 + $0x48] sm:$0xff]
        %v3464 = vld [vmem:[%s2787 + $0x50] sm:$0xff]
        %v3465 = vld [vmem:[%s2787 + $0x60] sm:$0xff]
        %v3466 = vld [vmem:[%s2787 + $0x68] sm:$0xff]
        %v3467 = vld [vmem:[%s2787 + $0x78] sm:$0xff]
        %v3468 = vld [vmem:[%s2787 + $0x80] sm:$0xff]
        %v3469 = vld [vmem:[%s2787 + $0x90] sm:$0xff]
        %v3470 = vld [vmem:[%s2787 + $0x98] sm:$0xff]
        %v3471 = vld [vmem:[%s2787 + $0xa8] sm:$0xff]
        %v3472 = vld [vmem:[%s2787 + $0xb0] sm:$0xff]
        %v3473 = vld [vmem:[%s2787 + $0xc0] sm:$0xff]
        %v3474 = vld [vmem:[%s2787 + $0xc8] sm:$0xff]
        %v3475 = vld [vmem:[%s2787 + $0xd8] sm:$0xff]
        %v3476 = vld [vmem:[%s2787 + $0xe0] sm:$0xff]
        %v3477 = vld [vmem:[%s2787 + $0xf0] sm:$0xff]
        %v3478 = vld [vmem:[%s2787 + $0xf8] sm:$0xff]
        %v3479 = vld [vmem:[%s2787 + $0x108] sm:$0xff]
        %v3480 = vld [vmem:[%s2787 + $0x110] sm:$0xff]
        %v3481 = vld [vmem:[%s2787 + $0x120] sm:$0xff]
        %v3482 = vld [vmem:[%s2787 + $0x128] sm:$0xff]
        %v3483 = vld [vmem:[%s2787 + $0x138] sm:$0xff]
        %v3484 = vld [vmem:[%s2787 + $0x140] sm:$0xff]
        %v3485 = vld [vmem:[%s2787 + $0x150] sm:$0xff]
        %v3486 = vld [vmem:[%s2787 + $0x158] sm:$0xff]
        %v3487 = vld [vmem:[%s2787 + $0x168] sm:$0xff]
        %v3488 = vld [vmem:[%s2787 + $0x170] sm:$0xff]
        %v3489 = vpack.c.bf16 %v3458, %v3457
        %v3490 = vpack.c.bf16 %v3460, %v3459
        %v3491 = vpack.c.bf16 %v3462, %v3461
        %v3492 = vpack.c.bf16 %v3464, %v3463
        %v3493 = vpack.c.bf16 %v3466, %v3465
        %v3494 = vpack.c.bf16 %v3468, %v3467
        %v3495 = vpack.c.bf16 %v3470, %v3469
        %v3496 = vpack.c.bf16 %v3472, %v3471
        %v3497 = vpack.c.bf16 %v3474, %v3473
        %v3498 = vpack.c.bf16 %v3476, %v3475
        %v3499 = vpack.c.bf16 %v3478, %v3477
        %v3500 = vpack.c.bf16 %v3480, %v3479
        %v3501 = vpack.c.bf16 %v3482, %v3481
        %v3502 = vpack.c.bf16 %v3484, %v3483
        %v3503 = vpack.c.bf16 %v3486, %v3485
        %v3504 = vpack.c.bf16 %v3488, %v3487
        %s3505 = scalar_lea.vmem [#allocation9], 48
        %v3506 = vld [vmem:[%s3505] sm:$0xf]
        %v3507 = vld [vmem:[%s3505 + $0x4] sm:$0xf]
        %v3508 = vld [vmem:[%s3505 + $0x8] sm:$0xf]
        %v3509 = vld [vmem:[%s3505 + $0xc] sm:$0xf]
        %v3514 = vunpack.c.l.b16 %v3506
        %v3515 = vunpack.c.l.b16 %v3507
        %v3516 = vunpack.c.l.b16 %v3508
        %v3517 = vunpack.c.l.b16 %v3509
        %v3518 = vpack.c.b16 %v3515, %v3514
        %v3519 = vpack.c.b16 %v3517, %v3516
        %v3523 = vsel %vm498, %v3489, 0
        %v3526 = vsel %vm498, %v3490, 0
        %v3529 = vsel %vm498, %v3491, 0
        %v3532 = vsel %vm498, %v3492, 0
        %v3535 = vsel %vm498, %v3493, 0
        %v3538 = vsel %vm498, %v3494, 0
        %v3541 = vsel %vm498, %v3495, 0
        %v3544 = vsel %vm498, %v3496, 0
        %v3547 = vsel %vm498, %v3497, 0
        %v3550 = vsel %vm498, %v3498, 0
        %v3553 = vsel %vm498, %v3499, 0
        %v3556 = vsel %vm498, %v3500, 0
        %v3559 = vsel %vm498, %v3501, 0
        %v3562 = vsel %vm498, %v3502, 0
        %v3565 = vsel %vm498, %v3503, 0
        %v3568 = vsel %vm498, %v3504, 0
        %3570 = vmatpush.bf16.msra.mxu0 0
        %3571 = vmatpush.bf16.msra.mxu0 0
        %3572 = vmatpush.bf16.msra.mxu0 0
        %3573 = vmatpush.bf16.msra.mxu0 0
        %3574 = vmatpush.bf16.msra.mxu0 0
        %3575 = vmatpush.bf16.msra.mxu0 0
        %3576 = vmatpush.bf16.msra.mxu0 %v3519
        %3577 = vmatpush.bf16.msra.mxu0 %v3518
        %3578 = vmatmul.bf16.gmra.mxu0 %v3523
        %v3579 = vpop.f32.mrf.mxu0
        %v3580 = vadd.f32 0.0, %v3579
        %v3581 = vpop.f32.mrf.mxu0
        %v3582 = vadd.f32 0.0, %v3581
        %3583 = vmatmul.bf16.gmra.mxu0 %v3526
        %v3584 = vpop.f32.mrf.mxu0
        %v3585 = vadd.f32 0.0, %v3584
        %v3586 = vpop.f32.mrf.mxu0
        %v3587 = vadd.f32 0.0, %v3586
        %3588 = vmatmul.bf16.gmra.mxu0 %v3529
        %v3589 = vpop.f32.mrf.mxu0
        %v3590 = vadd.f32 0.0, %v3589
        %v3591 = vpop.f32.mrf.mxu0
        %v3592 = vadd.f32 0.0, %v3591
        %3593 = vmatmul.bf16.gmra.mxu0 %v3532
        %v3594 = vpop.f32.mrf.mxu0
        %v3595 = vadd.f32 0.0, %v3594
        %v3596 = vpop.f32.mrf.mxu0
        %v3597 = vadd.f32 0.0, %v3596
        %3598 = vmatmul.bf16.gmra.mxu0 %v3535
        %v3599 = vpop.f32.mrf.mxu0
        %v3600 = vadd.f32 0.0, %v3599
        %v3601 = vpop.f32.mrf.mxu0
        %v3602 = vadd.f32 0.0, %v3601
        %3603 = vmatmul.bf16.gmra.mxu0 %v3538
        %v3604 = vpop.f32.mrf.mxu0
        %v3605 = vadd.f32 0.0, %v3604
        %v3606 = vpop.f32.mrf.mxu0
        %v3607 = vadd.f32 0.0, %v3606
        %3608 = vmatmul.bf16.gmra.mxu0 %v3541
        %v3609 = vpop.f32.mrf.mxu0
        %v3610 = vadd.f32 0.0, %v3609
        %v3611 = vpop.f32.mrf.mxu0
        %v3612 = vadd.f32 0.0, %v3611
        %3613 = vmatmul.bf16.gmra.mxu0 %v3544
        %v3614 = vpop.f32.mrf.mxu0
        %v3615 = vadd.f32 0.0, %v3614
        %v3616 = vpop.f32.mrf.mxu0
        %v3617 = vadd.f32 0.0, %v3616
        %3618 = vmatmul.bf16.gmra.mxu0 %v3547
        %v3619 = vpop.f32.mrf.mxu0
        %v3620 = vadd.f32 0.0, %v3619
        %v3621 = vpop.f32.mrf.mxu0
        %v3622 = vadd.f32 0.0, %v3621
        %3623 = vmatmul.bf16.gmra.mxu0 %v3550
        %v3624 = vpop.f32.mrf.mxu0
        %v3625 = vadd.f32 0.0, %v3624
        %v3626 = vpop.f32.mrf.mxu0
        %v3627 = vadd.f32 0.0, %v3626
        %3628 = vmatmul.bf16.gmra.mxu0 %v3553
        %v3629 = vpop.f32.mrf.mxu0
        %v3630 = vadd.f32 0.0, %v3629
        %v3631 = vpop.f32.mrf.mxu0
        %v3632 = vadd.f32 0.0, %v3631
        %3633 = vmatmul.bf16.gmra.mxu0 %v3556
        %v3634 = vpop.f32.mrf.mxu0
        %v3635 = vadd.f32 0.0, %v3634
        %v3636 = vpop.f32.mrf.mxu0
        %v3637 = vadd.f32 0.0, %v3636
        %3638 = vmatmul.bf16.gmra.mxu0 %v3559
        %v3639 = vpop.f32.mrf.mxu0
        %v3640 = vadd.f32 0.0, %v3639
        %v3641 = vpop.f32.mrf.mxu0
        %v3642 = vadd.f32 0.0, %v3641
        %3643 = vmatmul.bf16.gmra.mxu0 %v3562
        %v3644 = vpop.f32.mrf.mxu0
        %v3645 = vadd.f32 0.0, %v3644
        %v3646 = vpop.f32.mrf.mxu0
        %v3647 = vadd.f32 0.0, %v3646
        %3648 = vmatmul.bf16.gmra.mxu0 %v3565
        %v3649 = vpop.f32.mrf.mxu0
        %v3650 = vadd.f32 0.0, %v3649
        %v3651 = vpop.f32.mrf.mxu0
        %v3652 = vadd.f32 0.0, %v3651
        %3653 = vmatmul.bf16.gmra.mxu0 %v3568
        %v3654 = vpop.f32.mrf.mxu0
        %v3655 = vadd.f32 0.0, %v3654
        %v3656 = vpop.f32.mrf.mxu0
        %v3657 = vadd.f32 0.0, %v3656
        %3658 = vdwg.mxu0
        %v3659 = vadd.f32 %v3425, %v3580
        %v3660 = vadd.f32 %v3426, %v3582
        %v3661 = vadd.f32 %v3427, %v3585
        %v3662 = vadd.f32 %v3428, %v3587
        %v3663 = vadd.f32 %v3429, %v3590
        %v3664 = vadd.f32 %v3430, %v3592
        %v3665 = vadd.f32 %v3431, %v3595
        %v3666 = vadd.f32 %v3432, %v3597
        %v3667 = vadd.f32 %v3433, %v3600
        %v3668 = vadd.f32 %v3434, %v3602
        %v3669 = vadd.f32 %v3435, %v3605
        %v3670 = vadd.f32 %v3436, %v3607
        %v3671 = vadd.f32 %v3437, %v3610
        %v3672 = vadd.f32 %v3438, %v3612
        %v3673 = vadd.f32 %v3439, %v3615
        %v3674 = vadd.f32 %v3440, %v3617
        %v3675 = vadd.f32 %v3441, %v3620
        %v3676 = vadd.f32 %v3442, %v3622
        %v3677 = vadd.f32 %v3443, %v3625
        %v3678 = vadd.f32 %v3444, %v3627
        %v3679 = vadd.f32 %v3445, %v3630
        %v3680 = vadd.f32 %v3446, %v3632
        %v3681 = vadd.f32 %v3447, %v3635
        %v3682 = vadd.f32 %v3448, %v3637
        %v3683 = vadd.f32 %v3449, %v3640
        %v3684 = vadd.f32 %v3450, %v3642
        %v3685 = vadd.f32 %v3451, %v3645
        %v3686 = vadd.f32 %v3452, %v3647
        %v3687 = vadd.f32 %v3453, %v3650
        %v3688 = vadd.f32 %v3454, %v3652
        %v3689 = vadd.f32 %v3455, %v3655
        %v3690 = vadd.f32 %v3456, %v3657
        %v3691 = vld [vmem:[%s2787 + $0x1] sm:$0xff]
        %v3692 = vld [vmem:[%s2787 + $0x9] sm:$0xff]
        %v3693 = vld [vmem:[%s2787 + $0x19] sm:$0xff]
        %v3694 = vld [vmem:[%s2787 + $0x21] sm:$0xff]
        %v3695 = vld [vmem:[%s2787 + $0x31] sm:$0xff]
        %v3696 = vld [vmem:[%s2787 + $0x39] sm:$0xff]
        %v3697 = vld [vmem:[%s2787 + $0x49] sm:$0xff]
        %v3698 = vld [vmem:[%s2787 + $0x51] sm:$0xff]
        %v3699 = vld [vmem:[%s2787 + $0x61] sm:$0xff]
        %v3700 = vld [vmem:[%s2787 + $0x69] sm:$0xff]
        %v3701 = vld [vmem:[%s2787 + $0x79] sm:$0xff]
        %v3702 = vld [vmem:[%s2787 + $0x81] sm:$0xff]
        %v3703 = vld [vmem:[%s2787 + $0x91] sm:$0xff]
        %v3704 = vld [vmem:[%s2787 + $0x99] sm:$0xff]
        %v3705 = vld [vmem:[%s2787 + $0xa9] sm:$0xff]
        %v3706 = vld [vmem:[%s2787 + $0xb1] sm:$0xff]
        %v3707 = vld [vmem:[%s2787 + $0xc1] sm:$0xff]
        %v3708 = vld [vmem:[%s2787 + $0xc9] sm:$0xff]
        %v3709 = vld [vmem:[%s2787 + $0xd9] sm:$0xff]
        %v3710 = vld [vmem:[%s2787 + $0xe1] sm:$0xff]
        %v3711 = vld [vmem:[%s2787 + $0xf1] sm:$0xff]
        %v3712 = vld [vmem:[%s2787 + $0xf9] sm:$0xff]
        %v3713 = vld [vmem:[%s2787 + $0x109] sm:$0xff]
        %v3714 = vld [vmem:[%s2787 + $0x111] sm:$0xff]
        %v3715 = vld [vmem:[%s2787 + $0x121] sm:$0xff]
        %v3716 = vld [vmem:[%s2787 + $0x129] sm:$0xff]
        %v3717 = vld [vmem:[%s2787 + $0x139] sm:$0xff]
        %v3718 = vld [vmem:[%s2787 + $0x141] sm:$0xff]
        %v3719 = vld [vmem:[%s2787 + $0x151] sm:$0xff]
        %v3720 = vld [vmem:[%s2787 + $0x159] sm:$0xff]
        %v3721 = vld [vmem:[%s2787 + $0x169] sm:$0xff]
        %v3722 = vld [vmem:[%s2787 + $0x171] sm:$0xff]
        %v3723 = vpack.c.bf16 %v3692, %v3691
        %v3724 = vpack.c.bf16 %v3694, %v3693
        %v3725 = vpack.c.bf16 %v3696, %v3695
        %v3726 = vpack.c.bf16 %v3698, %v3697
        %v3727 = vpack.c.bf16 %v3700, %v3699
        %v3728 = vpack.c.bf16 %v3702, %v3701
        %v3729 = vpack.c.bf16 %v3704, %v3703
        %v3730 = vpack.c.bf16 %v3706, %v3705
        %v3731 = vpack.c.bf16 %v3708, %v3707
        %v3732 = vpack.c.bf16 %v3710, %v3709
        %v3733 = vpack.c.bf16 %v3712, %v3711
        %v3734 = vpack.c.bf16 %v3714, %v3713
        %v3735 = vpack.c.bf16 %v3716, %v3715
        %v3736 = vpack.c.bf16 %v3718, %v3717
        %v3737 = vpack.c.bf16 %v3720, %v3719
        %v3738 = vpack.c.bf16 %v3722, %v3721
        %s3739 = scalar_lea.vmem [#allocation9], 64
        %v3740 = vld [vmem:[%s3739] sm:$0xf]
        %v3741 = vld [vmem:[%s3739 + $0x4] sm:$0xf]
        %v3742 = vld [vmem:[%s3739 + $0x8] sm:$0xf]
        %v3743 = vld [vmem:[%s3739 + $0xc] sm:$0xf]
        %v3748 = vunpack.c.l.b16 %v3740
        %v3749 = vunpack.c.l.b16 %v3741
        %v3750 = vunpack.c.l.b16 %v3742
        %v3751 = vunpack.c.l.b16 %v3743
        %v3752 = vpack.c.b16 %v3749, %v3748
        %v3753 = vpack.c.b16 %v3751, %v3750
        %v3757 = vsel %vm498, %v3723, 0
        %v3760 = vsel %vm498, %v3724, 0
        %v3763 = vsel %vm498, %v3725, 0
        %v3766 = vsel %vm498, %v3726, 0
        %v3769 = vsel %vm498, %v3727, 0
        %v3772 = vsel %vm498, %v3728, 0
        %v3775 = vsel %vm498, %v3729, 0
        %v3778 = vsel %vm498, %v3730, 0
        %v3781 = vsel %vm498, %v3731, 0
        %v3784 = vsel %vm498, %v3732, 0
        %v3787 = vsel %vm498, %v3733, 0
        %v3790 = vsel %vm498, %v3734, 0
        %v3793 = vsel %vm498, %v3735, 0
        %v3796 = vsel %vm498, %v3736, 0
        %v3799 = vsel %vm498, %v3737, 0
        %v3802 = vsel %vm498, %v3738, 0
        %3804 = vmatpush.bf16.msra.mxu0 0
        %3805 = vmatpush.bf16.msra.mxu0 0
        %3806 = vmatpush.bf16.msra.mxu0 0
        %3807 = vmatpush.bf16.msra.mxu0 0
        %3808 = vmatpush.bf16.msra.mxu0 0
        %3809 = vmatpush.bf16.msra.mxu0 0
        %3810 = vmatpush.bf16.msra.mxu0 %v3753
        %3811 = vmatpush.bf16.msra.mxu0 %v3752
        %3812 = vmatmul.bf16.gmra.mxu0 %v3757
        %v3813 = vpop.f32.mrf.mxu0
        %v3814 = vadd.f32 0.0, %v3813
        %v3815 = vpop.f32.mrf.mxu0
        %v3816 = vadd.f32 0.0, %v3815
        %3817 = vmatmul.bf16.gmra.mxu0 %v3760
        %v3818 = vpop.f32.mrf.mxu0
        %v3819 = vadd.f32 0.0, %v3818
        %v3820 = vpop.f32.mrf.mxu0
        %v3821 = vadd.f32 0.0, %v3820
        %3822 = vmatmul.bf16.gmra.mxu0 %v3763
        %v3823 = vpop.f32.mrf.mxu0
        %v3824 = vadd.f32 0.0, %v3823
        %v3825 = vpop.f32.mrf.mxu0
        %v3826 = vadd.f32 0.0, %v3825
        %3827 = vmatmul.bf16.gmra.mxu0 %v3766
        %v3828 = vpop.f32.mrf.mxu0
        %v3829 = vadd.f32 0.0, %v3828
        %v3830 = vpop.f32.mrf.mxu0
        %v3831 = vadd.f32 0.0, %v3830
        %3832 = vmatmul.bf16.gmra.mxu0 %v3769
        %v3833 = vpop.f32.mrf.mxu0
        %v3834 = vadd.f32 0.0, %v3833
        %v3835 = vpop.f32.mrf.mxu0
        %v3836 = vadd.f32 0.0, %v3835
        %3837 = vmatmul.bf16.gmra.mxu0 %v3772
        %v3838 = vpop.f32.mrf.mxu0
        %v3839 = vadd.f32 0.0, %v3838
        %v3840 = vpop.f32.mrf.mxu0
        %v3841 = vadd.f32 0.0, %v3840
        %3842 = vmatmul.bf16.gmra.mxu0 %v3775
        %v3843 = vpop.f32.mrf.mxu0
        %v3844 = vadd.f32 0.0, %v3843
        %v3845 = vpop.f32.mrf.mxu0
        %v3846 = vadd.f32 0.0, %v3845
        %3847 = vmatmul.bf16.gmra.mxu0 %v3778
        %v3848 = vpop.f32.mrf.mxu0
        %v3849 = vadd.f32 0.0, %v3848
        %v3850 = vpop.f32.mrf.mxu0
        %v3851 = vadd.f32 0.0, %v3850
        %3852 = vmatmul.bf16.gmra.mxu0 %v3781
        %v3853 = vpop.f32.mrf.mxu0
        %v3854 = vadd.f32 0.0, %v3853
        %v3855 = vpop.f32.mrf.mxu0
        %v3856 = vadd.f32 0.0, %v3855
        %3857 = vmatmul.bf16.gmra.mxu0 %v3784
        %v3858 = vpop.f32.mrf.mxu0
        %v3859 = vadd.f32 0.0, %v3858
        %v3860 = vpop.f32.mrf.mxu0
        %v3861 = vadd.f32 0.0, %v3860
        %3862 = vmatmul.bf16.gmra.mxu0 %v3787
        %v3863 = vpop.f32.mrf.mxu0
        %v3864 = vadd.f32 0.0, %v3863
        %v3865 = vpop.f32.mrf.mxu0
        %v3866 = vadd.f32 0.0, %v3865
        %3867 = vmatmul.bf16.gmra.mxu0 %v3790
        %v3868 = vpop.f32.mrf.mxu0
        %v3869 = vadd.f32 0.0, %v3868
        %v3870 = vpop.f32.mrf.mxu0
        %v3871 = vadd.f32 0.0, %v3870
        %3872 = vmatmul.bf16.gmra.mxu0 %v3793
        %v3873 = vpop.f32.mrf.mxu0
        %v3874 = vadd.f32 0.0, %v3873
        %v3875 = vpop.f32.mrf.mxu0
        %v3876 = vadd.f32 0.0, %v3875
        %3877 = vmatmul.bf16.gmra.mxu0 %v3796
        %v3878 = vpop.f32.mrf.mxu0
        %v3879 = vadd.f32 0.0, %v3878
        %v3880 = vpop.f32.mrf.mxu0
        %v3881 = vadd.f32 0.0, %v3880
        %3882 = vmatmul.bf16.gmra.mxu0 %v3799
        %v3883 = vpop.f32.mrf.mxu0
        %v3884 = vadd.f32 0.0, %v3883
        %v3885 = vpop.f32.mrf.mxu0
        %v3886 = vadd.f32 0.0, %v3885
        %3887 = vmatmul.bf16.gmra.mxu0 %v3802
        %v3888 = vpop.f32.mrf.mxu0
        %v3889 = vadd.f32 0.0, %v3888
        %v3890 = vpop.f32.mrf.mxu0
        %v3891 = vadd.f32 0.0, %v3890
        %3892 = vdwg.mxu0
        %v3893 = vadd.f32 %v3659, %v3814
        %v3894 = vadd.f32 %v3660, %v3816
        %v3895 = vadd.f32 %v3661, %v3819
        %v3896 = vadd.f32 %v3662, %v3821
        %v3897 = vadd.f32 %v3663, %v3824
        %v3898 = vadd.f32 %v3664, %v3826
        %v3899 = vadd.f32 %v3665, %v3829
        %v3900 = vadd.f32 %v3666, %v3831
        %v3901 = vadd.f32 %v3667, %v3834
        %v3902 = vadd.f32 %v3668, %v3836
        %v3903 = vadd.f32 %v3669, %v3839
        %v3904 = vadd.f32 %v3670, %v3841
        %v3905 = vadd.f32 %v3671, %v3844
        %v3906 = vadd.f32 %v3672, %v3846
        %v3907 = vadd.f32 %v3673, %v3849
        %v3908 = vadd.f32 %v3674, %v3851
        %v3909 = vadd.f32 %v3675, %v3854
        %v3910 = vadd.f32 %v3676, %v3856
        %v3911 = vadd.f32 %v3677, %v3859
        %v3912 = vadd.f32 %v3678, %v3861
        %v3913 = vadd.f32 %v3679, %v3864
        %v3914 = vadd.f32 %v3680, %v3866
        %v3915 = vadd.f32 %v3681, %v3869
        %v3916 = vadd.f32 %v3682, %v3871
        %v3917 = vadd.f32 %v3683, %v3874
        %v3918 = vadd.f32 %v3684, %v3876
        %v3919 = vadd.f32 %v3685, %v3879
        %v3920 = vadd.f32 %v3686, %v3881
        %v3921 = vadd.f32 %v3687, %v3884
        %v3922 = vadd.f32 %v3688, %v3886
        %v3923 = vadd.f32 %v3689, %v3889
        %v3924 = vadd.f32 %v3690, %v3891
        %v3925 = vld [vmem:[%s2787 + $0x2] sm:$0xff]
        %v3926 = vld [vmem:[%s2787 + $0xa] sm:$0xff]
        %v3927 = vld [vmem:[%s2787 + $0x1a] sm:$0xff]
        %v3928 = vld [vmem:[%s2787 + $0x22] sm:$0xff]
        %v3929 = vld [vmem:[%s2787 + $0x32] sm:$0xff]
        %v3930 = vld [vmem:[%s2787 + $0x3a] sm:$0xff]
        %v3931 = vld [vmem:[%s2787 + $0x4a] sm:$0xff]
        %v3932 = vld [vmem:[%s2787 + $0x52] sm:$0xff]
        %v3933 = vld [vmem:[%s2787 + $0x62] sm:$0xff]
        %v3934 = vld [vmem:[%s2787 + $0x6a] sm:$0xff]
        %v3935 = vld [vmem:[%s2787 + $0x7a] sm:$0xff]
        %v3936 = vld [vmem:[%s2787 + $0x82] sm:$0xff]
        %v3937 = vld [vmem:[%s2787 + $0x92] sm:$0xff]
        %v3938 = vld [vmem:[%s2787 + $0x9a] sm:$0xff]
        %v3939 = vld [vmem:[%s2787 + $0xaa] sm:$0xff]
        %v3940 = vld [vmem:[%s2787 + $0xb2] sm:$0xff]
        %v3941 = vld [vmem:[%s2787 + $0xc2] sm:$0xff]
        %v3942 = vld [vmem:[%s2787 + $0xca] sm:$0xff]
        %v3943 = vld [vmem:[%s2787 + $0xda] sm:$0xff]
        %v3944 = vld [vmem:[%s2787 + $0xe2] sm:$0xff]
        %v3945 = vld [vmem:[%s2787 + $0xf2] sm:$0xff]
        %v3946 = vld [vmem:[%s2787 + $0xfa] sm:$0xff]
        %v3947 = vld [vmem:[%s2787 + $0x10a] sm:$0xff]
        %v3948 = vld [vmem:[%s2787 + $0x112] sm:$0xff]
        %v3949 = vld [vmem:[%s2787 + $0x122] sm:$0xff]
        %v3950 = vld [vmem:[%s2787 + $0x12a] sm:$0xff]
        %v3951 = vld [vmem:[%s2787 + $0x13a] sm:$0xff]
        %v3952 = vld [vmem:[%s2787 + $0x142] sm:$0xff]
        %v3953 = vld [vmem:[%s2787 + $0x152] sm:$0xff]
        %v3954 = vld [vmem:[%s2787 + $0x15a] sm:$0xff]
        %v3955 = vld [vmem:[%s2787 + $0x16a] sm:$0xff]
        %v3956 = vld [vmem:[%s2787 + $0x172] sm:$0xff]
        %v3957 = vpack.c.bf16 %v3926, %v3925
        %v3958 = vpack.c.bf16 %v3928, %v3927
        %v3959 = vpack.c.bf16 %v3930, %v3929
        %v3960 = vpack.c.bf16 %v3932, %v3931
        %v3961 = vpack.c.bf16 %v3934, %v3933
        %v3962 = vpack.c.bf16 %v3936, %v3935
        %v3963 = vpack.c.bf16 %v3938, %v3937
        %v3964 = vpack.c.bf16 %v3940, %v3939
        %v3965 = vpack.c.bf16 %v3942, %v3941
        %v3966 = vpack.c.bf16 %v3944, %v3943
        %v3967 = vpack.c.bf16 %v3946, %v3945
        %v3968 = vpack.c.bf16 %v3948, %v3947
        %v3969 = vpack.c.bf16 %v3950, %v3949
        %v3970 = vpack.c.bf16 %v3952, %v3951
        %v3971 = vpack.c.bf16 %v3954, %v3953
        %v3972 = vpack.c.bf16 %v3956, %v3955
        %s3973 = scalar_lea.vmem [#allocation9], 80
        %v3974 = vld [vmem:[%s3973] sm:$0xf]
        %v3975 = vld [vmem:[%s3973 + $0x4] sm:$0xf]
        %v3976 = vld [vmem:[%s3973 + $0x8] sm:$0xf]
        %v3977 = vld [vmem:[%s3973 + $0xc] sm:$0xf]
        %v3982 = vunpack.c.l.b16 %v3974
        %v3983 = vunpack.c.l.b16 %v3975
        %v3984 = vunpack.c.l.b16 %v3976
        %v3985 = vunpack.c.l.b16 %v3977
        %v3986 = vpack.c.b16 %v3983, %v3982
        %v3987 = vpack.c.b16 %v3985, %v3984
        %v3991 = vsel %vm498, %v3957, 0
        %v3994 = vsel %vm498, %v3958, 0
        %v3997 = vsel %vm498, %v3959, 0
        %v4000 = vsel %vm498, %v3960, 0
        %v4003 = vsel %vm498, %v3961, 0
        %v4006 = vsel %vm498, %v3962, 0
        %v4009 = vsel %vm498, %v3963, 0
        %v4012 = vsel %vm498, %v3964, 0
        %v4015 = vsel %vm498, %v3965, 0
        %v4018 = vsel %vm498, %v3966, 0
        %v4021 = vsel %vm498, %v3967, 0
        %v4024 = vsel %vm498, %v3968, 0
        %v4027 = vsel %vm498, %v3969, 0
        %v4030 = vsel %vm498, %v3970, 0
        %v4033 = vsel %vm498, %v3971, 0
        %v4036 = vsel %vm498, %v3972, 0
        %4038 = vmatpush.bf16.msra.mxu0 0
        %4039 = vmatpush.bf16.msra.mxu0 0
        %4040 = vmatpush.bf16.msra.mxu0 0
        %4041 = vmatpush.bf16.msra.mxu0 0
        %4042 = vmatpush.bf16.msra.mxu0 0
        %4043 = vmatpush.bf16.msra.mxu0 0
        %4044 = vmatpush.bf16.msra.mxu0 %v3987
        %4045 = vmatpush.bf16.msra.mxu0 %v3986
        %4046 = vmatmul.bf16.gmra.mxu0 %v3991
        %v4047 = vpop.f32.mrf.mxu0
        %v4048 = vadd.f32 0.0, %v4047
        %v4049 = vpop.f32.mrf.mxu0
        %v4050 = vadd.f32 0.0, %v4049
        %4051 = vmatmul.bf16.gmra.mxu0 %v3994
        %v4052 = vpop.f32.mrf.mxu0
        %v4053 = vadd.f32 0.0, %v4052
        %v4054 = vpop.f32.mrf.mxu0
        %v4055 = vadd.f32 0.0, %v4054
        %4056 = vmatmul.bf16.gmra.mxu0 %v3997
        %v4057 = vpop.f32.mrf.mxu0
        %v4058 = vadd.f32 0.0, %v4057
        %v4059 = vpop.f32.mrf.mxu0
        %v4060 = vadd.f32 0.0, %v4059
        %4061 = vmatmul.bf16.gmra.mxu0 %v4000
        %v4062 = vpop.f32.mrf.mxu0
        %v4063 = vadd.f32 0.0, %v4062
        %v4064 = vpop.f32.mrf.mxu0
        %v4065 = vadd.f32 0.0, %v4064
        %4066 = vmatmul.bf16.gmra.mxu0 %v4003
        %v4067 = vpop.f32.mrf.mxu0
        %v4068 = vadd.f32 0.0, %v4067
        %v4069 = vpop.f32.mrf.mxu0
        %v4070 = vadd.f32 0.0, %v4069
        %4071 = vmatmul.bf16.gmra.mxu0 %v4006
        %v4072 = vpop.f32.mrf.mxu0
        %v4073 = vadd.f32 0.0, %v4072
        %v4074 = vpop.f32.mrf.mxu0
        %v4075 = vadd.f32 0.0, %v4074
        %4076 = vmatmul.bf16.gmra.mxu0 %v4009
        %v4077 = vpop.f32.mrf.mxu0
        %v4078 = vadd.f32 0.0, %v4077
        %v4079 = vpop.f32.mrf.mxu0
        %v4080 = vadd.f32 0.0, %v4079
        %4081 = vmatmul.bf16.gmra.mxu0 %v4012
        %v4082 = vpop.f32.mrf.mxu0
        %v4083 = vadd.f32 0.0, %v4082
        %v4084 = vpop.f32.mrf.mxu0
        %v4085 = vadd.f32 0.0, %v4084
        %4086 = vmatmul.bf16.gmra.mxu0 %v4015
        %v4087 = vpop.f32.mrf.mxu0
        %v4088 = vadd.f32 0.0, %v4087
        %v4089 = vpop.f32.mrf.mxu0
        %v4090 = vadd.f32 0.0, %v4089
        %4091 = vmatmul.bf16.gmra.mxu0 %v4018
        %v4092 = vpop.f32.mrf.mxu0
        %v4093 = vadd.f32 0.0, %v4092
        %v4094 = vpop.f32.mrf.mxu0
        %v4095 = vadd.f32 0.0, %v4094
        %4096 = vmatmul.bf16.gmra.mxu0 %v4021
        %v4097 = vpop.f32.mrf.mxu0
        %v4098 = vadd.f32 0.0, %v4097
        %v4099 = vpop.f32.mrf.mxu0
        %v4100 = vadd.f32 0.0, %v4099
        %4101 = vmatmul.bf16.gmra.mxu0 %v4024
        %v4102 = vpop.f32.mrf.mxu0
        %v4103 = vadd.f32 0.0, %v4102
        %v4104 = vpop.f32.mrf.mxu0
        %v4105 = vadd.f32 0.0, %v4104
        %4106 = vmatmul.bf16.gmra.mxu0 %v4027
        %v4107 = vpop.f32.mrf.mxu0
        %v4108 = vadd.f32 0.0, %v4107
        %v4109 = vpop.f32.mrf.mxu0
        %v4110 = vadd.f32 0.0, %v4109
        %4111 = vmatmul.bf16.gmra.mxu0 %v4030
        %v4112 = vpop.f32.mrf.mxu0
        %v4113 = vadd.f32 0.0, %v4112
        %v4114 = vpop.f32.mrf.mxu0
        %v4115 = vadd.f32 0.0, %v4114
        %4116 = vmatmul.bf16.gmra.mxu0 %v4033
        %v4117 = vpop.f32.mrf.mxu0
        %v4118 = vadd.f32 0.0, %v4117
        %v4119 = vpop.f32.mrf.mxu0
        %v4120 = vadd.f32 0.0, %v4119
        %4121 = vmatmul.bf16.gmra.mxu0 %v4036
        %v4122 = vpop.f32.mrf.mxu0
        %v4123 = vadd.f32 0.0, %v4122
        %v4124 = vpop.f32.mrf.mxu0
        %v4125 = vadd.f32 0.0, %v4124
        %4126 = vdwg.mxu0
        %v4127 = vadd.f32 %v3893, %v4048
        %v4128 = vadd.f32 %v3894, %v4050
        %v4129 = vadd.f32 %v3895, %v4053
        %v4130 = vadd.f32 %v3896, %v4055
        %v4131 = vadd.f32 %v3897, %v4058
        %v4132 = vadd.f32 %v3898, %v4060
        %v4133 = vadd.f32 %v3899, %v4063
        %v4134 = vadd.f32 %v3900, %v4065
        %v4135 = vadd.f32 %v3901, %v4068
        %v4136 = vadd.f32 %v3902, %v4070
        %v4137 = vadd.f32 %v3903, %v4073
        %v4138 = vadd.f32 %v3904, %v4075
        %v4139 = vadd.f32 %v3905, %v4078
        %v4140 = vadd.f32 %v3906, %v4080
        %v4141 = vadd.f32 %v3907, %v4083
        %v4142 = vadd.f32 %v3908, %v4085
        %v4143 = vadd.f32 %v3909, %v4088
        %v4144 = vadd.f32 %v3910, %v4090
        %v4145 = vadd.f32 %v3911, %v4093
        %v4146 = vadd.f32 %v3912, %v4095
        %v4147 = vadd.f32 %v3913, %v4098
        %v4148 = vadd.f32 %v3914, %v4100
        %v4149 = vadd.f32 %v3915, %v4103
        %v4150 = vadd.f32 %v3916, %v4105
        %v4151 = vadd.f32 %v3917, %v4108
        %v4152 = vadd.f32 %v3918, %v4110
        %v4153 = vadd.f32 %v3919, %v4113
        %v4154 = vadd.f32 %v3920, %v4115
        %v4155 = vadd.f32 %v3921, %v4118
        %v4156 = vadd.f32 %v3922, %v4120
        %v4157 = vadd.f32 %v3923, %v4123
        %v4158 = vadd.f32 %v3924, %v4125
        %s4159 = scalar_lea.vmem [#allocation3], 48
        %v4160 = vld [vmem:[%s4159] sm:$0xff]
        %v4161 = vld [vmem:[%s4159 + $0x8] sm:$0xff]
        %v4162 = vld [vmem:[%s4159 + $0x18] sm:$0xff]
        %v4163 = vld [vmem:[%s4159 + $0x20] sm:$0xff]
        %v4164 = vld [vmem:[%s4159 + $0x30] sm:$0xff]
        %v4165 = vld [vmem:[%s4159 + $0x38] sm:$0xff]
        %v4166 = vld [vmem:[%s4159 + $0x48] sm:$0xff]
        %v4167 = vld [vmem:[%s4159 + $0x50] sm:$0xff]
        %v4168 = vld [vmem:[%s4159 + $0x60] sm:$0xff]
        %v4169 = vld [vmem:[%s4159 + $0x68] sm:$0xff]
        %v4170 = vld [vmem:[%s4159 + $0x78] sm:$0xff]
        %v4171 = vld [vmem:[%s4159 + $0x80] sm:$0xff]
        %v4172 = vld [vmem:[%s4159 + $0x90] sm:$0xff]
        %v4173 = vld [vmem:[%s4159 + $0x98] sm:$0xff]
        %v4174 = vld [vmem:[%s4159 + $0xa8] sm:$0xff]
        %v4175 = vld [vmem:[%s4159 + $0xb0] sm:$0xff]
        %v4176 = vld [vmem:[%s4159 + $0xc0] sm:$0xff]
        %v4177 = vld [vmem:[%s4159 + $0xc8] sm:$0xff]
        %v4178 = vld [vmem:[%s4159 + $0xd8] sm:$0xff]
        %v4179 = vld [vmem:[%s4159 + $0xe0] sm:$0xff]
        %v4180 = vld [vmem:[%s4159 + $0xf0] sm:$0xff]
        %v4181 = vld [vmem:[%s4159 + $0xf8] sm:$0xff]
        %v4182 = vld [vmem:[%s4159 + $0x108] sm:$0xff]
        %v4183 = vld [vmem:[%s4159 + $0x110] sm:$0xff]
        %v4184 = vld [vmem:[%s4159 + $0x120] sm:$0xff]
        %v4185 = vld [vmem:[%s4159 + $0x128] sm:$0xff]
        %v4186 = vld [vmem:[%s4159 + $0x138] sm:$0xff]
        %v4187 = vld [vmem:[%s4159 + $0x140] sm:$0xff]
        %v4188 = vld [vmem:[%s4159 + $0x150] sm:$0xff]
        %v4189 = vld [vmem:[%s4159 + $0x158] sm:$0xff]
        %v4190 = vld [vmem:[%s4159 + $0x168] sm:$0xff]
        %v4191 = vld [vmem:[%s4159 + $0x170] sm:$0xff]
        %v4192 = vpack.c.bf16 %v4161, %v4160
        %v4193 = vpack.c.bf16 %v4163, %v4162
        %v4194 = vpack.c.bf16 %v4165, %v4164
        %v4195 = vpack.c.bf16 %v4167, %v4166
        %v4196 = vpack.c.bf16 %v4169, %v4168
        %v4197 = vpack.c.bf16 %v4171, %v4170
        %v4198 = vpack.c.bf16 %v4173, %v4172
        %v4199 = vpack.c.bf16 %v4175, %v4174
        %v4200 = vpack.c.bf16 %v4177, %v4176
        %v4201 = vpack.c.bf16 %v4179, %v4178
        %v4202 = vpack.c.bf16 %v4181, %v4180
        %v4203 = vpack.c.bf16 %v4183, %v4182
        %v4204 = vpack.c.bf16 %v4185, %v4184
        %v4205 = vpack.c.bf16 %v4187, %v4186
        %v4206 = vpack.c.bf16 %v4189, %v4188
        %v4207 = vpack.c.bf16 %v4191, %v4190
        %s4208 = scalar_lea.vmem [#allocation9], 96
        %v4209 = vld [vmem:[%s4208] sm:$0xf]
        %v4210 = vld [vmem:[%s4208 + $0x4] sm:$0xf]
        %v4211 = vld [vmem:[%s4208 + $0x8] sm:$0xf]
        %v4212 = vld [vmem:[%s4208 + $0xc] sm:$0xf]
        %v4217 = vunpack.c.l.b16 %v4209
        %v4218 = vunpack.c.l.b16 %v4210
        %v4219 = vunpack.c.l.b16 %v4211
        %v4220 = vunpack.c.l.b16 %v4212
        %v4221 = vpack.c.b16 %v4218, %v4217
        %v4222 = vpack.c.b16 %v4220, %v4219
        %v4226 = vsel %vm498, %v4192, 0
        %v4229 = vsel %vm498, %v4193, 0
        %v4232 = vsel %vm498, %v4194, 0
        %v4235 = vsel %vm498, %v4195, 0
        %v4238 = vsel %vm498, %v4196, 0
        %v4241 = vsel %vm498, %v4197, 0
        %v4244 = vsel %vm498, %v4198, 0
        %v4247 = vsel %vm498, %v4199, 0
        %v4250 = vsel %vm498, %v4200, 0
        %v4253 = vsel %vm498, %v4201, 0
        %v4256 = vsel %vm498, %v4202, 0
        %v4259 = vsel %vm498, %v4203, 0
        %v4262 = vsel %vm498, %v4204, 0
        %v4265 = vsel %vm498, %v4205, 0
        %v4268 = vsel %vm498, %v4206, 0
        %v4271 = vsel %vm498, %v4207, 0
        %4273 = vmatpush.bf16.msra.mxu0 0
        %4274 = vmatpush.bf16.msra.mxu0 0
        %4275 = vmatpush.bf16.msra.mxu0 0
        %4276 = vmatpush.bf16.msra.mxu0 0
        %4277 = vmatpush.bf16.msra.mxu0 0
        %4278 = vmatpush.bf16.msra.mxu0 0
        %4279 = vmatpush.bf16.msra.mxu0 %v4222
        %4280 = vmatpush.bf16.msra.mxu0 %v4221
        %4281 = vmatmul.bf16.gmra.mxu0 %v4226
        %v4282 = vpop.f32.mrf.mxu0
        %v4283 = vadd.f32 0.0, %v4282
        %v4284 = vpop.f32.mrf.mxu0
        %v4285 = vadd.f32 0.0, %v4284
        %4286 = vmatmul.bf16.gmra.mxu0 %v4229
        %v4287 = vpop.f32.mrf.mxu0
        %v4288 = vadd.f32 0.0, %v4287
        %v4289 = vpop.f32.mrf.mxu0
        %v4290 = vadd.f32 0.0, %v4289
        %4291 = vmatmul.bf16.gmra.mxu0 %v4232
        %v4292 = vpop.f32.mrf.mxu0
        %v4293 = vadd.f32 0.0, %v4292
        %v4294 = vpop.f32.mrf.mxu0
        %v4295 = vadd.f32 0.0, %v4294
        %4296 = vmatmul.bf16.gmra.mxu0 %v4235
        %v4297 = vpop.f32.mrf.mxu0
        %v4298 = vadd.f32 0.0, %v4297
        %v4299 = vpop.f32.mrf.mxu0
        %v4300 = vadd.f32 0.0, %v4299
        %4301 = vmatmul.bf16.gmra.mxu0 %v4238
        %v4302 = vpop.f32.mrf.mxu0
        %v4303 = vadd.f32 0.0, %v4302
        %v4304 = vpop.f32.mrf.mxu0
        %v4305 = vadd.f32 0.0, %v4304
        %4306 = vmatmul.bf16.gmra.mxu0 %v4241
        %v4307 = vpop.f32.mrf.mxu0
        %v4308 = vadd.f32 0.0, %v4307
        %v4309 = vpop.f32.mrf.mxu0
        %v4310 = vadd.f32 0.0, %v4309
        %4311 = vmatmul.bf16.gmra.mxu0 %v4244
        %v4312 = vpop.f32.mrf.mxu0
        %v4313 = vadd.f32 0.0, %v4312
        %v4314 = vpop.f32.mrf.mxu0
        %v4315 = vadd.f32 0.0, %v4314
        %4316 = vmatmul.bf16.gmra.mxu0 %v4247
        %v4317 = vpop.f32.mrf.mxu0
        %v4318 = vadd.f32 0.0, %v4317
        %v4319 = vpop.f32.mrf.mxu0
        %v4320 = vadd.f32 0.0, %v4319
        %4321 = vmatmul.bf16.gmra.mxu0 %v4250
        %v4322 = vpop.f32.mrf.mxu0
        %v4323 = vadd.f32 0.0, %v4322
        %v4324 = vpop.f32.mrf.mxu0
        %v4325 = vadd.f32 0.0, %v4324
        %4326 = vmatmul.bf16.gmra.mxu0 %v4253
        %v4327 = vpop.f32.mrf.mxu0
        %v4328 = vadd.f32 0.0, %v4327
        %v4329 = vpop.f32.mrf.mxu0
        %v4330 = vadd.f32 0.0, %v4329
        %4331 = vmatmul.bf16.gmra.mxu0 %v4256
        %v4332 = vpop.f32.mrf.mxu0
        %v4333 = vadd.f32 0.0, %v4332
        %v4334 = vpop.f32.mrf.mxu0
        %v4335 = vadd.f32 0.0, %v4334
        %4336 = vmatmul.bf16.gmra.mxu0 %v4259
        %v4337 = vpop.f32.mrf.mxu0
        %v4338 = vadd.f32 0.0, %v4337
        %v4339 = vpop.f32.mrf.mxu0
        %v4340 = vadd.f32 0.0, %v4339
        %4341 = vmatmul.bf16.gmra.mxu0 %v4262
        %v4342 = vpop.f32.mrf.mxu0
        %v4343 = vadd.f32 0.0, %v4342
        %v4344 = vpop.f32.mrf.mxu0
        %v4345 = vadd.f32 0.0, %v4344
        %4346 = vmatmul.bf16.gmra.mxu0 %v4265
        %v4347 = vpop.f32.mrf.mxu0
        %v4348 = vadd.f32 0.0, %v4347
        %v4349 = vpop.f32.mrf.mxu0
        %v4350 = vadd.f32 0.0, %v4349
        %4351 = vmatmul.bf16.gmra.mxu0 %v4268
        %v4352 = vpop.f32.mrf.mxu0
        %v4353 = vadd.f32 0.0, %v4352
        %v4354 = vpop.f32.mrf.mxu0
        %v4355 = vadd.f32 0.0, %v4354
        %4356 = vmatmul.bf16.gmra.mxu0 %v4271
        %v4357 = vpop.f32.mrf.mxu0
        %v4358 = vadd.f32 0.0, %v4357
        %v4359 = vpop.f32.mrf.mxu0
        %v4360 = vadd.f32 0.0, %v4359
        %4361 = vdwg.mxu0
        %v4362 = vadd.f32 %v4127, %v4283
        %v4363 = vadd.f32 %v4128, %v4285
        %v4364 = vadd.f32 %v4129, %v4288
        %v4365 = vadd.f32 %v4130, %v4290
        %v4366 = vadd.f32 %v4131, %v4293
        %v4367 = vadd.f32 %v4132, %v4295
        %v4368 = vadd.f32 %v4133, %v4298
        %v4369 = vadd.f32 %v4134, %v4300
        %v4370 = vadd.f32 %v4135, %v4303
        %v4371 = vadd.f32 %v4136, %v4305
        %v4372 = vadd.f32 %v4137, %v4308
        %v4373 = vadd.f32 %v4138, %v4310
        %v4374 = vadd.f32 %v4139, %v4313
        %v4375 = vadd.f32 %v4140, %v4315
        %v4376 = vadd.f32 %v4141, %v4318
        %v4377 = vadd.f32 %v4142, %v4320
        %v4378 = vadd.f32 %v4143, %v4323
        %v4379 = vadd.f32 %v4144, %v4325
        %v4380 = vadd.f32 %v4145, %v4328
        %v4381 = vadd.f32 %v4146, %v4330
        %v4382 = vadd.f32 %v4147, %v4333
        %v4383 = vadd.f32 %v4148, %v4335
        %v4384 = vadd.f32 %v4149, %v4338
        %v4385 = vadd.f32 %v4150, %v4340
        %v4386 = vadd.f32 %v4151, %v4343
        %v4387 = vadd.f32 %v4152, %v4345
        %v4388 = vadd.f32 %v4153, %v4348
        %v4389 = vadd.f32 %v4154, %v4350
        %v4390 = vadd.f32 %v4155, %v4353
        %v4391 = vadd.f32 %v4156, %v4355
        %v4392 = vadd.f32 %v4157, %v4358
        %v4393 = vadd.f32 %v4158, %v4360
        %v4394 = vld [vmem:[%s4159 + $0x1] sm:$0xff]
        %v4395 = vld [vmem:[%s4159 + $0x9] sm:$0xff]
        %v4396 = vld [vmem:[%s4159 + $0x19] sm:$0xff]
        %v4397 = vld [vmem:[%s4159 + $0x21] sm:$0xff]
        %v4398 = vld [vmem:[%s4159 + $0x31] sm:$0xff]
        %v4399 = vld [vmem:[%s4159 + $0x39] sm:$0xff]
        %v4400 = vld [vmem:[%s4159 + $0x49] sm:$0xff]
        %v4401 = vld [vmem:[%s4159 + $0x51] sm:$0xff]
        %v4402 = vld [vmem:[%s4159 + $0x61] sm:$0xff]
        %v4403 = vld [vmem:[%s4159 + $0x69] sm:$0xff]
        %v4404 = vld [vmem:[%s4159 + $0x79] sm:$0xff]
        %v4405 = vld [vmem:[%s4159 + $0x81] sm:$0xff]
        %v4406 = vld [vmem:[%s4159 + $0x91] sm:$0xff]
        %v4407 = vld [vmem:[%s4159 + $0x99] sm:$0xff]
        %v4408 = vld [vmem:[%s4159 + $0xa9] sm:$0xff]
        %v4409 = vld [vmem:[%s4159 + $0xb1] sm:$0xff]
        %v4410 = vld [vmem:[%s4159 + $0xc1] sm:$0xff]
        %v4411 = vld [vmem:[%s4159 + $0xc9] sm:$0xff]
        %v4412 = vld [vmem:[%s4159 + $0xd9] sm:$0xff]
        %v4413 = vld [vmem:[%s4159 + $0xe1] sm:$0xff]
        %v4414 = vld [vmem:[%s4159 + $0xf1] sm:$0xff]
        %v4415 = vld [vmem:[%s4159 + $0xf9] sm:$0xff]
        %v4416 = vld [vmem:[%s4159 + $0x109] sm:$0xff]
        %v4417 = vld [vmem:[%s4159 + $0x111] sm:$0xff]
        %v4418 = vld [vmem:[%s4159 + $0x121] sm:$0xff]
        %v4419 = vld [vmem:[%s4159 + $0x129] sm:$0xff]
        %v4420 = vld [vmem:[%s4159 + $0x139] sm:$0xff]
        %v4421 = vld [vmem:[%s4159 + $0x141] sm:$0xff]
        %v4422 = vld [vmem:[%s4159 + $0x151] sm:$0xff]
        %v4423 = vld [vmem:[%s4159 + $0x159] sm:$0xff]
        %v4424 = vld [vmem:[%s4159 + $0x169] sm:$0xff]
        %v4425 = vld [vmem:[%s4159 + $0x171] sm:$0xff]
        %v4426 = vpack.c.bf16 %v4395, %v4394
        %v4427 = vpack.c.bf16 %v4397, %v4396
        %v4428 = vpack.c.bf16 %v4399, %v4398
        %v4429 = vpack.c.bf16 %v4401, %v4400
        %v4430 = vpack.c.bf16 %v4403, %v4402
        %v4431 = vpack.c.bf16 %v4405, %v4404
        %v4432 = vpack.c.bf16 %v4407, %v4406
        %v4433 = vpack.c.bf16 %v4409, %v4408
        %v4434 = vpack.c.bf16 %v4411, %v4410
        %v4435 = vpack.c.bf16 %v4413, %v4412
        %v4436 = vpack.c.bf16 %v4415, %v4414
        %v4437 = vpack.c.bf16 %v4417, %v4416
        %v4438 = vpack.c.bf16 %v4419, %v4418
        %v4439 = vpack.c.bf16 %v4421, %v4420
        %v4440 = vpack.c.bf16 %v4423, %v4422
        %v4441 = vpack.c.bf16 %v4425, %v4424
        %s4442 = scalar_lea.vmem [#allocation9], 112
        %v4443 = vld [vmem:[%s4442] sm:$0xf]
        %v4444 = vld [vmem:[%s4442 + $0x4] sm:$0xf]
        %v4445 = vld [vmem:[%s4442 + $0x8] sm:$0xf]
        %v4446 = vld [vmem:[%s4442 + $0xc] sm:$0xf]
        %v4451 = vunpack.c.l.b16 %v4443
        %v4452 = vunpack.c.l.b16 %v4444
        %v4453 = vunpack.c.l.b16 %v4445
        %v4454 = vunpack.c.l.b16 %v4446
        %v4455 = vpack.c.b16 %v4452, %v4451
        %v4456 = vpack.c.b16 %v4454, %v4453
        %v4460 = vsel %vm498, %v4426, 0
        %v4463 = vsel %vm498, %v4427, 0
        %v4466 = vsel %vm498, %v4428, 0
        %v4469 = vsel %vm498, %v4429, 0
        %v4472 = vsel %vm498, %v4430, 0
        %v4475 = vsel %vm498, %v4431, 0
        %v4478 = vsel %vm498, %v4432, 0
        %v4481 = vsel %vm498, %v4433, 0
        %v4484 = vsel %vm498, %v4434, 0
        %v4487 = vsel %vm498, %v4435, 0
        %v4490 = vsel %vm498, %v4436, 0
        %v4493 = vsel %vm498, %v4437, 0
        %v4496 = vsel %vm498, %v4438, 0
        %v4499 = vsel %vm498, %v4439, 0
        %v4502 = vsel %vm498, %v4440, 0
        %v4505 = vsel %vm498, %v4441, 0
        %4507 = vmatpush.bf16.msra.mxu0 0
        %4508 = vmatpush.bf16.msra.mxu0 0
        %4509 = vmatpush.bf16.msra.mxu0 0
        %4510 = vmatpush.bf16.msra.mxu0 0
        %4511 = vmatpush.bf16.msra.mxu0 0
        %4512 = vmatpush.bf16.msra.mxu0 0
        %4513 = vmatpush.bf16.msra.mxu0 %v4456
        %4514 = vmatpush.bf16.msra.mxu0 %v4455
        %4515 = vmatmul.bf16.gmra.mxu0 %v4460
        %v4516 = vpop.f32.mrf.mxu0
        %v4517 = vadd.f32 0.0, %v4516
        %v4518 = vpop.f32.mrf.mxu0
        %v4519 = vadd.f32 0.0, %v4518
        %4520 = vmatmul.bf16.gmra.mxu0 %v4463
        %v4521 = vpop.f32.mrf.mxu0
        %v4522 = vadd.f32 0.0, %v4521
        %v4523 = vpop.f32.mrf.mxu0
        %v4524 = vadd.f32 0.0, %v4523
        %4525 = vmatmul.bf16.gmra.mxu0 %v4466
        %v4526 = vpop.f32.mrf.mxu0
        %v4527 = vadd.f32 0.0, %v4526
        %v4528 = vpop.f32.mrf.mxu0
        %v4529 = vadd.f32 0.0, %v4528
        %4530 = vmatmul.bf16.gmra.mxu0 %v4469
        %v4531 = vpop.f32.mrf.mxu0
        %v4532 = vadd.f32 0.0, %v4531
        %v4533 = vpop.f32.mrf.mxu0
        %v4534 = vadd.f32 0.0, %v4533
        %4535 = vmatmul.bf16.gmra.mxu0 %v4472
        %v4536 = vpop.f32.mrf.mxu0
        %v4537 = vadd.f32 0.0, %v4536
        %v4538 = vpop.f32.mrf.mxu0
        %v4539 = vadd.f32 0.0, %v4538
        %4540 = vmatmul.bf16.gmra.mxu0 %v4475
        %v4541 = vpop.f32.mrf.mxu0
        %v4542 = vadd.f32 0.0, %v4541
        %v4543 = vpop.f32.mrf.mxu0
        %v4544 = vadd.f32 0.0, %v4543
        %4545 = vmatmul.bf16.gmra.mxu0 %v4478
        %v4546 = vpop.f32.mrf.mxu0
        %v4547 = vadd.f32 0.0, %v4546
        %v4548 = vpop.f32.mrf.mxu0
        %v4549 = vadd.f32 0.0, %v4548
        %4550 = vmatmul.bf16.gmra.mxu0 %v4481
        %v4551 = vpop.f32.mrf.mxu0
        %v4552 = vadd.f32 0.0, %v4551
        %v4553 = vpop.f32.mrf.mxu0
        %v4554 = vadd.f32 0.0, %v4553
        %4555 = vmatmul.bf16.gmra.mxu0 %v4484
        %v4556 = vpop.f32.mrf.mxu0
        %v4557 = vadd.f32 0.0, %v4556
        %v4558 = vpop.f32.mrf.mxu0
        %v4559 = vadd.f32 0.0, %v4558
        %4560 = vmatmul.bf16.gmra.mxu0 %v4487
        %v4561 = vpop.f32.mrf.mxu0
        %v4562 = vadd.f32 0.0, %v4561
        %v4563 = vpop.f32.mrf.mxu0
        %v4564 = vadd.f32 0.0, %v4563
        %4565 = vmatmul.bf16.gmra.mxu0 %v4490
        %v4566 = vpop.f32.mrf.mxu0
        %v4567 = vadd.f32 0.0, %v4566
        %v4568 = vpop.f32.mrf.mxu0
        %v4569 = vadd.f32 0.0, %v4568
        %4570 = vmatmul.bf16.gmra.mxu0 %v4493
        %v4571 = vpop.f32.mrf.mxu0
        %v4572 = vadd.f32 0.0, %v4571
        %v4573 = vpop.f32.mrf.mxu0
        %v4574 = vadd.f32 0.0, %v4573
        %4575 = vmatmul.bf16.gmra.mxu0 %v4496
        %v4576 = vpop.f32.mrf.mxu0
        %v4577 = vadd.f32 0.0, %v4576
        %v4578 = vpop.f32.mrf.mxu0
        %v4579 = vadd.f32 0.0, %v4578
        %4580 = vmatmul.bf16.gmra.mxu0 %v4499
        %v4581 = vpop.f32.mrf.mxu0
        %v4582 = vadd.f32 0.0, %v4581
        %v4583 = vpop.f32.mrf.mxu0
        %v4584 = vadd.f32 0.0, %v4583
        %4585 = vmatmul.bf16.gmra.mxu0 %v4502
        %v4586 = vpop.f32.mrf.mxu0
        %v4587 = vadd.f32 0.0, %v4586
        %v4588 = vpop.f32.mrf.mxu0
        %v4589 = vadd.f32 0.0, %v4588
        %4590 = vmatmul.bf16.gmra.mxu0 %v4505
        %v4591 = vpop.f32.mrf.mxu0
        %v4592 = vadd.f32 0.0, %v4591
        %v4593 = vpop.f32.mrf.mxu0
        %v4594 = vadd.f32 0.0, %v4593
        %4595 = vdwg.mxu0
        %v4596 = vadd.f32 %v4362, %v4517
        %v4597 = vadd.f32 %v4363, %v4519
        %v4598 = vadd.f32 %v4364, %v4522
        %v4599 = vadd.f32 %v4365, %v4524
        %v4600 = vadd.f32 %v4366, %v4527
        %v4601 = vadd.f32 %v4367, %v4529
        %v4602 = vadd.f32 %v4368, %v4532
        %v4603 = vadd.f32 %v4369, %v4534
        %v4604 = vadd.f32 %v4370, %v4537
        %v4605 = vadd.f32 %v4371, %v4539
        %v4606 = vadd.f32 %v4372, %v4542
        %v4607 = vadd.f32 %v4373, %v4544
        %v4608 = vadd.f32 %v4374, %v4547
        %v4609 = vadd.f32 %v4375, %v4549
        %v4610 = vadd.f32 %v4376, %v4552
        %v4611 = vadd.f32 %v4377, %v4554
        %v4612 = vadd.f32 %v4378, %v4557
        %v4613 = vadd.f32 %v4379, %v4559
        %v4614 = vadd.f32 %v4380, %v4562
        %v4615 = vadd.f32 %v4381, %v4564
        %v4616 = vadd.f32 %v4382, %v4567
        %v4617 = vadd.f32 %v4383, %v4569
        %v4618 = vadd.f32 %v4384, %v4572
        %v4619 = vadd.f32 %v4385, %v4574
        %v4620 = vadd.f32 %v4386, %v4577
        %v4621 = vadd.f32 %v4387, %v4579
        %v4622 = vadd.f32 %v4388, %v4582
        %v4623 = vadd.f32 %v4389, %v4584
        %v4624 = vadd.f32 %v4390, %v4587
        %v4625 = vadd.f32 %v4391, %v4589
        %v4626 = vadd.f32 %v4392, %v4592
        %v4627 = vadd.f32 %v4393, %v4594
        %v4628 = vld [vmem:[%s4159 + $0x2] sm:$0xff]
        %v4629 = vld [vmem:[%s4159 + $0xa] sm:$0xff]
        %v4630 = vld [vmem:[%s4159 + $0x1a] sm:$0xff]
        %v4631 = vld [vmem:[%s4159 + $0x22] sm:$0xff]
        %v4632 = vld [vmem:[%s4159 + $0x32] sm:$0xff]
        %v4633 = vld [vmem:[%s4159 + $0x3a] sm:$0xff]
        %v4634 = vld [vmem:[%s4159 + $0x4a] sm:$0xff]
        %v4635 = vld [vmem:[%s4159 + $0x52] sm:$0xff]
        %v4636 = vld [vmem:[%s4159 + $0x62] sm:$0xff]
        %v4637 = vld [vmem:[%s4159 + $0x6a] sm:$0xff]
        %v4638 = vld [vmem:[%s4159 + $0x7a] sm:$0xff]
        %v4639 = vld [vmem:[%s4159 + $0x82] sm:$0xff]
        %v4640 = vld [vmem:[%s4159 + $0x92] sm:$0xff]
        %v4641 = vld [vmem:[%s4159 + $0x9a] sm:$0xff]
        %v4642 = vld [vmem:[%s4159 + $0xaa] sm:$0xff]
        %v4643 = vld [vmem:[%s4159 + $0xb2] sm:$0xff]
        %v4644 = vld [vmem:[%s4159 + $0xc2] sm:$0xff]
        %v4645 = vld [vmem:[%s4159 + $0xca] sm:$0xff]
        %v4646 = vld [vmem:[%s4159 + $0xda] sm:$0xff]
        %v4647 = vld [vmem:[%s4159 + $0xe2] sm:$0xff]
        %v4648 = vld [vmem:[%s4159 + $0xf2] sm:$0xff]
        %v4649 = vld [vmem:[%s4159 + $0xfa] sm:$0xff]
        %v4650 = vld [vmem:[%s4159 + $0x10a] sm:$0xff]
        %v4651 = vld [vmem:[%s4159 + $0x112] sm:$0xff]
        %v4652 = vld [vmem:[%s4159 + $0x122] sm:$0xff]
        %v4653 = vld [vmem:[%s4159 + $0x12a] sm:$0xff]
        %v4654 = vld [vmem:[%s4159 + $0x13a] sm:$0xff]
        %v4655 = vld [vmem:[%s4159 + $0x142] sm:$0xff]
        %v4656 = vld [vmem:[%s4159 + $0x152] sm:$0xff]
        %v4657 = vld [vmem:[%s4159 + $0x15a] sm:$0xff]
        %v4658 = vld [vmem:[%s4159 + $0x16a] sm:$0xff]
        %v4659 = vld [vmem:[%s4159 + $0x172] sm:$0xff]
        %v4660 = vpack.c.bf16 %v4629, %v4628
        %v4661 = vpack.c.bf16 %v4631, %v4630
        %v4662 = vpack.c.bf16 %v4633, %v4632
        %v4663 = vpack.c.bf16 %v4635, %v4634
        %v4664 = vpack.c.bf16 %v4637, %v4636
        %v4665 = vpack.c.bf16 %v4639, %v4638
        %v4666 = vpack.c.bf16 %v4641, %v4640
        %v4667 = vpack.c.bf16 %v4643, %v4642
        %v4668 = vpack.c.bf16 %v4645, %v4644
        %v4669 = vpack.c.bf16 %v4647, %v4646
        %v4670 = vpack.c.bf16 %v4649, %v4648
        %v4671 = vpack.c.bf16 %v4651, %v4650
        %v4672 = vpack.c.bf16 %v4653, %v4652
        %v4673 = vpack.c.bf16 %v4655, %v4654
        %v4674 = vpack.c.bf16 %v4657, %v4656
        %v4675 = vpack.c.bf16 %v4659, %v4658
        %s4676 = scalar_lea.vmem [#allocation9], 128
        %v4677 = vld [vmem:[%s4676] sm:$0xf]
        %v4678 = vld [vmem:[%s4676 + $0x4] sm:$0xf]
        %v4679 = vld [vmem:[%s4676 + $0x8] sm:$0xf]
        %v4680 = vld [vmem:[%s4676 + $0xc] sm:$0xf]
        %v4685 = vunpack.c.l.b16 %v4677
        %v4686 = vunpack.c.l.b16 %v4678
        %v4687 = vunpack.c.l.b16 %v4679
        %v4688 = vunpack.c.l.b16 %v4680
        %v4689 = vpack.c.b16 %v4686, %v4685
        %v4690 = vpack.c.b16 %v4688, %v4687
        %v4694 = vsel %vm498, %v4660, 0
        %v4697 = vsel %vm498, %v4661, 0
        %v4700 = vsel %vm498, %v4662, 0
        %v4703 = vsel %vm498, %v4663, 0
        %v4706 = vsel %vm498, %v4664, 0
        %v4709 = vsel %vm498, %v4665, 0
        %v4712 = vsel %vm498, %v4666, 0
        %v4715 = vsel %vm498, %v4667, 0
        %v4718 = vsel %vm498, %v4668, 0
        %v4721 = vsel %vm498, %v4669, 0
        %v4724 = vsel %vm498, %v4670, 0
        %v4727 = vsel %vm498, %v4671, 0
        %v4730 = vsel %vm498, %v4672, 0
        %v4733 = vsel %vm498, %v4673, 0
        %v4736 = vsel %vm498, %v4674, 0
        %v4739 = vsel %vm498, %v4675, 0
        %4741 = vmatpush.bf16.msra.mxu0 0
        %4742 = vmatpush.bf16.msra.mxu0 0
        %4743 = vmatpush.bf16.msra.mxu0 0
        %4744 = vmatpush.bf16.msra.mxu0 0
        %4745 = vmatpush.bf16.msra.mxu0 0
        %4746 = vmatpush.bf16.msra.mxu0 0
        %4747 = vmatpush.bf16.msra.mxu0 %v4690
        %4748 = vmatpush.bf16.msra.mxu0 %v4689
        %4749 = vmatmul.bf16.gmra.mxu0 %v4694
        %v4750 = vpop.f32.mrf.mxu0
        %v4751 = vadd.f32 0.0, %v4750
        %v4752 = vpop.f32.mrf.mxu0
        %v4753 = vadd.f32 0.0, %v4752
        %4754 = vmatmul.bf16.gmra.mxu0 %v4697
        %v4755 = vpop.f32.mrf.mxu0
        %v4756 = vadd.f32 0.0, %v4755
        %v4757 = vpop.f32.mrf.mxu0
        %v4758 = vadd.f32 0.0, %v4757
        %4759 = vmatmul.bf16.gmra.mxu0 %v4700
        %v4760 = vpop.f32.mrf.mxu0
        %v4761 = vadd.f32 0.0, %v4760
        %v4762 = vpop.f32.mrf.mxu0
        %v4763 = vadd.f32 0.0, %v4762
        %4764 = vmatmul.bf16.gmra.mxu0 %v4703
        %v4765 = vpop.f32.mrf.mxu0
        %v4766 = vadd.f32 0.0, %v4765
        %v4767 = vpop.f32.mrf.mxu0
        %v4768 = vadd.f32 0.0, %v4767
        %4769 = vmatmul.bf16.gmra.mxu0 %v4706
        %v4770 = vpop.f32.mrf.mxu0
        %v4771 = vadd.f32 0.0, %v4770
        %v4772 = vpop.f32.mrf.mxu0
        %v4773 = vadd.f32 0.0, %v4772
        %4774 = vmatmul.bf16.gmra.mxu0 %v4709
        %v4775 = vpop.f32.mrf.mxu0
        %v4776 = vadd.f32 0.0, %v4775
        %v4777 = vpop.f32.mrf.mxu0
        %v4778 = vadd.f32 0.0, %v4777
        %4779 = vmatmul.bf16.gmra.mxu0 %v4712
        %v4780 = vpop.f32.mrf.mxu0
        %v4781 = vadd.f32 0.0, %v4780
        %v4782 = vpop.f32.mrf.mxu0
        %v4783 = vadd.f32 0.0, %v4782
        %4784 = vmatmul.bf16.gmra.mxu0 %v4715
        %v4785 = vpop.f32.mrf.mxu0
        %v4786 = vadd.f32 0.0, %v4785
        %v4787 = vpop.f32.mrf.mxu0
        %v4788 = vadd.f32 0.0, %v4787
        %4789 = vmatmul.bf16.gmra.mxu0 %v4718
        %v4790 = vpop.f32.mrf.mxu0
        %v4791 = vadd.f32 0.0, %v4790
        %v4792 = vpop.f32.mrf.mxu0
        %v4793 = vadd.f32 0.0, %v4792
        %4794 = vmatmul.bf16.gmra.mxu0 %v4721
        %v4795 = vpop.f32.mrf.mxu0
        %v4796 = vadd.f32 0.0, %v4795
        %v4797 = vpop.f32.mrf.mxu0
        %v4798 = vadd.f32 0.0, %v4797
        %4799 = vmatmul.bf16.gmra.mxu0 %v4724
        %v4800 = vpop.f32.mrf.mxu0
        %v4801 = vadd.f32 0.0, %v4800
        %v4802 = vpop.f32.mrf.mxu0
        %v4803 = vadd.f32 0.0, %v4802
        %4804 = vmatmul.bf16.gmra.mxu0 %v4727
        %v4805 = vpop.f32.mrf.mxu0
        %v4806 = vadd.f32 0.0, %v4805
        %v4807 = vpop.f32.mrf.mxu0
        %v4808 = vadd.f32 0.0, %v4807
        %4809 = vmatmul.bf16.gmra.mxu0 %v4730
        %v4810 = vpop.f32.mrf.mxu0
        %v4811 = vadd.f32 0.0, %v4810
        %v4812 = vpop.f32.mrf.mxu0
        %v4813 = vadd.f32 0.0, %v4812
        %4814 = vmatmul.bf16.gmra.mxu0 %v4733
        %v4815 = vpop.f32.mrf.mxu0
        %v4816 = vadd.f32 0.0, %v4815
        %v4817 = vpop.f32.mrf.mxu0
        %v4818 = vadd.f32 0.0, %v4817
        %4819 = vmatmul.bf16.gmra.mxu0 %v4736
        %v4820 = vpop.f32.mrf.mxu0
        %v4821 = vadd.f32 0.0, %v4820
        %v4822 = vpop.f32.mrf.mxu0
        %v4823 = vadd.f32 0.0, %v4822
        %4824 = vmatmul.bf16.gmra.mxu0 %v4739
        %v4825 = vpop.f32.mrf.mxu0
        %v4826 = vadd.f32 0.0, %v4825
        %v4827 = vpop.f32.mrf.mxu0
        %v4828 = vadd.f32 0.0, %v4827
        %4829 = vdwg.mxu0
        %v4830 = vadd.f32 %v4596, %v4751
        %v4831 = vadd.f32 %v4597, %v4753
        %v4832 = vadd.f32 %v4598, %v4756
        %v4833 = vadd.f32 %v4599, %v4758
        %v4834 = vadd.f32 %v4600, %v4761
        %v4835 = vadd.f32 %v4601, %v4763
        %v4836 = vadd.f32 %v4602, %v4766
        %v4837 = vadd.f32 %v4603, %v4768
        %v4838 = vadd.f32 %v4604, %v4771
        %v4839 = vadd.f32 %v4605, %v4773
        %v4840 = vadd.f32 %v4606, %v4776
        %v4841 = vadd.f32 %v4607, %v4778
        %v4842 = vadd.f32 %v4608, %v4781
        %v4843 = vadd.f32 %v4609, %v4783
        %v4844 = vadd.f32 %v4610, %v4786
        %v4845 = vadd.f32 %v4611, %v4788
        %v4846 = vadd.f32 %v4612, %v4791
        %v4847 = vadd.f32 %v4613, %v4793
        %v4848 = vadd.f32 %v4614, %v4796
        %v4849 = vadd.f32 %v4615, %v4798
        %v4850 = vadd.f32 %v4616, %v4801
        %v4851 = vadd.f32 %v4617, %v4803
        %v4852 = vadd.f32 %v4618, %v4806
        %v4853 = vadd.f32 %v4619, %v4808
        %v4854 = vadd.f32 %v4620, %v4811
        %v4855 = vadd.f32 %v4621, %v4813
        %v4856 = vadd.f32 %v4622, %v4816
        %v4857 = vadd.f32 %v4623, %v4818
        %v4858 = vadd.f32 %v4624, %v4821
        %v4859 = vadd.f32 %v4625, %v4823
        %v4860 = vadd.f32 %v4626, %v4826
        %v4861 = vadd.f32 %v4627, %v4828
        %v4862 = vadd.f32 %v4830, %v362
        %v4863 = vadd.f32 %v4831, %v363
        %v4864 = vadd.f32 %v4832, %v364
        %v4865 = vadd.f32 %v4833, %v365
        %v4866 = vadd.f32 %v4834, %v366
        %v4867 = vadd.f32 %v4835, %v367
        %v4868 = vadd.f32 %v4836, %v368
        %v4869 = vadd.f32 %v4837, %v369
        %v4870 = vadd.f32 %v4838, %v370
        %v4871 = vadd.f32 %v4839, %v371
        %v4872 = vadd.f32 %v4840, %v372
        %v4873 = vadd.f32 %v4841, %v373
        %v4874 = vadd.f32 %v4842, %v374
        %v4875 = vadd.f32 %v4843, %v375
        %v4876 = vadd.f32 %v4844, %v376
        %v4877 = vadd.f32 %v4845, %v377
        %v4878 = vadd.f32 %v4846, %v378
        %v4879 = vadd.f32 %v4847, %v379
        %v4880 = vadd.f32 %v4848, %v380
        %v4881 = vadd.f32 %v4849, %v381
        %v4882 = vadd.f32 %v4850, %v382
        %v4883 = vadd.f32 %v4851, %v383
        %v4884 = vadd.f32 %v4852, %v384
        %v4885 = vadd.f32 %v4853, %v385
        %v4886 = vadd.f32 %v4854, %v386
        %v4887 = vadd.f32 %v4855, %v387
        %v4888 = vadd.f32 %v4856, %v388
        %v4889 = vadd.f32 %v4857, %v389
        %v4890 = vadd.f32 %v4858, %v390
        %v4891 = vadd.f32 %v4859, %v391
        %v4892 = vadd.f32 %v4860, %v392
        %v4893 = vadd.f32 %v4861, %v393
        %4894 = vst.msk [vmem:[%s360] sm:$0xff] %vm498, %v4862
        %4895 = vst.msk [vmem:[%s360 + $0x8] sm:$0xff] %vm498, %v4863
        %4896 = vst.msk [vmem:[%s360 + $0x10] sm:$0xff] %vm498, %v4864
        %4897 = vst.msk [vmem:[%s360 + $0x18] sm:$0xff] %vm498, %v4865
        %4898 = vst.msk [vmem:[%s360 + $0x20] sm:$0xff] %vm498, %v4866
        %4899 = vst.msk [vmem:[%s360 + $0x28] sm:$0xff] %vm498, %v4867
        %4900 = vst.msk [vmem:[%s360 + $0x30] sm:$0xff] %vm498, %v4868
        %4901 = vst.msk [vmem:[%s360 + $0x38] sm:$0xff] %vm498, %v4869
        %4902 = vst.msk [vmem:[%s360 + $0x40] sm:$0xff] %vm498, %v4870
        %4903 = vst.msk [vmem:[%s360 + $0x48] sm:$0xff] %vm498, %v4871
        %4904 = vst.msk [vmem:[%s360 + $0x50] sm:$0xff] %vm498, %v4872
        %4905 = vst.msk [vmem:[%s360 + $0x58] sm:$0xff] %vm498, %v4873
        %4906 = vst.msk [vmem:[%s360 + $0x60] sm:$0xff] %vm498, %v4874
        %4907 = vst.msk [vmem:[%s360 + $0x68] sm:$0xff] %vm498, %v4875
        %4908 = vst.msk [vmem:[%s360 + $0x70] sm:$0xff] %vm498, %v4876
        %4909 = vst.msk [vmem:[%s360 + $0x78] sm:$0xff] %vm498, %v4877
        %4910 = vst.msk [vmem:[%s360 + $0x80] sm:$0xff] %vm498, %v4878
        %4911 = vst.msk [vmem:[%s360 + $0x88] sm:$0xff] %vm498, %v4879
        %4912 = vst.msk [vmem:[%s360 + $0x90] sm:$0xff] %vm498, %v4880
        %4913 = vst.msk [vmem:[%s360 + $0x98] sm:$0xff] %vm498, %v4881
        %4914 = vst.msk [vmem:[%s360 + $0xa0] sm:$0xff] %vm498, %v4882
        %4915 = vst.msk [vmem:[%s360 + $0xa8] sm:$0xff] %vm498, %v4883
        %4916 = vst.msk [vmem:[%s360 + $0xb0] sm:$0xff] %vm498, %v4884
        %4917 = vst.msk [vmem:[%s360 + $0xb8] sm:$0xff] %vm498, %v4885
        %4918 = vst.msk [vmem:[%s360 + $0xc0] sm:$0xff] %vm498, %v4886
        %4919 = vst.msk [vmem:[%s360 + $0xc8] sm:$0xff] %vm498, %v4887
        %4920 = vst.msk [vmem:[%s360 + $0xd0] sm:$0xff] %vm498, %v4888
        %4921 = vst.msk [vmem:[%s360 + $0xd8] sm:$0xff] %vm498, %v4889
        %4922 = vst.msk [vmem:[%s360 + $0xe0] sm:$0xff] %vm498, %v4890
        %4923 = vst.msk [vmem:[%s360 + $0xe8] sm:$0xff] %vm498, %v4891
        %4924 = vst.msk [vmem:[%s360 + $0xf0] sm:$0xff] %vm498, %v4892
        %4925 = vst.msk [vmem:[%s360 + $0xf8] sm:$0xff] %vm498, %v4893
        %s4926 = sand.u32 %s186, 1
        %s4927 = scalar_lea.sflag [#allocation6], %s4926
        %s4928 = sand.u32 %s186, 1
        %s4929 = smul.addr %s4928, 256
        %s4930 = scalar_lea.vmem [#allocation13], %s4929
        // Predicated region
        $region69: #{preact_basic_block.1} parent=47 // pred_check
          %p4931 = pneg %p196
        $region70: #{preact_basic_block.1} parent=47 // pred_check_branch
          %4933 = sbr.rel (%p4931) target = $region72
        $region71: #{preact_basic_block.1} parent=47 // pred_region
          %4935 = vsyncadd %s4927, 0
          %s4936 = smul.addr %s26, 32
          %s4937 = smul.addr %s4936, 8
          %s4938 = scalar_lea.hbm %s7, %s4937
          %s4939 = sshll.u32 %s4930, 4
          %s4940 = int_to_ptr.vmem [resolvable:$true] %s4939
          %s4941 = sshll.u32 %s4938, 4
          %s4942 = int_to_ptr.hbm [resolvable:$true] %s4941
          %4947 = dma.vmem_to_hbm [thread:$0]  %s4940, 4096, %s4942, %s4927, 128, 128, 8
        $region72: #{preact_basic_block.1} parent=47 // pred_fallthru
          _
      $region48: #{preact_basic_block.1} parent=5 // pred_fallthru
        _
      %p4948 = scmp.le.s32.totalorder 2, %s21
      // Predicated region
      $region73: #{preact_basic_block.1} parent=5 // pred_check
        %p4949 = pneg %p4948
      $region74: #{preact_basic_block.1} parent=5 // pred_check_branch
        %4951 = sbr.rel (%p4949) target = $region76
      $region75: #{preact_basic_block.1} parent=5 // pred_region
        %s4952 = ssub.s32 %s21, 2
        // Predicated region
        $region77: #{preact_basic_block.1} parent=75 // pred_check
          %p4953 = pneg %p202
        $region78: #{preact_basic_block.1} parent=75 // pred_check_branch
          %4955 = sbr.rel (%p4953) target = $region80
        $region79: #{preact_basic_block.1} parent=75 // pred_region
          %s4956 = sand.u32 %s187, 1
          %s4957 = scalar_lea.sflag [#allocation6], %s4956
          %s4958 = sand.u32 %s187, 1
          %s4959 = smul.addr %s4958, 256
          %s4960 = scalar_lea.vmem [#allocation13], %s4959
          %4962 = dma.done %s4957, 4096
        $region80: #{preact_basic_block.1} parent=75 // pred_fallthru
          _
      $region76: #{preact_basic_block.1} parent=5 // pred_fallthru
        _
    $region6: #{preact_basic_block.1} parent=1 // loop_footer
      %s25 = sadd.s32 1, %s21
    $region7: #{preact_basic_block.1} parent=1 // loop_footer_branch
      %20 = sbr.rel target = $region3
    $region8: #{preact_basic_block.1} parent=1 // loop_exit
      _
    %4963 = vsyncpa [#allocation5], 1
    %s4964 = scalar_lea.sflag [#allocation5], 1
    %4965 = vsyncpa %s4964, 1
    %4966 = vsyncpa [#allocation8], 1
    %4967 = vsyncpa [#allocation11], 1
    %4968 = vsyncpa [#allocation6], 1
    %s4969 = scalar_lea.sflag [#allocation6], 1
    %4970 = vsyncpa %s4969, 1

</llo_original>
